<compile_context>
chip_gen: v7x
topology: tpu7x:2x2x1
jax: 0.10.0
libtpu: 0.0.40
codegen_flags: <defaults>
</compile_context>

<pallas_src>
import functools

import jax
import jax.numpy as jnp
from jax.experimental import pallas as pl
from jax.experimental.pallas import tpu as pltpu

_LANE = 128


def _layer_norm(z, gamma, beta, eps):
    mu = jnp.mean(z, axis=-1, keepdims=True)
    var = jnp.mean((z - mu) ** 2, axis=-1, keepdims=True)
    return (z - mu) * jax.lax.rsqrt(var + eps) * gamma + beta


def fused_kernel(x_ref, wqkv_ref, bqkv_ref, wo_ref, w1_ref, b1_ref, w2_ref,
                 vecs_ref, fcw_ref, fcb_ref, out_ref,
                 *, batch, seq, nhead, num_layers, eps):
    """Whole forward pass (all encoder layers + fc head) in one invocation."""
    BS, D = x_ref.shape                       # (batch*seq, d_model)
    hd = D // nhead
    scale = 1.0 / float(hd) ** 0.5

    x = x_ref[...]                            # activation carried in registers/VMEM

    for l in range(num_layers):               # static unroll (L is small)
        vecs = vecs_ref[l]                    # (6, D): bo, g1, be1, b2, g2, be2

        # ---- multi-head self-attention: one packed QKV matmul ----
        qkv = (jnp.dot(x, wqkv_ref[l], preferred_element_type=jnp.float32)
               + bqkv_ref[l])                 # (BS, 3D)

        # Fold heads into the leading batch axis -> single-batch-dim einsums.
        def split_heads(off):
            parts = [qkv[:, off + h * hd: off + (h + 1) * hd].reshape(batch, seq, hd)
                     for h in range(nhead)]
            return jnp.concatenate(parts, axis=0)      # (nhead*batch, seq, hd)

        q = split_heads(0)
        k = split_heads(D)
        v = split_heads(2 * D)

        s = jnp.einsum('bqd,bkd->bqk', q, k,
                       preferred_element_type=jnp.float32) * scale
        s = s - jnp.max(s, axis=-1, keepdims=True)
        p = jnp.exp(s)
        p = p / jnp.sum(p, axis=-1, keepdims=True)     # exact divide (parity)
        ctx = jnp.einsum('bqk,bkd->bqd', p, v,
                         preferred_element_type=jnp.float32)  # (nhead*batch, seq, hd)

        # Re-assemble heads on the lane axis -> ONE lane-dense out-projection.
        ctx2d = jnp.concatenate(
            [ctx[h * batch:(h + 1) * batch].reshape(batch * seq, hd)
             for h in range(nhead)], axis=-1)          # (BS, D)
        attn = (jnp.dot(ctx2d, wo_ref[l], preferred_element_type=jnp.float32)
                + vecs[0:1, :])                        # + out_proj bias

        # Residual + LayerNorm 1 (dropout = identity in eval mode).
        x1 = _layer_norm(x + attn, vecs[1:2, :], vecs[2:3, :], eps)

        # Feed-forward: Linear1 -> ReLU -> Linear2, residual + LayerNorm 2.
        h1 = jnp.maximum(
            jnp.dot(x1, w1_ref[l], preferred_element_type=jnp.float32)
            + b1_ref[l], 0.0)
        ff = (jnp.dot(h1, w2_ref[l], preferred_element_type=jnp.float32)
              + vecs[3:4, :])
        x = _layer_norm(x1 + ff, vecs[4:5, :], vecs[5:6, :], eps)

    # transformer_out[-1, :, :] == row b*S + (S-1) for each batch element b.
    last_tok = x.reshape(batch, seq, D)[:, seq - 1, :]             # (batch, D)
    # fc weight is zero-padded to 128 lanes -> lane-dense (batch, 128) store.
    out_ref[...] = (jnp.dot(last_tok, fcw_ref[...],
                            preferred_element_type=jnp.float32)
                    + fcb_ref[...])


def transformer_model_forward(x, params, nhead=4, eps=1e-5):
    """x: (batch, seq, d_model) float32 -> (batch, 1) float32."""
    B, S, D = x.shape
    L = params['wqkv'].shape[0]
    H = params['w1'].shape[-1]
    x2d = x.reshape(B * S, D)

    # Lane-dense fc head: pad (D,1)/(1,1) to 128 lanes; slice back after the call.
    fcw_pad = jnp.zeros((D, _LANE), jnp.float32).at[:, 0].set(params['fc_w'][:, 0])
    fcb_pad = jnp.zeros((1, _LANE), jnp.float32).at[0, 0].set(params['fc_b'][0, 0])

    # Explicit VMEM budget: weights + activation slabs (x, qkv, heads, FFN
    # intermediates) with headroom, floored at the default scoped limit.
    f32 = 4
    weight_bytes = f32 * (params['wqkv'].size + params['bqkv'].size
                          + params['wo'].size + params['w1'].size
                          + params['b1'].size + params['w2'].size
                          + params['vecs'].size + fcw_pad.size + fcb_pad.size)
    act_bytes = f32 * B * S * (8 * D + 2 * H)
    vmem_limit = int(min(max(2 * (weight_bytes + act_bytes), 32 << 20), 100 << 20))

    kernel = functools.partial(fused_kernel, batch=B, seq=S, nhead=nhead,
                               num_layers=L, eps=eps)
    vspec = pl.BlockSpec(memory_space=pltpu.MemorySpace.VMEM)

    out_pad = pl.pallas_call(
        kernel,
        out_shape=jax.ShapeDtypeStruct((B, _LANE), jnp.float32),
        in_specs=[vspec] * 10,
        out_specs=vspec,
        compiler_params=pltpu.CompilerParams(vmem_limit_bytes=vmem_limit),
    )(x2d, params['wqkv'], params['bqkv'], params['wo'], params['w1'],
      params['b1'], params['w2'], params['vecs'], fcw_pad, fcb_pad)
    return out_pad[:, :1]


def init_params(key, input_size, hidden_size, num_layers, nhead):
    """Deterministic synthetic parameters matching the nn.Module's shapes.

    PyTorch stores Linear weights as (out, in); we pre-transpose so the kernel
    computes y = x @ W + b directly.  Per-layer weights are stacked along a
    leading layer axis; biases / LN params are packed into one (L, 6, D) slab.
    """
    D, H = input_size, hidden_size
    wqkv, bqkv, wo, w1, b1, w2, vecs = [], [], [], [], [], [], []
    for _ in range(num_layers):
        key, k0, k1, k2, k3, k4 = jax.random.split(key, 6)
        in_proj_w = jax.random.normal(k0, (3 * D, D), jnp.float32) * 0.1
        in_proj_b = jax.random.normal(k1, (3 * D,), jnp.float32) * 0.1
        out_proj_w = jax.random.normal(k2, (D, D), jnp.float32) * 0.1
        out_proj_b = jnp.zeros((D,), jnp.float32)
        lin1_w = jax.random.normal(k3, (H, D), jnp.float32) * 0.1
        lin1_b = jnp.zeros((H,), jnp.float32)
        lin2_w = jax.random.normal(k4, (D, H), jnp.float32) * 0.1
        lin2_b = jnp.zeros((D,), jnp.float32)

        wqkv.append(in_proj_w.T)                      # (D, 3D): cols [q|k|v]
        bqkv.append(in_proj_b.reshape(1, 3 * D))
        wo.append(out_proj_w.T)                       # (D, D)
        w1.append(lin1_w.T)
        b1.append(lin1_b.reshape(1, H))
        w2.append(lin2_w.T)
        vecs.append(jnp.stack([out_proj_b,
                               jnp.ones((D,), jnp.float32),    # LN1 gamma
                               jnp.zeros((D,), jnp.float32),   # LN1 beta
                               lin2_b,
                               jnp.ones((D,), jnp.float32),    # LN2 gamma
                               jnp.zeros((D,), jnp.float32)])) # LN2 beta
    key, kf1, kf2 = jax.random.split(key, 3)
    fc_w = jax.random.normal(kf1, (1, D), jnp.float32) * 0.1   # (out=1, in=D)
    fc_b = jax.random.normal(kf2, (1,), jnp.float32) * 0.1
    return dict(wqkv=jnp.stack(wqkv), bqkv=jnp.stack(bqkv), wo=jnp.stack(wo),
                w1=jnp.stack(w1), b1=jnp.stack(b1), w2=jnp.stack(w2),
                vecs=jnp.stack(vecs), fc_w=fc_w.T, fc_b=fc_b.reshape(1, 1))


def reference_forward(x, params, nhead=4, eps=1e-5):
    """Pure-JAX reference mirroring nn.TransformerEncoder (eval mode)."""
    B, S, D = x.shape
    hd = D // nhead
    hp = jax.lax.Precision.HIGHEST
    h = x.reshape(B * S, D)
    for l in range(params['wqkv'].shape[0]):
        qkv = jnp.dot(h, params['wqkv'][l], precision=hp) + params['bqkv'][l]
        q = qkv[:, :D].reshape(B, S, nhead, hd).transpose(0, 2, 1, 3)
        k = qkv[:, D:2 * D].reshape(B, S, nhead, hd).transpose(0, 2, 1, 3)
        v = qkv[:, 2 * D:].reshape(B, S, nhead, hd).transpose(0, 2, 1, 3)
        s = jnp.einsum('bhqd,bhkd->bhqk', q, k, precision=hp) / float(hd) ** 0.5
        p = jax.nn.softmax(s, axis=-1)
        ctx = jnp.einsum('bhqk,bhkd->bhqd', p, v, precision=hp)
        ctx = ctx.transpose(0, 2, 1, 3).reshape(B * S, D)
        attn = jnp.dot(ctx, params['wo'][l], precision=hp) + params['vecs'][l][0]
        x1 = _layer_norm(h + attn, params['vecs'][l][1], params['vecs'][l][2], eps)
        h1 = jax.nn.relu(jnp.dot(x1, params['w1'][l], precision=hp)
                         + params['b1'][l])
        ff = jnp.dot(h1, params['w2'][l], precision=hp) + params['vecs'][l][3]
        h = _layer_norm(x1 + ff, params['vecs'][l][4], params['vecs'][l][5], eps)
    last = h.reshape(B, S, D)[:, -1, :]
    return jnp.dot(last, params['fc_w'], precision=hp) + params['fc_b']


if __name__ == "__main__":
    # TODO(synk): dropout omitted (forward implemented in eval mode).
    input_size, hidden_size, num_layers, nhead = 16, 32, 2, 4
    batch, seq = 2, 8

    key = jax.random.PRNGKey(0)
    kx, kp = jax.random.split(key)
    x = jax.random.normal(kx, (batch, seq, input_size), jnp.float32)
    params = init_params(kp, input_size, hidden_size, num_layers, nhead)

    fwd = jax.jit(functools.partial(transformer_model_forward, nhead=nhead))
    out = jax.block_until_ready(fwd(x, params))

    assert out.shape == (batch, 1) and out.dtype == jnp.float32
    ref = reference_forward(x, params, nhead=nhead)
    assert jnp.allclose(out, ref, rtol=2e-2, atol=2e-2), (out, ref)
    print("KERNEL_OK")
</pallas_src>

<mosaic_0001>
module attributes {stable_mosaic.version = 11 : i64} {
  func.func @fused_kernel(%arg0: memref<16x16xf32, #tpu.memory_space<vmem>>, %arg1: memref<2x16x48xf32, #tpu.memory_space<vmem>>, %arg2: memref<2x1x48xf32, #tpu.memory_space<vmem>>, %arg3: memref<2x16x16xf32, #tpu.memory_space<vmem>>, %arg4: memref<2x16x32xf32, #tpu.memory_space<vmem>>, %arg5: memref<2x1x32xf32, #tpu.memory_space<vmem>>, %arg6: memref<2x32x16xf32, #tpu.memory_space<vmem>>, %arg7: memref<2x6x16xf32, #tpu.memory_space<vmem>>, %arg8: memref<16x128xf32, #tpu.memory_space<vmem>>, %arg9: memref<1x128xf32, #tpu.memory_space<vmem>>, %arg10: memref<2x128xf32, #tpu.memory_space<vmem>>) attributes {dimension_semantics = [], scalar_prefetch = 0 : i64, scratch_operands = 0 : i64, tpu.core_type = #tpu.core_type<tc>} {
    %c0 = arith.constant 0 : index
    %c0_0 = arith.constant 0 : index
    %0 = vector.load %arg0[%c0, %c0_0] : memref<16x16xf32, #tpu.memory_space<vmem>>, vector<16x16xf32>
    %c0_1 = arith.constant 0 : index
    %c0_2 = arith.constant 0 : index
    %c0_3 = arith.constant 0 : index
    %1 = vector.load %arg7[%c0_1, %c0_2, %c0_3] : memref<2x6x16xf32, #tpu.memory_space<vmem>>, vector<1x6x16xf32>
    %2 = vector.shape_cast %1 : vector<1x6x16xf32> to vector<6x16xf32>
    %c0_4 = arith.constant 0 : index
    %c0_5 = arith.constant 0 : index
    %c0_6 = arith.constant 0 : index
    %3 = vector.load %arg1[%c0_4, %c0_5, %c0_6] : memref<2x16x48xf32, #tpu.memory_space<vmem>>, vector<1x16x48xf32>
    %4 = vector.shape_cast %3 : vector<1x16x48xf32> to vector<16x48xf32>
    %cst = arith.constant dense<0.000000e+00> : vector<16x48xf32>
    %5 = tpu.matmul %0, %4, %cst {dimension_numbers = #tpu.dot_dimension_numbers<[1], [0], [0], [1], [0, 0, 1, 1], [], []>} : vector<16x16xf32>, vector<16x48xf32>, vector<16x48xf32> -> vector<16x48xf32>
    %c0_7 = arith.constant 0 : index
    %c0_8 = arith.constant 0 : index
    %c0_9 = arith.constant 0 : index
    %6 = vector.load %arg2[%c0_7, %c0_8, %c0_9] : memref<2x1x48xf32, #tpu.memory_space<vmem>>, vector<1x1x48xf32>
    %7 = vector.shape_cast %6 : vector<1x1x48xf32> to vector<1x48xf32>
    %8 = vector.broadcast %7 : vector<1x48xf32> to vector<16x48xf32>
    %9 = arith.addf %5, %8 : vector<16x48xf32>
    %10 = vector.extract_strided_slice %9 {offsets = [0, 0], sizes = [16, 4], strides = [1, 1]} : vector<16x48xf32> to vector<16x4xf32>
    %11 = vector.shape_cast %10 : vector<16x4xf32> to vector<2x8x4xf32>
    %12 = vector.extract_strided_slice %9 {offsets = [0, 4], sizes = [16, 4], strides = [1, 1]} : vector<16x48xf32> to vector<16x4xf32>
    %13 = vector.shape_cast %12 : vector<16x4xf32> to vector<2x8x4xf32>
    %14 = vector.extract_strided_slice %9 {offsets = [0, 8], sizes = [16, 4], strides = [1, 1]} : vector<16x48xf32> to vector<16x4xf32>
    %15 = vector.shape_cast %14 : vector<16x4xf32> to vector<2x8x4xf32>
    %16 = vector.extract_strided_slice %9 {offsets = [0, 12], sizes = [16, 4], strides = [1, 1]} : vector<16x48xf32> to vector<16x4xf32>
    %17 = vector.shape_cast %16 : vector<16x4xf32> to vector<2x8x4xf32>
    %18 = tpu.concatenate %11, %13, %15, %17 in 0 : vector<2x8x4xf32>, vector<2x8x4xf32>, vector<2x8x4xf32>, vector<2x8x4xf32> -> vector<8x8x4xf32>
    %19 = vector.extract_strided_slice %9 {offsets = [0, 16], sizes = [16, 4], strides = [1, 1]} : vector<16x48xf32> to vector<16x4xf32>
    %20 = vector.shape_cast %19 : vector<16x4xf32> to vector<2x8x4xf32>
    %21 = vector.extract_strided_slice %9 {offsets = [0, 20], sizes = [16, 4], strides = [1, 1]} : vector<16x48xf32> to vector<16x4xf32>
    %22 = vector.shape_cast %21 : vector<16x4xf32> to vector<2x8x4xf32>
    %23 = vector.extract_strided_slice %9 {offsets = [0, 24], sizes = [16, 4], strides = [1, 1]} : vector<16x48xf32> to vector<16x4xf32>
    %24 = vector.shape_cast %23 : vector<16x4xf32> to vector<2x8x4xf32>
    %25 = vector.extract_strided_slice %9 {offsets = [0, 28], sizes = [16, 4], strides = [1, 1]} : vector<16x48xf32> to vector<16x4xf32>
    %26 = vector.shape_cast %25 : vector<16x4xf32> to vector<2x8x4xf32>
    %27 = tpu.concatenate %20, %22, %24, %26 in 0 : vector<2x8x4xf32>, vector<2x8x4xf32>, vector<2x8x4xf32>, vector<2x8x4xf32> -> vector<8x8x4xf32>
    %28 = vector.extract_strided_slice %9 {offsets = [0, 32], sizes = [16, 4], strides = [1, 1]} : vector<16x48xf32> to vector<16x4xf32>
    %29 = vector.shape_cast %28 : vector<16x4xf32> to vector<2x8x4xf32>
    %30 = vector.extract_strided_slice %9 {offsets = [0, 36], sizes = [16, 4], strides = [1, 1]} : vector<16x48xf32> to vector<16x4xf32>
    %31 = vector.shape_cast %30 : vector<16x4xf32> to vector<2x8x4xf32>
    %32 = vector.extract_strided_slice %9 {offsets = [0, 40], sizes = [16, 4], strides = [1, 1]} : vector<16x48xf32> to vector<16x4xf32>
    %33 = vector.shape_cast %32 : vector<16x4xf32> to vector<2x8x4xf32>
    %34 = vector.extract_strided_slice %9 {offsets = [0, 44], sizes = [16, 4], strides = [1, 1]} : vector<16x48xf32> to vector<16x4xf32>
    %35 = vector.shape_cast %34 : vector<16x4xf32> to vector<2x8x4xf32>
    %36 = tpu.concatenate %29, %31, %33, %35 in 0 : vector<2x8x4xf32>, vector<2x8x4xf32>, vector<2x8x4xf32>, vector<2x8x4xf32> -> vector<8x8x4xf32>
    "tpu.trace_start"() <{level = 10 : i32, message = "bqd,bkd->bqk"}> : () -> ()
    %cst_10 = arith.constant dense<0.000000e+00> : vector<8x8x8xf32>
    %37 = tpu.matmul %18, %27, %cst_10 {dimension_numbers = #tpu.dot_dimension_numbers<[2], [2], [1], [1], [0, 0, 0, 1, 1, 1], [0], [0]>} : vector<8x8x4xf32>, vector<8x8x4xf32>, vector<8x8x8xf32> -> vector<8x8x8xf32>
    "tpu.trace_stop"() : () -> ()
    %cst_11 = arith.constant 5.000000e-01 : f32
    %38 = vector.broadcast %cst_11 : f32 to vector<8x8x8xf32>
    %39 = arith.mulf %37, %38 : vector<8x8x8xf32>
    %cst_12 = arith.constant dense<0xFF800000> : vector<8x8xf32>
    %40 = vector.multi_reduction <maximumf>, %39, %cst_12 [2] : vector<8x8x8xf32> to vector<8x8xf32>
    %41 = vector.shape_cast %40 : vector<8x8xf32> to vector<8x8x1xf32>
    %42 = vector.broadcast %41 : vector<8x8x1xf32> to vector<8x8x8xf32>
    %43 = arith.subf %39, %42 : vector<8x8x8xf32>
    %44 = math.exp %43 : vector<8x8x8xf32>
    %cst_13 = arith.constant dense<0.000000e+00> : vector<8x8xf32>
    %45 = vector.multi_reduction <add>, %44, %cst_13 [2] : vector<8x8x8xf32> to vector<8x8xf32>
    %46 = vector.shape_cast %45 : vector<8x8xf32> to vector<8x8x1xf32>
    %47 = vector.broadcast %46 : vector<8x8x1xf32> to vector<8x8x8xf32>
    %48 = arith.divf %44, %47 : vector<8x8x8xf32>
    "tpu.trace_start"() <{level = 10 : i32, message = "bqk,bkd->bqd"}> : () -> ()
    %cst_14 = arith.constant dense<0.000000e+00> : vector<8x8x4xf32>
    %49 = tpu.matmul %48, %36, %cst_14 {dimension_numbers = #tpu.dot_dimension_numbers<[2], [1], [1], [2], [0, 0, 0, 1, 1, 2], [0], [0]>} : vector<8x8x8xf32>, vector<8x8x4xf32>, vector<8x8x4xf32> -> vector<8x8x4xf32>
    "tpu.trace_stop"() : () -> ()
    %50 = vector.extract_strided_slice %49 {offsets = [0, 0, 0], sizes = [2, 8, 4], strides = [1, 1, 1]} : vector<8x8x4xf32> to vector<2x8x4xf32>
    %51 = vector.shape_cast %50 : vector<2x8x4xf32> to vector<16x4xf32>
    %52 = vector.extract_strided_slice %49 {offsets = [2, 0, 0], sizes = [2, 8, 4], strides = [1, 1, 1]} : vector<8x8x4xf32> to vector<2x8x4xf32>
    %53 = vector.shape_cast %52 : vector<2x8x4xf32> to vector<16x4xf32>
    %54 = vector.extract_strided_slice %49 {offsets = [4, 0, 0], sizes = [2, 8, 4], strides = [1, 1, 1]} : vector<8x8x4xf32> to vector<2x8x4xf32>
    %55 = vector.shape_cast %54 : vector<2x8x4xf32> to vector<16x4xf32>
    %56 = vector.extract_strided_slice %49 {offsets = [6, 0, 0], sizes = [2, 8, 4], strides = [1, 1, 1]} : vector<8x8x4xf32> to vector<2x8x4xf32>
    %57 = vector.shape_cast %56 : vector<2x8x4xf32> to vector<16x4xf32>
    %58 = tpu.concatenate %51, %53, %55, %57 in 1 : vector<16x4xf32>, vector<16x4xf32>, vector<16x4xf32>, vector<16x4xf32> -> vector<16x16xf32>
    %c0_15 = arith.constant 0 : index
    %c0_16 = arith.constant 0 : index
    %c0_17 = arith.constant 0 : index
    %59 = vector.load %arg3[%c0_15, %c0_16, %c0_17] : memref<2x16x16xf32, #tpu.memory_space<vmem>>, vector<1x16x16xf32>
    %60 = vector.shape_cast %59 : vector<1x16x16xf32> to vector<16x16xf32>
    %cst_18 = arith.constant dense<0.000000e+00> : vector<16x16xf32>
    %61 = tpu.matmul %58, %60, %cst_18 {dimension_numbers = #tpu.dot_dimension_numbers<[1], [0], [0], [1], [0, 0, 1, 1], [], []>} : vector<16x16xf32>, vector<16x16xf32>, vector<16x16xf32> -> vector<16x16xf32>
    %62 = vector.extract_strided_slice %2 {offsets = [0, 0], sizes = [1, 16], strides = [1, 1]} : vector<6x16xf32> to vector<1x16xf32>
    %63 = vector.broadcast %62 : vector<1x16xf32> to vector<16x16xf32>
    %64 = arith.addf %61, %63 : vector<16x16xf32>
    %65 = arith.addf %0, %64 : vector<16x16xf32>
    %66 = vector.extract_strided_slice %2 {offsets = [1, 0], sizes = [1, 16], strides = [1, 1]} : vector<6x16xf32> to vector<1x16xf32>
    %67 = vector.extract_strided_slice %2 {offsets = [2, 0], sizes = [1, 16], strides = [1, 1]} : vector<6x16xf32> to vector<1x16xf32>
    %cst_19 = arith.constant dense<0.000000e+00> : vector<16xf32>
    %68 = vector.multi_reduction <add>, %65, %cst_19 [1] : vector<16x16xf32> to vector<16xf32>
    %69 = vector.shape_cast %68 : vector<16xf32> to vector<16x1xf32>
    %cst_20 = arith.constant 1.600000e+01 : f32
    %70 = vector.broadcast %cst_20 : f32 to vector<16x1xf32>
    %71 = arith.divf %69, %70 : vector<16x1xf32>
    %72 = vector.broadcast %71 : vector<16x1xf32> to vector<16x16xf32>
    %73 = arith.subf %65, %72 : vector<16x16xf32>
    %74 = arith.mulf %73, %73 : vector<16x16xf32>
    %cst_21 = arith.constant dense<0.000000e+00> : vector<16xf32>
    %75 = vector.multi_reduction <add>, %74, %cst_21 [1] : vector<16x16xf32> to vector<16xf32>
    %76 = vector.shape_cast %75 : vector<16xf32> to vector<16x1xf32>
    %cst_22 = arith.constant 1.600000e+01 : f32
    %77 = vector.broadcast %cst_22 : f32 to vector<16x1xf32>
    %78 = arith.divf %76, %77 : vector<16x1xf32>
    %79 = vector.broadcast %71 : vector<16x1xf32> to vector<16x16xf32>
    %80 = arith.subf %65, %79 : vector<16x16xf32>
    %cst_23 = arith.constant 9.99999974E-6 : f32
    %81 = vector.broadcast %cst_23 : f32 to vector<16x1xf32>
    %82 = arith.addf %78, %81 : vector<16x1xf32>
    %83 = math.rsqrt %82 : vector<16x1xf32>
    %84 = vector.broadcast %83 : vector<16x1xf32> to vector<16x16xf32>
    %85 = arith.mulf %80, %84 : vector<16x16xf32>
    %86 = vector.broadcast %66 : vector<1x16xf32> to vector<16x16xf32>
    %87 = arith.mulf %85, %86 : vector<16x16xf32>
    %88 = vector.broadcast %67 : vector<1x16xf32> to vector<16x16xf32>
    %89 = arith.addf %87, %88 : vector<16x16xf32>
    %c0_24 = arith.constant 0 : index
    %c0_25 = arith.constant 0 : index
    %c0_26 = arith.constant 0 : index
    %90 = vector.load %arg4[%c0_24, %c0_25, %c0_26] : memref<2x16x32xf32, #tpu.memory_space<vmem>>, vector<1x16x32xf32>
    %91 = vector.shape_cast %90 : vector<1x16x32xf32> to vector<16x32xf32>
    %cst_27 = arith.constant dense<0.000000e+00> : vector<16x32xf32>
    %92 = tpu.matmul %89, %91, %cst_27 {dimension_numbers = #tpu.dot_dimension_numbers<[1], [0], [0], [1], [0, 0, 1, 1], [], []>} : vector<16x16xf32>, vector<16x32xf32>, vector<16x32xf32> -> vector<16x32xf32>
    %c0_28 = arith.constant 0 : index
    %c0_29 = arith.constant 0 : index
    %c0_30 = arith.constant 0 : index
    %93 = vector.load %arg5[%c0_28, %c0_29, %c0_30] : memref<2x1x32xf32, #tpu.memory_space<vmem>>, vector<1x1x32xf32>
    %94 = vector.shape_cast %93 : vector<1x1x32xf32> to vector<1x32xf32>
    %95 = vector.broadcast %94 : vector<1x32xf32> to vector<16x32xf32>
    %96 = arith.addf %92, %95 : vector<16x32xf32>
    %cst_31 = arith.constant 0.000000e+00 : f32
    %97 = vector.broadcast %cst_31 : f32 to vector<16x32xf32>
    %98 = arith.maximumf %96, %97 : vector<16x32xf32>
    %c0_32 = arith.constant 0 : index
    %c0_33 = arith.constant 0 : index
    %c0_34 = arith.constant 0 : index
    %99 = vector.load %arg6[%c0_32, %c0_33, %c0_34] : memref<2x32x16xf32, #tpu.memory_space<vmem>>, vector<1x32x16xf32>
    %100 = vector.shape_cast %99 : vector<1x32x16xf32> to vector<32x16xf32>
    %cst_35 = arith.constant dense<0.000000e+00> : vector<16x16xf32>
    %101 = tpu.matmul %98, %100, %cst_35 {dimension_numbers = #tpu.dot_dimension_numbers<[1], [0], [0], [1], [0, 0, 1, 1], [], []>} : vector<16x32xf32>, vector<32x16xf32>, vector<16x16xf32> -> vector<16x16xf32>
    %102 = vector.extract_strided_slice %2 {offsets = [3, 0], sizes = [1, 16], strides = [1, 1]} : vector<6x16xf32> to vector<1x16xf32>
    %103 = vector.broadcast %102 : vector<1x16xf32> to vector<16x16xf32>
    %104 = arith.addf %101, %103 : vector<16x16xf32>
    %105 = arith.addf %89, %104 : vector<16x16xf32>
    %106 = vector.extract_strided_slice %2 {offsets = [4, 0], sizes = [1, 16], strides = [1, 1]} : vector<6x16xf32> to vector<1x16xf32>
    %107 = vector.extract_strided_slice %2 {offsets = [5, 0], sizes = [1, 16], strides = [1, 1]} : vector<6x16xf32> to vector<1x16xf32>
    %cst_36 = arith.constant dense<0.000000e+00> : vector<16xf32>
    %108 = vector.multi_reduction <add>, %105, %cst_36 [1] : vector<16x16xf32> to vector<16xf32>
    %109 = vector.shape_cast %108 : vector<16xf32> to vector<16x1xf32>
    %cst_37 = arith.constant 1.600000e+01 : f32
    %110 = vector.broadcast %cst_37 : f32 to vector<16x1xf32>
    %111 = arith.divf %109, %110 : vector<16x1xf32>
    %112 = vector.broadcast %111 : vector<16x1xf32> to vector<16x16xf32>
    %113 = arith.subf %105, %112 : vector<16x16xf32>
    %114 = arith.mulf %113, %113 : vector<16x16xf32>
    %cst_38 = arith.constant dense<0.000000e+00> : vector<16xf32>
    %115 = vector.multi_reduction <add>, %114, %cst_38 [1] : vector<16x16xf32> to vector<16xf32>
    %116 = vector.shape_cast %115 : vector<16xf32> to vector<16x1xf32>
    %cst_39 = arith.constant 1.600000e+01 : f32
    %117 = vector.broadcast %cst_39 : f32 to vector<16x1xf32>
    %118 = arith.divf %116, %117 : vector<16x1xf32>
    %119 = vector.broadcast %111 : vector<16x1xf32> to vector<16x16xf32>
    %120 = arith.subf %105, %119 : vector<16x16xf32>
    %cst_40 = arith.constant 9.99999974E-6 : f32
    %121 = vector.broadcast %cst_40 : f32 to vector<16x1xf32>
    %122 = arith.addf %118, %121 : vector<16x1xf32>
    %123 = math.rsqrt %122 : vector<16x1xf32>
    %124 = vector.broadcast %123 : vector<16x1xf32> to vector<16x16xf32>
    %125 = arith.mulf %120, %124 : vector<16x16xf32>
    %126 = vector.broadcast %106 : vector<1x16xf32> to vector<16x16xf32>
    %127 = arith.mulf %125, %126 : vector<16x16xf32>
    %128 = vector.broadcast %107 : vector<1x16xf32> to vector<16x16xf32>
    %129 = arith.addf %127, %128 : vector<16x16xf32>
    %c1 = arith.constant 1 : index
    %c0_41 = arith.constant 0 : index
    %c0_42 = arith.constant 0 : index
    %130 = vector.load %arg7[%c1, %c0_41, %c0_42] : memref<2x6x16xf32, #tpu.memory_space<vmem>>, vector<1x6x16xf32>
    %131 = vector.shape_cast %130 : vector<1x6x16xf32> to vector<6x16xf32>
    %c1_43 = arith.constant 1 : index
    %c0_44 = arith.constant 0 : index
    %c0_45 = arith.constant 0 : index
    %132 = vector.load %arg1[%c1_43, %c0_44, %c0_45] : memref<2x16x48xf32, #tpu.memory_space<vmem>>, vector<1x16x48xf32>
    %133 = vector.shape_cast %132 : vector<1x16x48xf32> to vector<16x48xf32>
    %cst_46 = arith.constant dense<0.000000e+00> : vector<16x48xf32>
    %134 = tpu.matmul %129, %133, %cst_46 {dimension_numbers = #tpu.dot_dimension_numbers<[1], [0], [0], [1], [0, 0, 1, 1], [], []>} : vector<16x16xf32>, vector<16x48xf32>, vector<16x48xf32> -> vector<16x48xf32>
    %c1_47 = arith.constant 1 : index
    %c0_48 = arith.constant 0 : index
    %c0_49 = arith.constant 0 : index
    %135 = vector.load %arg2[%c1_47, %c0_48, %c0_49] : memref<2x1x48xf32, #tpu.memory_space<vmem>>, vector<1x1x48xf32>
    %136 = vector.shape_cast %135 : vector<1x1x48xf32> to vector<1x48xf32>
    %137 = vector.broadcast %136 : vector<1x48xf32> to vector<16x48xf32>
    %138 = arith.addf %134, %137 : vector<16x48xf32>
    %139 = vector.extract_strided_slice %138 {offsets = [0, 0], sizes = [16, 4], strides = [1, 1]} : vector<16x48xf32> to vector<16x4xf32>
    %140 = vector.shape_cast %139 : vector<16x4xf32> to vector<2x8x4xf32>
    %141 = vector.extract_strided_slice %138 {offsets = [0, 4], sizes = [16, 4], strides = [1, 1]} : vector<16x48xf32> to vector<16x4xf32>
    %142 = vector.shape_cast %141 : vector<16x4xf32> to vector<2x8x4xf32>
    %143 = vector.extract_strided_slice %138 {offsets = [0, 8], sizes = [16, 4], strides = [1, 1]} : vector<16x48xf32> to vector<16x4xf32>
    %144 = vector.shape_cast %143 : vector<16x4xf32> to vector<2x8x4xf32>
    %145 = vector.extract_strided_slice %138 {offsets = [0, 12], sizes = [16, 4], strides = [1, 1]} : vector<16x48xf32> to vector<16x4xf32>
    %146 = vector.shape_cast %145 : vector<16x4xf32> to vector<2x8x4xf32>
    %147 = tpu.concatenate %140, %142, %144, %146 in 0 : vector<2x8x4xf32>, vector<2x8x4xf32>, vector<2x8x4xf32>, vector<2x8x4xf32> -> vector<8x8x4xf32>
    %148 = vector.extract_strided_slice %138 {offsets = [0, 16], sizes = [16, 4], strides = [1, 1]} : vector<16x48xf32> to vector<16x4xf32>
    %149 = vector.shape_cast %148 : vector<16x4xf32> to vector<2x8x4xf32>
    %150 = vector.extract_strided_slice %138 {offsets = [0, 20], sizes = [16, 4], strides = [1, 1]} : vector<16x48xf32> to vector<16x4xf32>
    %151 = vector.shape_cast %150 : vector<16x4xf32> to vector<2x8x4xf32>
    %152 = vector.extract_strided_slice %138 {offsets = [0, 24], sizes = [16, 4], strides = [1, 1]} : vector<16x48xf32> to vector<16x4xf32>
    %153 = vector.shape_cast %152 : vector<16x4xf32> to vector<2x8x4xf32>
    %154 = vector.extract_strided_slice %138 {offsets = [0, 28], sizes = [16, 4], strides = [1, 1]} : vector<16x48xf32> to vector<16x4xf32>
    %155 = vector.shape_cast %154 : vector<16x4xf32> to vector<2x8x4xf32>
    %156 = tpu.concatenate %149, %151, %153, %155 in 0 : vector<2x8x4xf32>, vector<2x8x4xf32>, vector<2x8x4xf32>, vector<2x8x4xf32> -> vector<8x8x4xf32>
    %157 = vector.extract_strided_slice %138 {offsets = [0, 32], sizes = [16, 4], strides = [1, 1]} : vector<16x48xf32> to vector<16x4xf32>
    %158 = vector.shape_cast %157 : vector<16x4xf32> to vector<2x8x4xf32>
    %159 = vector.extract_strided_slice %138 {offsets = [0, 36], sizes = [16, 4], strides = [1, 1]} : vector<16x48xf32> to vector<16x4xf32>
    %160 = vector.shape_cast %159 : vector<16x4xf32> to vector<2x8x4xf32>
    %161 = vector.extract_strided_slice %138 {offsets = [0, 40], sizes = [16, 4], strides = [1, 1]} : vector<16x48xf32> to vector<16x4xf32>
    %162 = vector.shape_cast %161 : vector<16x4xf32> to vector<2x8x4xf32>
    %163 = vector.extract_strided_slice %138 {offsets = [0, 44], sizes = [16, 4], strides = [1, 1]} : vector<16x48xf32> to vector<16x4xf32>
    %164 = vector.shape_cast %163 : vector<16x4xf32> to vector<2x8x4xf32>
    %165 = tpu.concatenate %158, %160, %162, %164 in 0 : vector<2x8x4xf32>, vector<2x8x4xf32>, vector<2x8x4xf32>, vector<2x8x4xf32> -> vector<8x8x4xf32>
    "tpu.trace_start"() <{level = 10 : i32, message = "bqd,bkd->bqk"}> : () -> ()
    %cst_50 = arith.constant dense<0.000000e+00> : vector<8x8x8xf32>
    %166 = tpu.matmul %147, %156, %cst_50 {dimension_numbers = #tpu.dot_dimension_numbers<[2], [2], [1], [1], [0, 0, 0, 1, 1, 1], [0], [0]>} : vector<8x8x4xf32>, vector<8x8x4xf32>, vector<8x8x8xf32> -> vector<8x8x8xf32>
    "tpu.trace_stop"() : () -> ()
    %cst_51 = arith.constant 5.000000e-01 : f32
    %167 = vector.broadcast %cst_51 : f32 to vector<8x8x8xf32>
    %168 = arith.mulf %166, %167 : vector<8x8x8xf32>
    %cst_52 = arith.constant dense<0xFF800000> : vector<8x8xf32>
    %169 = vector.multi_reduction <maximumf>, %168, %cst_52 [2] : vector<8x8x8xf32> to vector<8x8xf32>
    %170 = vector.shape_cast %169 : vector<8x8xf32> to vector<8x8x1xf32>
    %171 = vector.broadcast %170 : vector<8x8x1xf32> to vector<8x8x8xf32>
    %172 = arith.subf %168, %171 : vector<8x8x8xf32>
    %173 = math.exp %172 : vector<8x8x8xf32>
    %cst_53 = arith.constant dense<0.000000e+00> : vector<8x8xf32>
    %174 = vector.multi_reduction <add>, %173, %cst_53 [2] : vector<8x8x8xf32> to vector<8x8xf32>
    %175 = vector.shape_cast %174 : vector<8x8xf32> to vector<8x8x1xf32>
    %176 = vector.broadcast %175 : vector<8x8x1xf32> to vector<8x8x8xf32>
    %177 = arith.divf %173, %176 : vector<8x8x8xf32>
    "tpu.trace_start"() <{level = 10 : i32, message = "bqk,bkd->bqd"}> : () -> ()
    %cst_54 = arith.constant dense<0.000000e+00> : vector<8x8x4xf32>
    %178 = tpu.matmul %177, %165, %cst_54 {dimension_numbers = #tpu.dot_dimension_numbers<[2], [1], [1], [2], [0, 0, 0, 1, 1, 2], [0], [0]>} : vector<8x8x8xf32>, vector<8x8x4xf32>, vector<8x8x4xf32> -> vector<8x8x4xf32>
    "tpu.trace_stop"() : () -> ()
    %179 = vector.extract_strided_slice %178 {offsets = [0, 0, 0], sizes = [2, 8, 4], strides = [1, 1, 1]} : vector<8x8x4xf32> to vector<2x8x4xf32>
    %180 = vector.shape_cast %179 : vector<2x8x4xf32> to vector<16x4xf32>
    %181 = vector.extract_strided_slice %178 {offsets = [2, 0, 0], sizes = [2, 8, 4], strides = [1, 1, 1]} : vector<8x8x4xf32> to vector<2x8x4xf32>
    %182 = vector.shape_cast %181 : vector<2x8x4xf32> to vector<16x4xf32>
    %183 = vector.extract_strided_slice %178 {offsets = [4, 0, 0], sizes = [2, 8, 4], strides = [1, 1, 1]} : vector<8x8x4xf32> to vector<2x8x4xf32>
    %184 = vector.shape_cast %183 : vector<2x8x4xf32> to vector<16x4xf32>
    %185 = vector.extract_strided_slice %178 {offsets = [6, 0, 0], sizes = [2, 8, 4], strides = [1, 1, 1]} : vector<8x8x4xf32> to vector<2x8x4xf32>
    %186 = vector.shape_cast %185 : vector<2x8x4xf32> to vector<16x4xf32>
    %187 = tpu.concatenate %180, %182, %184, %186 in 1 : vector<16x4xf32>, vector<16x4xf32>, vector<16x4xf32>, vector<16x4xf32> -> vector<16x16xf32>
    %c1_55 = arith.constant 1 : index
    %c0_56 = arith.constant 0 : index
    %c0_57 = arith.constant 0 : index
    %188 = vector.load %arg3[%c1_55, %c0_56, %c0_57] : memref<2x16x16xf32, #tpu.memory_space<vmem>>, vector<1x16x16xf32>
    %189 = vector.shape_cast %188 : vector<1x16x16xf32> to vector<16x16xf32>
    %cst_58 = arith.constant dense<0.000000e+00> : vector<16x16xf32>
    %190 = tpu.matmul %187, %189, %cst_58 {dimension_numbers = #tpu.dot_dimension_numbers<[1], [0], [0], [1], [0, 0, 1, 1], [], []>} : vector<16x16xf32>, vector<16x16xf32>, vector<16x16xf32> -> vector<16x16xf32>
    %191 = vector.extract_strided_slice %131 {offsets = [0, 0], sizes = [1, 16], strides = [1, 1]} : vector<6x16xf32> to vector<1x16xf32>
    %192 = vector.broadcast %191 : vector<1x16xf32> to vector<16x16xf32>
    %193 = arith.addf %190, %192 : vector<16x16xf32>
    %194 = arith.addf %129, %193 : vector<16x16xf32>
    %195 = vector.extract_strided_slice %131 {offsets = [1, 0], sizes = [1, 16], strides = [1, 1]} : vector<6x16xf32> to vector<1x16xf32>
    %196 = vector.extract_strided_slice %131 {offsets = [2, 0], sizes = [1, 16], strides = [1, 1]} : vector<6x16xf32> to vector<1x16xf32>
    %cst_59 = arith.constant dense<0.000000e+00> : vector<16xf32>
    %197 = vector.multi_reduction <add>, %194, %cst_59 [1] : vector<16x16xf32> to vector<16xf32>
    %198 = vector.shape_cast %197 : vector<16xf32> to vector<16x1xf32>
    %cst_60 = arith.constant 1.600000e+01 : f32
    %199 = vector.broadcast %cst_60 : f32 to vector<16x1xf32>
    %200 = arith.divf %198, %199 : vector<16x1xf32>
    %201 = vector.broadcast %200 : vector<16x1xf32> to vector<16x16xf32>
    %202 = arith.subf %194, %201 : vector<16x16xf32>
    %203 = arith.mulf %202, %202 : vector<16x16xf32>
    %cst_61 = arith.constant dense<0.000000e+00> : vector<16xf32>
    %204 = vector.multi_reduction <add>, %203, %cst_61 [1] : vector<16x16xf32> to vector<16xf32>
    %205 = vector.shape_cast %204 : vector<16xf32> to vector<16x1xf32>
    %cst_62 = arith.constant 1.600000e+01 : f32
    %206 = vector.broadcast %cst_62 : f32 to vector<16x1xf32>
    %207 = arith.divf %205, %206 : vector<16x1xf32>
    %208 = vector.broadcast %200 : vector<16x1xf32> to vector<16x16xf32>
    %209 = arith.subf %194, %208 : vector<16x16xf32>
    %cst_63 = arith.constant 9.99999974E-6 : f32
    %210 = vector.broadcast %cst_63 : f32 to vector<16x1xf32>
    %211 = arith.addf %207, %210 : vector<16x1xf32>
    %212 = math.rsqrt %211 : vector<16x1xf32>
    %213 = vector.broadcast %212 : vector<16x1xf32> to vector<16x16xf32>
    %214 = arith.mulf %209, %213 : vector<16x16xf32>
    %215 = vector.broadcast %195 : vector<1x16xf32> to vector<16x16xf32>
    %216 = arith.mulf %214, %215 : vector<16x16xf32>
    %217 = vector.broadcast %196 : vector<1x16xf32> to vector<16x16xf32>
    %218 = arith.addf %216, %217 : vector<16x16xf32>
    %c1_64 = arith.constant 1 : index
    %c0_65 = arith.constant 0 : index
    %c0_66 = arith.constant 0 : index
    %219 = vector.load %arg4[%c1_64, %c0_65, %c0_66] : memref<2x16x32xf32, #tpu.memory_space<vmem>>, vector<1x16x32xf32>
    %220 = vector.shape_cast %219 : vector<1x16x32xf32> to vector<16x32xf32>
    %cst_67 = arith.constant dense<0.000000e+00> : vector<16x32xf32>
    %221 = tpu.matmul %218, %220, %cst_67 {dimension_numbers = #tpu.dot_dimension_numbers<[1], [0], [0], [1], [0, 0, 1, 1], [], []>} : vector<16x16xf32>, vector<16x32xf32>, vector<16x32xf32> -> vector<16x32xf32>
    %c1_68 = arith.constant 1 : index
    %c0_69 = arith.constant 0 : index
    %c0_70 = arith.constant 0 : index
    %222 = vector.load %arg5[%c1_68, %c0_69, %c0_70] : memref<2x1x32xf32, #tpu.memory_space<vmem>>, vector<1x1x32xf32>
    %223 = vector.shape_cast %222 : vector<1x1x32xf32> to vector<1x32xf32>
    %224 = vector.broadcast %223 : vector<1x32xf32> to vector<16x32xf32>
    %225 = arith.addf %221, %224 : vector<16x32xf32>
    %cst_71 = arith.constant 0.000000e+00 : f32
    %226 = vector.broadcast %cst_71 : f32 to vector<16x32xf32>
    %227 = arith.maximumf %225, %226 : vector<16x32xf32>
    %c1_72 = arith.constant 1 : index
    %c0_73 = arith.constant 0 : index
    %c0_74 = arith.constant 0 : index
    %228 = vector.load %arg6[%c1_72, %c0_73, %c0_74] : memref<2x32x16xf32, #tpu.memory_space<vmem>>, vector<1x32x16xf32>
    %229 = vector.shape_cast %228 : vector<1x32x16xf32> to vector<32x16xf32>
    %cst_75 = arith.constant dense<0.000000e+00> : vector<16x16xf32>
    %230 = tpu.matmul %227, %229, %cst_75 {dimension_numbers = #tpu.dot_dimension_numbers<[1], [0], [0], [1], [0, 0, 1, 1], [], []>} : vector<16x32xf32>, vector<32x16xf32>, vector<16x16xf32> -> vector<16x16xf32>
    %231 = vector.extract_strided_slice %131 {offsets = [3, 0], sizes = [1, 16], strides = [1, 1]} : vector<6x16xf32> to vector<1x16xf32>
    %232 = vector.broadcast %231 : vector<1x16xf32> to vector<16x16xf32>
    %233 = arith.addf %230, %232 : vector<16x16xf32>
    %234 = arith.addf %218, %233 : vector<16x16xf32>
    %235 = vector.extract_strided_slice %131 {offsets = [4, 0], sizes = [1, 16], strides = [1, 1]} : vector<6x16xf32> to vector<1x16xf32>
    %236 = vector.extract_strided_slice %131 {offsets = [5, 0], sizes = [1, 16], strides = [1, 1]} : vector<6x16xf32> to vector<1x16xf32>
    %cst_76 = arith.constant dense<0.000000e+00> : vector<16xf32>
    %237 = vector.multi_reduction <add>, %234, %cst_76 [1] : vector<16x16xf32> to vector<16xf32>
    %238 = vector.shape_cast %237 : vector<16xf32> to vector<16x1xf32>
    %cst_77 = arith.constant 1.600000e+01 : f32
    %239 = vector.broadcast %cst_77 : f32 to vector<16x1xf32>
    %240 = arith.divf %238, %239 : vector<16x1xf32>
    %241 = vector.broadcast %240 : vector<16x1xf32> to vector<16x16xf32>
    %242 = arith.subf %234, %241 : vector<16x16xf32>
    %243 = arith.mulf %242, %242 : vector<16x16xf32>
    %cst_78 = arith.constant dense<0.000000e+00> : vector<16xf32>
    %244 = vector.multi_reduction <add>, %243, %cst_78 [1] : vector<16x16xf32> to vector<16xf32>
    %245 = vector.shape_cast %244 : vector<16xf32> to vector<16x1xf32>
    %cst_79 = arith.constant 1.600000e+01 : f32
    %246 = vector.broadcast %cst_79 : f32 to vector<16x1xf32>
    %247 = arith.divf %245, %246 : vector<16x1xf32>
    %248 = vector.broadcast %240 : vector<16x1xf32> to vector<16x16xf32>
    %249 = arith.subf %234, %248 : vector<16x16xf32>
    %cst_80 = arith.constant 9.99999974E-6 : f32
    %250 = vector.broadcast %cst_80 : f32 to vector<16x1xf32>
    %251 = arith.addf %247, %250 : vector<16x1xf32>
    %252 = math.rsqrt %251 : vector<16x1xf32>
    %253 = vector.broadcast %252 : vector<16x1xf32> to vector<16x16xf32>
    %254 = arith.mulf %249, %253 : vector<16x16xf32>
    %255 = vector.broadcast %235 : vector<1x16xf32> to vector<16x16xf32>
    %256 = arith.mulf %254, %255 : vector<16x16xf32>
    %257 = vector.broadcast %236 : vector<1x16xf32> to vector<16x16xf32>
    %258 = arith.addf %256, %257 : vector<16x16xf32>
    %259 = vector.shape_cast %258 : vector<16x16xf32> to vector<2x8x16xf32>
    %260 = vector.extract_strided_slice %259 {offsets = [0, 7, 0], sizes = [2, 1, 16], strides = [1, 1, 1]} : vector<2x8x16xf32> to vector<2x1x16xf32>
    %261 = vector.shape_cast %260 : vector<2x1x16xf32> to vector<2x16xf32>
    %c0_81 = arith.constant 0 : index
    %c0_82 = arith.constant 0 : index
    %262 = vector.load %arg8[%c0_81, %c0_82] : memref<16x128xf32, #tpu.memory_space<vmem>>, vector<16x128xf32>
    %cst_83 = arith.constant dense<0.000000e+00> : vector<2x128xf32>
    %263 = tpu.matmul %261, %262, %cst_83 {dimension_numbers = #tpu.dot_dimension_numbers<[1], [0], [0], [1], [0, 0, 1, 1], [], []>} : vector<2x16xf32>, vector<16x128xf32>, vector<2x128xf32> -> vector<2x128xf32>
    %c0_84 = arith.constant 0 : index
    %c0_85 = arith.constant 0 : index
    %264 = vector.load %arg9[%c0_84, %c0_85] : memref<1x128xf32, #tpu.memory_space<vmem>>, vector<1x128xf32>
    %265 = vector.broadcast %264 : vector<1x128xf32> to vector<2x128xf32>
    %266 = arith.addf %263, %265 : vector<2x128xf32>
    %c0_86 = arith.constant 0 : index
    %c0_87 = arith.constant 0 : index
    %267 = vector.load %arg10[%c0_86, %c0_87] : memref<2x128xf32, #tpu.memory_space<vmem>>, vector<2x128xf32>
    tpu.vector_store %arg10[%c0_86, %c0_87], %266 {strides = array<i32>} : memref<2x128xf32, #tpu.memory_space<vmem>>, vector<2x128xf32>,
    return
  }
}

</mosaic_0001>

<llo_original>
// kernel: transformer_model_forward.1
$region0: #{transformer_model_forward.1}
  #allocation0 [shape = 'u32[]', space=smem, size = 0x4, offset = 0x4, fixed_abs, tag = 'smem constant byte address 0x4 - core index']
  #allocation1 [shape = 'u32[144,128]{1,0:T(1,128)}', space=vmem, size = 0x12000, scoped, tag = 'internal scratch']
  %s0 = inlined_call_operand.vmem [shape: f32[16,16], index: 0, kind: input, shape index: {}]
  %s1 = inlined_call_operand.vmem [shape: f32[2,16,48], index: 1, kind: input, shape index: {}]
  %s2 = inlined_call_operand.vmem [shape: f32[2,1,48], index: 2, kind: input, shape index: {}]
  %s3 = inlined_call_operand.vmem [shape: f32[2,16,16], index: 3, kind: input, shape index: {}]
  %s4 = inlined_call_operand.vmem [shape: f32[2,16,32], index: 4, kind: input, shape index: {}]
  %s5 = inlined_call_operand.vmem [shape: f32[2,1,32], index: 5, kind: input, shape index: {}]
  %s6 = inlined_call_operand.vmem [shape: f32[2,32,16], index: 6, kind: input, shape index: {}]
  %s7 = inlined_call_operand.vmem [shape: f32[2,6,16], index: 7, kind: input, shape index: {}]
  %s8 = inlined_call_operand.vmem [shape: f32[16,128], index: 8, kind: input, shape index: {}]
  %s9 = inlined_call_operand.vmem [shape: f32[1,128], index: 9, kind: input, shape index: {}]
  %s10 = inlined_call_operand.vmem [shape: f32[2,128], index: 10, kind: output, shape index: {}]
  %s11 = sld [smem:[#allocation0]]
  $region50: #{transformer_model_forward.1} parent=0
    _
  %s13 = ssub.s32 1, %s11
  %s14 = scalar_select 0, %s13, %s11
  // Predicated region
  $region2: #{transformer_model_forward.1} parent=0 // pred_check
    _
  $region3: #{transformer_model_forward.1} parent=0 // pred_check_branch
    %16 = sbr.rel (0) target = $region5
  $region4: #{transformer_model_forward.1} parent=0 // pred_region
    _
  $region5: #{transformer_model_forward.1} parent=0 // pred_fallthru
    _
  // Predicated region
  $region6: #{transformer_model_forward.1} parent=0 // pred_check
    _
  $region7: #{transformer_model_forward.1} parent=0 // pred_check_branch
    %18 = sbr.rel (0) target = $region9
  $region8: #{transformer_model_forward.1} parent=0 // pred_region
    _
  $region9: #{transformer_model_forward.1} parent=0 // pred_fallthru
    _
  // Predicated region
  $region10: #{transformer_model_forward.1} parent=0 // pred_check
    _
  $region11: #{transformer_model_forward.1} parent=0 // pred_check_branch
    %20 = sbr.rel (0) target = $region13
  $region12: #{transformer_model_forward.1} parent=0 // pred_region
    _
  $region13: #{transformer_model_forward.1} parent=0 // pred_fallthru
    _
  // Predicated region
  $region14: #{transformer_model_forward.1} parent=0 // pred_check
    _
  $region15: #{transformer_model_forward.1} parent=0 // pred_check_branch
    %22 = sbr.rel (0) target = $region17
  $region16: #{transformer_model_forward.1} parent=0 // pred_region
    _
  $region17: #{transformer_model_forward.1} parent=0 // pred_fallthru
    _
  // Predicated region
  $region18: #{transformer_model_forward.1} parent=0 // pred_check
    _
  $region19: #{transformer_model_forward.1} parent=0 // pred_check_branch
    %24 = sbr.rel (0) target = $region21
  $region20: #{transformer_model_forward.1} parent=0 // pred_region
    _
  $region21: #{transformer_model_forward.1} parent=0 // pred_fallthru
    _
  // Predicated region
  $region22: #{transformer_model_forward.1} parent=0 // pred_check
    _
  $region23: #{transformer_model_forward.1} parent=0 // pred_check_branch
    %26 = sbr.rel (0) target = $region25
  $region24: #{transformer_model_forward.1} parent=0 // pred_region
    _
  $region25: #{transformer_model_forward.1} parent=0 // pred_fallthru
    _
  // Predicated region
  $region26: #{transformer_model_forward.1} parent=0 // pred_check
    _
  $region27: #{transformer_model_forward.1} parent=0 // pred_check_branch
    %28 = sbr.rel (0) target = $region29
  $region28: #{transformer_model_forward.1} parent=0 // pred_region
    _
  $region29: #{transformer_model_forward.1} parent=0 // pred_fallthru
    _
  // Predicated region
  $region30: #{transformer_model_forward.1} parent=0 // pred_check
    _
  $region31: #{transformer_model_forward.1} parent=0 // pred_check_branch
    %30 = sbr.rel (0) target = $region33
  $region32: #{transformer_model_forward.1} parent=0 // pred_region
    _
  $region33: #{transformer_model_forward.1} parent=0 // pred_fallthru
    _
  // Predicated region
  $region34: #{transformer_model_forward.1} parent=0 // pred_check
    _
  $region35: #{transformer_model_forward.1} parent=0 // pred_check_branch
    %32 = sbr.rel (0) target = $region37
  $region36: #{transformer_model_forward.1} parent=0 // pred_region
    _
  $region37: #{transformer_model_forward.1} parent=0 // pred_fallthru
    _
  // Predicated region
  $region38: #{transformer_model_forward.1} parent=0 // pred_check
    _
  $region39: #{transformer_model_forward.1} parent=0 // pred_check_branch
    %34 = sbr.rel (0) target = $region41
  $region40: #{transformer_model_forward.1} parent=0 // pred_region
    _
  $region41: #{transformer_model_forward.1} parent=0 // pred_fallthru
    _
  %v35 = vld [vmem:[%s0] sm:$0xff]
  %v36 = vld [vmem:[%s0 + $0x8] sm:$0xff]
  %v37 = vld [vmem:[%s7] sm:$0x3f]
  %v38 = vld [vmem:[%s1] sm:$0xff]
  %v39 = vld [vmem:[%s1 + $0x8] sm:$0xff]
  %v40 = vld [vmem:[%s2] sm:$0x1]
  %v42 = vlaneseq
  %v43 = vshrl.u32 %v42, 7
  %v44 = vsub.s32 0, %v43
  %v45 = vrot.slane %v40, %v44
  %vm47 = vcmask 130048
  %v49 = vsel %vm47, %v35, 0
  %v52 = vsel %vm47, %v36, 0
  %54 = vmatprep.subr.mxu0 0.0
  %55 = vmatpush1.msra.mxu0 %v38
  %56 = vmatprep.subr.mxu0 0.0
  %57 = vmatpush1.msra.mxu0 %v39
  %58 = vmatprep.subr.mxu0 0.0
  %59 = vmatpush1.msra.mxu0 0.0
  %60 = vmatprep.subr.mxu0 0.0
  %61 = vmatpush1.msra.mxu0 0.0
  %62 = vmatprep.subr.mxu0 0.0
  %63 = vmatpush1.msra.mxu0 0.0
  %64 = vmatprep.subr.mxu0 0.0
  %65 = vmatpush1.msra.mxu0 0.0
  %66 = vmatprep.subr.mxu0 0.0
  %67 = vmatpush1.msra.mxu0 0.0
  %68 = vmatprep.subr.mxu0 0.0
  %69 = vmatpush1.msra.mxu0 0.0
  %70 = vmatprep.subr.mxu0 0.0
  %71 = vmatpush1.msra.mxu0 0.0
  %72 = vmatprep.subr.mxu0 0.0
  %73 = vmatpush1.msra.mxu0 0.0
  %74 = vmatprep.subr.mxu0 0.0
  %75 = vmatpush1.msra.mxu0 0.0
  %76 = vmatprep.subr.mxu0 0.0
  %77 = vmatpush1.msra.mxu0 0.0
  %78 = vmatprep.subr.mxu0 0.0
  %79 = vmatpush1.msra.mxu0 0.0
  %80 = vmatprep.subr.mxu0 0.0
  %81 = vmatpush1.msra.mxu0 0.0
  %82 = vmatprep.subr.mxu0 0.0
  %83 = vmatpush1.msra.mxu0 0.0
  %84 = vmatprep.subr.mxu0 0.0
  %85 = vmatpush1.msra.mxu0 0.0
  %86 = vmatprep.subr.mxu0 0.0
  %87 = vmatpush1.msra.mxu0 0.0
  %88 = vmatprep.subr.mxu0 0.0
  %89 = vmatpush1.msra.mxu0 0.0
  %90 = vmatprep.subr.mxu0 0.0
  %91 = vmatpush1.msra.mxu0 0.0
  %92 = vmatprep.subr.mxu0 0.0
  %93 = vmatpush1.msra.mxu0 0.0
  %94 = vmatprep.subr.mxu0 0.0
  %95 = vmatpush1.msra.mxu0 0.0
  %96 = vmatprep.subr.mxu0 0.0
  %97 = vmatpush1.msra.mxu0 0.0
  %98 = vmatprep.subr.mxu0 0.0
  %99 = vmatpush1.msra.mxu0 0.0
  %100 = vmatprep.subr.mxu0 0.0
  %101 = vmatpush1.msra.mxu0 0.0
  %102 = vmatprep.subr.mxu0 0.0
  %103 = vmatpush1.msra.mxu0 0.0
  %104 = vmatprep.subr.mxu0 0.0
  %105 = vmatpush1.msra.mxu0 0.0
  %106 = vmatprep.subr.mxu0 0.0
  %107 = vmatpush1.msra.mxu0 0.0
  %108 = vmatprep.subr.mxu0 0.0
  %109 = vmatpush1.msra.mxu0 0.0
  %110 = vmatprep.subr.mxu0 0.0
  %111 = vmatpush1.msra.mxu0 0.0
  %112 = vmatprep.subr.mxu0 0.0
  %113 = vmatpush1.msra.mxu0 0.0
  %114 = vmatprep.subr.mxu0 0.0
  %115 = vmatpush1.msra.mxu0 0.0
  %116 = vmatprep.subr.mxu0 0.0
  %117 = vmatpush1.msra.mxu0 0.0
  %118 = vmatprep.mubr.f32.mxu0 0.0
  %119 = vmatmul.mubr.f32.gmra.mrb[0].mxu0 %v49
  %v120 = vpop.f32.mrb[0].mxu0
  %v121 = vadd.f32 %v45, %v120
  %v122 = vpop.f32.mrb[0].mxu0
  %123 = vmatprep.mubr.f32.mxu0 0.0
  %124 = vmatmul.mubr.f32.gmra.mrb[0].mxu0 %v52
  %v125 = vpop.f32.mrb[0].mxu0
  %v126 = vadd.f32 %v45, %v125
  %v127 = vpop.f32.mrb[0].mxu0
  %128 = vdwg.mxu0
  %131 = vrot.lane.b32.xlu0 %v121, 124
  %v132 = vpop.permute.xlu0 %131
  %133 = vrot.lane.b32.xlu0 %v126, 124
  %v134 = vpop.permute.xlu0 %133
  %135 = vrot.lane.b32.xlu0 %v121, 120
  %v136 = vpop.permute.xlu0 %135
  %137 = vrot.lane.b32.xlu0 %v126, 120
  %v138 = vpop.permute.xlu0 %137
  %139 = vrot.lane.b32.xlu0 %v121, 116
  %v140 = vpop.permute.xlu0 %139
  %141 = vrot.lane.b32.xlu0 %v126, 116
  %v142 = vpop.permute.xlu0 %141
  %143 = vrot.lane.b32.xlu0 %v121, 112
  %v144 = vpop.permute.xlu0 %143
  %vm145 = vcmask 31744
  %v146 = vsel %vm145, %v121, 0
  %v148 = vsel %vm145, %v144, 0
  %150 = vmatprep.subr.mxu0 0.0
  %151 = vmatpush1.xpose.msra.mxu0 %v148
  %152 = vmatprep.subr.mxu0 0.0
  %153 = vmatpush1.xpose.msra.mxu0 0.0
  %154 = vmatprep.subr.mxu0 0.0
  %155 = vmatpush1.xpose.msra.mxu0 0.0
  %156 = vmatprep.subr.mxu0 0.0
  %157 = vmatpush1.xpose.msra.mxu0 0.0
  %158 = vmatprep.subr.mxu0 0.0
  %159 = vmatpush1.xpose.msra.mxu0 0.0
  %160 = vmatprep.subr.mxu0 0.0
  %161 = vmatpush1.xpose.msra.mxu0 0.0
  %162 = vmatprep.subr.mxu0 0.0
  %163 = vmatpush1.xpose.msra.mxu0 0.0
  %164 = vmatprep.subr.mxu0 0.0
  %165 = vmatpush1.xpose.msra.mxu0 0.0
  %166 = vmatprep.subr.mxu0 0.0
  %167 = vmatpush1.xpose.msra.mxu0 0.0
  %168 = vmatprep.subr.mxu0 0.0
  %169 = vmatpush1.xpose.msra.mxu0 0.0
  %170 = vmatprep.subr.mxu0 0.0
  %171 = vmatpush1.xpose.msra.mxu0 0.0
  %172 = vmatprep.subr.mxu0 0.0
  %173 = vmatpush1.xpose.msra.mxu0 0.0
  %174 = vmatprep.subr.mxu0 0.0
  %175 = vmatpush1.xpose.msra.mxu0 0.0
  %176 = vmatprep.subr.mxu0 0.0
  %177 = vmatpush1.xpose.msra.mxu0 0.0
  %178 = vmatprep.subr.mxu0 0.0
  %179 = vmatpush1.xpose.msra.mxu0 0.0
  %180 = vmatprep.subr.mxu0 0.0
  %181 = vmatpush1.xpose.msra.mxu0 0.0
  %182 = vmatprep.subr.mxu0 0.0
  %183 = vmatpush1.xpose.msra.mxu0 0.0
  %184 = vmatprep.subr.mxu0 0.0
  %185 = vmatpush1.xpose.msra.mxu0 0.0
  %186 = vmatprep.subr.mxu0 0.0
  %187 = vmatpush1.xpose.msra.mxu0 0.0
  %188 = vmatprep.subr.mxu0 0.0
  %189 = vmatpush1.xpose.msra.mxu0 0.0
  %190 = vmatprep.subr.mxu0 0.0
  %191 = vmatpush1.xpose.msra.mxu0 0.0
  %192 = vmatprep.subr.mxu0 0.0
  %193 = vmatpush1.xpose.msra.mxu0 0.0
  %194 = vmatprep.subr.mxu0 0.0
  %195 = vmatpush1.xpose.msra.mxu0 0.0
  %196 = vmatprep.subr.mxu0 0.0
  %197 = vmatpush1.xpose.msra.mxu0 0.0
  %198 = vmatprep.subr.mxu0 0.0
  %199 = vmatpush1.xpose.msra.mxu0 0.0
  %200 = vmatprep.subr.mxu0 0.0
  %201 = vmatpush1.xpose.msra.mxu0 0.0
  %202 = vmatprep.subr.mxu0 0.0
  %203 = vmatpush1.xpose.msra.mxu0 0.0
  %204 = vmatprep.subr.mxu0 0.0
  %205 = vmatpush1.xpose.msra.mxu0 0.0
  %206 = vmatprep.subr.mxu0 0.0
  %207 = vmatpush1.xpose.msra.mxu0 0.0
  %208 = vmatprep.subr.mxu0 0.0
  %209 = vmatpush1.xpose.msra.mxu0 0.0
  %210 = vmatprep.subr.mxu0 0.0
  %211 = vmatpush1.xpose.msra.mxu0 0.0
  %212 = vmatprep.subr.mxu0 0.0
  %213 = vmatpush1.xpose.msra.mxu0 0.0
  %214 = vmatprep.mubr.f32.mxu0 0.0
  %215 = vmatmul.mubr.f32.gmra.mrb[0].mxu0 %v146
  %v216 = vpop.f32.mrb[0].mxu0
  %v217 = vadd.f32 0.0, %v216
  %v218 = vpop.f32.mrb[0].mxu0
  %219 = vdwg.mxu0
  %220 = vrot.lane.b32.xlu0 %v126, 112
  %v221 = vpop.permute.xlu0 %220
  %v222 = vsel %vm145, %v126, 0
  %v224 = vsel %vm145, %v221, 0
  %226 = vmatprep.subr.mxu0 0.0
  %227 = vmatpush1.xpose.msra.mxu0 %v224
  %228 = vmatprep.subr.mxu0 0.0
  %229 = vmatpush1.xpose.msra.mxu0 0.0
  %230 = vmatprep.subr.mxu0 0.0
  %231 = vmatpush1.xpose.msra.mxu0 0.0
  %232 = vmatprep.subr.mxu0 0.0
  %233 = vmatpush1.xpose.msra.mxu0 0.0
  %234 = vmatprep.subr.mxu0 0.0
  %235 = vmatpush1.xpose.msra.mxu0 0.0
  %236 = vmatprep.subr.mxu0 0.0
  %237 = vmatpush1.xpose.msra.mxu0 0.0
  %238 = vmatprep.subr.mxu0 0.0
  %239 = vmatpush1.xpose.msra.mxu0 0.0
  %240 = vmatprep.subr.mxu0 0.0
  %241 = vmatpush1.xpose.msra.mxu0 0.0
  %242 = vmatprep.subr.mxu0 0.0
  %243 = vmatpush1.xpose.msra.mxu0 0.0
  %244 = vmatprep.subr.mxu0 0.0
  %245 = vmatpush1.xpose.msra.mxu0 0.0
  %246 = vmatprep.subr.mxu0 0.0
  %247 = vmatpush1.xpose.msra.mxu0 0.0
  %248 = vmatprep.subr.mxu0 0.0
  %249 = vmatpush1.xpose.msra.mxu0 0.0
  %250 = vmatprep.subr.mxu0 0.0
  %251 = vmatpush1.xpose.msra.mxu0 0.0
  %252 = vmatprep.subr.mxu0 0.0
  %253 = vmatpush1.xpose.msra.mxu0 0.0
  %254 = vmatprep.subr.mxu0 0.0
  %255 = vmatpush1.xpose.msra.mxu0 0.0
  %256 = vmatprep.subr.mxu0 0.0
  %257 = vmatpush1.xpose.msra.mxu0 0.0
  %258 = vmatprep.subr.mxu0 0.0
  %259 = vmatpush1.xpose.msra.mxu0 0.0
  %260 = vmatprep.subr.mxu0 0.0
  %261 = vmatpush1.xpose.msra.mxu0 0.0
  %262 = vmatprep.subr.mxu0 0.0
  %263 = vmatpush1.xpose.msra.mxu0 0.0
  %264 = vmatprep.subr.mxu0 0.0
  %265 = vmatpush1.xpose.msra.mxu0 0.0
  %266 = vmatprep.subr.mxu0 0.0
  %267 = vmatpush1.xpose.msra.mxu0 0.0
  %268 = vmatprep.subr.mxu0 0.0
  %269 = vmatpush1.xpose.msra.mxu0 0.0
  %270 = vmatprep.subr.mxu0 0.0
  %271 = vmatpush1.xpose.msra.mxu0 0.0
  %272 = vmatprep.subr.mxu0 0.0
  %273 = vmatpush1.xpose.msra.mxu0 0.0
  %274 = vmatprep.subr.mxu0 0.0
  %275 = vmatpush1.xpose.msra.mxu0 0.0
  %276 = vmatprep.subr.mxu0 0.0
  %277 = vmatpush1.xpose.msra.mxu0 0.0
  %278 = vmatprep.subr.mxu0 0.0
  %279 = vmatpush1.xpose.msra.mxu0 0.0
  %280 = vmatprep.subr.mxu0 0.0
  %281 = vmatpush1.xpose.msra.mxu0 0.0
  %282 = vmatprep.subr.mxu0 0.0
  %283 = vmatpush1.xpose.msra.mxu0 0.0
  %284 = vmatprep.subr.mxu0 0.0
  %285 = vmatpush1.xpose.msra.mxu0 0.0
  %286 = vmatprep.subr.mxu0 0.0
  %287 = vmatpush1.xpose.msra.mxu0 0.0
  %288 = vmatprep.subr.mxu0 0.0
  %289 = vmatpush1.xpose.msra.mxu0 0.0
  %290 = vmatprep.mubr.f32.mxu0 0.0
  %291 = vmatmul.mubr.f32.gmra.mrb[0].mxu0 %v222
  %v292 = vpop.f32.mrb[0].mxu0
  %v293 = vadd.f32 0.0, %v292
  %v294 = vpop.f32.mrb[0].mxu0
  %295 = vdwg.mxu0
  %296 = vrot.lane.b32.xlu0 %v132, 112
  %v297 = vpop.permute.xlu0 %296
  %v298 = vsel %vm145, %v132, 0
  %v300 = vsel %vm145, %v297, 0
  %302 = vmatprep.subr.mxu0 0.0
  %303 = vmatpush1.xpose.msra.mxu0 %v300
  %304 = vmatprep.subr.mxu0 0.0
  %305 = vmatpush1.xpose.msra.mxu0 0.0
  %306 = vmatprep.subr.mxu0 0.0
  %307 = vmatpush1.xpose.msra.mxu0 0.0
  %308 = vmatprep.subr.mxu0 0.0
  %309 = vmatpush1.xpose.msra.mxu0 0.0
  %310 = vmatprep.subr.mxu0 0.0
  %311 = vmatpush1.xpose.msra.mxu0 0.0
  %312 = vmatprep.subr.mxu0 0.0
  %313 = vmatpush1.xpose.msra.mxu0 0.0
  %314 = vmatprep.subr.mxu0 0.0
  %315 = vmatpush1.xpose.msra.mxu0 0.0
  %316 = vmatprep.subr.mxu0 0.0
  %317 = vmatpush1.xpose.msra.mxu0 0.0
  %318 = vmatprep.subr.mxu0 0.0
  %319 = vmatpush1.xpose.msra.mxu0 0.0
  %320 = vmatprep.subr.mxu0 0.0
  %321 = vmatpush1.xpose.msra.mxu0 0.0
  %322 = vmatprep.subr.mxu0 0.0
  %323 = vmatpush1.xpose.msra.mxu0 0.0
  %324 = vmatprep.subr.mxu0 0.0
  %325 = vmatpush1.xpose.msra.mxu0 0.0
  %326 = vmatprep.subr.mxu0 0.0
  %327 = vmatpush1.xpose.msra.mxu0 0.0
  %328 = vmatprep.subr.mxu0 0.0
  %329 = vmatpush1.xpose.msra.mxu0 0.0
  %330 = vmatprep.subr.mxu0 0.0
  %331 = vmatpush1.xpose.msra.mxu0 0.0
  %332 = vmatprep.subr.mxu0 0.0
  %333 = vmatpush1.xpose.msra.mxu0 0.0
  %334 = vmatprep.subr.mxu0 0.0
  %335 = vmatpush1.xpose.msra.mxu0 0.0
  %336 = vmatprep.subr.mxu0 0.0
  %337 = vmatpush1.xpose.msra.mxu0 0.0
  %338 = vmatprep.subr.mxu0 0.0
  %339 = vmatpush1.xpose.msra.mxu0 0.0
  %340 = vmatprep.subr.mxu0 0.0
  %341 = vmatpush1.xpose.msra.mxu0 0.0
  %342 = vmatprep.subr.mxu0 0.0
  %343 = vmatpush1.xpose.msra.mxu0 0.0
  %344 = vmatprep.subr.mxu0 0.0
  %345 = vmatpush1.xpose.msra.mxu0 0.0
  %346 = vmatprep.subr.mxu0 0.0
  %347 = vmatpush1.xpose.msra.mxu0 0.0
  %348 = vmatprep.subr.mxu0 0.0
  %349 = vmatpush1.xpose.msra.mxu0 0.0
  %350 = vmatprep.subr.mxu0 0.0
  %351 = vmatpush1.xpose.msra.mxu0 0.0
  %352 = vmatprep.subr.mxu0 0.0
  %353 = vmatpush1.xpose.msra.mxu0 0.0
  %354 = vmatprep.subr.mxu0 0.0
  %355 = vmatpush1.xpose.msra.mxu0 0.0
  %356 = vmatprep.subr.mxu0 0.0
  %357 = vmatpush1.xpose.msra.mxu0 0.0
  %358 = vmatprep.subr.mxu0 0.0
  %359 = vmatpush1.xpose.msra.mxu0 0.0
  %360 = vmatprep.subr.mxu0 0.0
  %361 = vmatpush1.xpose.msra.mxu0 0.0
  %362 = vmatprep.subr.mxu0 0.0
  %363 = vmatpush1.xpose.msra.mxu0 0.0
  %364 = vmatprep.subr.mxu0 0.0
  %365 = vmatpush1.xpose.msra.mxu0 0.0
  %366 = vmatprep.mubr.f32.mxu0 0.0
  %367 = vmatmul.mubr.f32.gmra.mrb[0].mxu0 %v298
  %v368 = vpop.f32.mrb[0].mxu0
  %v369 = vadd.f32 0.0, %v368
  %v370 = vpop.f32.mrb[0].mxu0
  %371 = vdwg.mxu0
  %372 = vrot.lane.b32.xlu0 %v134, 112
  %v373 = vpop.permute.xlu0 %372
  %v374 = vsel %vm145, %v134, 0
  %v376 = vsel %vm145, %v373, 0
  %378 = vmatprep.subr.mxu0 0.0
  %379 = vmatpush1.xpose.msra.mxu0 %v376
  %380 = vmatprep.subr.mxu0 0.0
  %381 = vmatpush1.xpose.msra.mxu0 0.0
  %382 = vmatprep.subr.mxu0 0.0
  %383 = vmatpush1.xpose.msra.mxu0 0.0
  %384 = vmatprep.subr.mxu0 0.0
  %385 = vmatpush1.xpose.msra.mxu0 0.0
  %386 = vmatprep.subr.mxu0 0.0
  %387 = vmatpush1.xpose.msra.mxu0 0.0
  %388 = vmatprep.subr.mxu0 0.0
  %389 = vmatpush1.xpose.msra.mxu0 0.0
  %390 = vmatprep.subr.mxu0 0.0
  %391 = vmatpush1.xpose.msra.mxu0 0.0
  %392 = vmatprep.subr.mxu0 0.0
  %393 = vmatpush1.xpose.msra.mxu0 0.0
  %394 = vmatprep.subr.mxu0 0.0
  %395 = vmatpush1.xpose.msra.mxu0 0.0
  %396 = vmatprep.subr.mxu0 0.0
  %397 = vmatpush1.xpose.msra.mxu0 0.0
  %398 = vmatprep.subr.mxu0 0.0
  %399 = vmatpush1.xpose.msra.mxu0 0.0
  %400 = vmatprep.subr.mxu0 0.0
  %401 = vmatpush1.xpose.msra.mxu0 0.0
  %402 = vmatprep.subr.mxu0 0.0
  %403 = vmatpush1.xpose.msra.mxu0 0.0
  %404 = vmatprep.subr.mxu0 0.0
  %405 = vmatpush1.xpose.msra.mxu0 0.0
  %406 = vmatprep.subr.mxu0 0.0
  %407 = vmatpush1.xpose.msra.mxu0 0.0
  %408 = vmatprep.subr.mxu0 0.0
  %409 = vmatpush1.xpose.msra.mxu0 0.0
  %410 = vmatprep.subr.mxu0 0.0
  %411 = vmatpush1.xpose.msra.mxu0 0.0
  %412 = vmatprep.subr.mxu0 0.0
  %413 = vmatpush1.xpose.msra.mxu0 0.0
  %414 = vmatprep.subr.mxu0 0.0
  %415 = vmatpush1.xpose.msra.mxu0 0.0
  %416 = vmatprep.subr.mxu0 0.0
  %417 = vmatpush1.xpose.msra.mxu0 0.0
  %418 = vmatprep.subr.mxu0 0.0
  %419 = vmatpush1.xpose.msra.mxu0 0.0
  %420 = vmatprep.subr.mxu0 0.0
  %421 = vmatpush1.xpose.msra.mxu0 0.0
  %422 = vmatprep.subr.mxu0 0.0
  %423 = vmatpush1.xpose.msra.mxu0 0.0
  %424 = vmatprep.subr.mxu0 0.0
  %425 = vmatpush1.xpose.msra.mxu0 0.0
  %426 = vmatprep.subr.mxu0 0.0
  %427 = vmatpush1.xpose.msra.mxu0 0.0
  %428 = vmatprep.subr.mxu0 0.0
  %429 = vmatpush1.xpose.msra.mxu0 0.0
  %430 = vmatprep.subr.mxu0 0.0
  %431 = vmatpush1.xpose.msra.mxu0 0.0
  %432 = vmatprep.subr.mxu0 0.0
  %433 = vmatpush1.xpose.msra.mxu0 0.0
  %434 = vmatprep.subr.mxu0 0.0
  %435 = vmatpush1.xpose.msra.mxu0 0.0
  %436 = vmatprep.subr.mxu0 0.0
  %437 = vmatpush1.xpose.msra.mxu0 0.0
  %438 = vmatprep.subr.mxu0 0.0
  %439 = vmatpush1.xpose.msra.mxu0 0.0
  %440 = vmatprep.subr.mxu0 0.0
  %441 = vmatpush1.xpose.msra.mxu0 0.0
  %442 = vmatprep.mubr.f32.mxu0 0.0
  %443 = vmatmul.mubr.f32.gmra.mrb[0].mxu0 %v374
  %v444 = vpop.f32.mrb[0].mxu0
  %v445 = vadd.f32 0.0, %v444
  %v446 = vpop.f32.mrb[0].mxu0
  %447 = vdwg.mxu0
  %448 = vrot.lane.b32.xlu0 %v136, 112
  %v449 = vpop.permute.xlu0 %448
  %v450 = vsel %vm145, %v136, 0
  %v452 = vsel %vm145, %v449, 0
  %454 = vmatprep.subr.mxu0 0.0
  %455 = vmatpush1.xpose.msra.mxu0 %v452
  %456 = vmatprep.subr.mxu0 0.0
  %457 = vmatpush1.xpose.msra.mxu0 0.0
  %458 = vmatprep.subr.mxu0 0.0
  %459 = vmatpush1.xpose.msra.mxu0 0.0
  %460 = vmatprep.subr.mxu0 0.0
  %461 = vmatpush1.xpose.msra.mxu0 0.0
  %462 = vmatprep.subr.mxu0 0.0
  %463 = vmatpush1.xpose.msra.mxu0 0.0
  %464 = vmatprep.subr.mxu0 0.0
  %465 = vmatpush1.xpose.msra.mxu0 0.0
  %466 = vmatprep.subr.mxu0 0.0
  %467 = vmatpush1.xpose.msra.mxu0 0.0
  %468 = vmatprep.subr.mxu0 0.0
  %469 = vmatpush1.xpose.msra.mxu0 0.0
  %470 = vmatprep.subr.mxu0 0.0
  %471 = vmatpush1.xpose.msra.mxu0 0.0
  %472 = vmatprep.subr.mxu0 0.0
  %473 = vmatpush1.xpose.msra.mxu0 0.0
  %474 = vmatprep.subr.mxu0 0.0
  %475 = vmatpush1.xpose.msra.mxu0 0.0
  %476 = vmatprep.subr.mxu0 0.0
  %477 = vmatpush1.xpose.msra.mxu0 0.0
  %478 = vmatprep.subr.mxu0 0.0
  %479 = vmatpush1.xpose.msra.mxu0 0.0
  %480 = vmatprep.subr.mxu0 0.0
  %481 = vmatpush1.xpose.msra.mxu0 0.0
  %482 = vmatprep.subr.mxu0 0.0
  %483 = vmatpush1.xpose.msra.mxu0 0.0
  %484 = vmatprep.subr.mxu0 0.0
  %485 = vmatpush1.xpose.msra.mxu0 0.0
  %486 = vmatprep.subr.mxu0 0.0
  %487 = vmatpush1.xpose.msra.mxu0 0.0
  %488 = vmatprep.subr.mxu0 0.0
  %489 = vmatpush1.xpose.msra.mxu0 0.0
  %490 = vmatprep.subr.mxu0 0.0
  %491 = vmatpush1.xpose.msra.mxu0 0.0
  %492 = vmatprep.subr.mxu0 0.0
  %493 = vmatpush1.xpose.msra.mxu0 0.0
  %494 = vmatprep.subr.mxu0 0.0
  %495 = vmatpush1.xpose.msra.mxu0 0.0
  %496 = vmatprep.subr.mxu0 0.0
  %497 = vmatpush1.xpose.msra.mxu0 0.0
  %498 = vmatprep.subr.mxu0 0.0
  %499 = vmatpush1.xpose.msra.mxu0 0.0
  %500 = vmatprep.subr.mxu0 0.0
  %501 = vmatpush1.xpose.msra.mxu0 0.0
  %502 = vmatprep.subr.mxu0 0.0
  %503 = vmatpush1.xpose.msra.mxu0 0.0
  %504 = vmatprep.subr.mxu0 0.0
  %505 = vmatpush1.xpose.msra.mxu0 0.0
  %506 = vmatprep.subr.mxu0 0.0
  %507 = vmatpush1.xpose.msra.mxu0 0.0
  %508 = vmatprep.subr.mxu0 0.0
  %509 = vmatpush1.xpose.msra.mxu0 0.0
  %510 = vmatprep.subr.mxu0 0.0
  %511 = vmatpush1.xpose.msra.mxu0 0.0
  %512 = vmatprep.subr.mxu0 0.0
  %513 = vmatpush1.xpose.msra.mxu0 0.0
  %514 = vmatprep.subr.mxu0 0.0
  %515 = vmatpush1.xpose.msra.mxu0 0.0
  %516 = vmatprep.subr.mxu0 0.0
  %517 = vmatpush1.xpose.msra.mxu0 0.0
  %518 = vmatprep.mubr.f32.mxu0 0.0
  %519 = vmatmul.mubr.f32.gmra.mrb[0].mxu0 %v450
  %v520 = vpop.f32.mrb[0].mxu0
  %v521 = vadd.f32 0.0, %v520
  %v522 = vpop.f32.mrb[0].mxu0
  %523 = vdwg.mxu0
  %524 = vrot.lane.b32.xlu0 %v138, 112
  %v525 = vpop.permute.xlu0 %524
  %v526 = vsel %vm145, %v138, 0
  %v528 = vsel %vm145, %v525, 0
  %530 = vmatprep.subr.mxu0 0.0
  %531 = vmatpush1.xpose.msra.mxu0 %v528
  %532 = vmatprep.subr.mxu0 0.0
  %533 = vmatpush1.xpose.msra.mxu0 0.0
  %534 = vmatprep.subr.mxu0 0.0
  %535 = vmatpush1.xpose.msra.mxu0 0.0
  %536 = vmatprep.subr.mxu0 0.0
  %537 = vmatpush1.xpose.msra.mxu0 0.0
  %538 = vmatprep.subr.mxu0 0.0
  %539 = vmatpush1.xpose.msra.mxu0 0.0
  %540 = vmatprep.subr.mxu0 0.0
  %541 = vmatpush1.xpose.msra.mxu0 0.0
  %542 = vmatprep.subr.mxu0 0.0
  %543 = vmatpush1.xpose.msra.mxu0 0.0
  %544 = vmatprep.subr.mxu0 0.0
  %545 = vmatpush1.xpose.msra.mxu0 0.0
  %546 = vmatprep.subr.mxu0 0.0
  %547 = vmatpush1.xpose.msra.mxu0 0.0
  %548 = vmatprep.subr.mxu0 0.0
  %549 = vmatpush1.xpose.msra.mxu0 0.0
  %550 = vmatprep.subr.mxu0 0.0
  %551 = vmatpush1.xpose.msra.mxu0 0.0
  %552 = vmatprep.subr.mxu0 0.0
  %553 = vmatpush1.xpose.msra.mxu0 0.0
  %554 = vmatprep.subr.mxu0 0.0
  %555 = vmatpush1.xpose.msra.mxu0 0.0
  %556 = vmatprep.subr.mxu0 0.0
  %557 = vmatpush1.xpose.msra.mxu0 0.0
  %558 = vmatprep.subr.mxu0 0.0
  %559 = vmatpush1.xpose.msra.mxu0 0.0
  %560 = vmatprep.subr.mxu0 0.0
  %561 = vmatpush1.xpose.msra.mxu0 0.0
  %562 = vmatprep.subr.mxu0 0.0
  %563 = vmatpush1.xpose.msra.mxu0 0.0
  %564 = vmatprep.subr.mxu0 0.0
  %565 = vmatpush1.xpose.msra.mxu0 0.0
  %566 = vmatprep.subr.mxu0 0.0
  %567 = vmatpush1.xpose.msra.mxu0 0.0
  %568 = vmatprep.subr.mxu0 0.0
  %569 = vmatpush1.xpose.msra.mxu0 0.0
  %570 = vmatprep.subr.mxu0 0.0
  %571 = vmatpush1.xpose.msra.mxu0 0.0
  %572 = vmatprep.subr.mxu0 0.0
  %573 = vmatpush1.xpose.msra.mxu0 0.0
  %574 = vmatprep.subr.mxu0 0.0
  %575 = vmatpush1.xpose.msra.mxu0 0.0
  %576 = vmatprep.subr.mxu0 0.0
  %577 = vmatpush1.xpose.msra.mxu0 0.0
  %578 = vmatprep.subr.mxu0 0.0
  %579 = vmatpush1.xpose.msra.mxu0 0.0
  %580 = vmatprep.subr.mxu0 0.0
  %581 = vmatpush1.xpose.msra.mxu0 0.0
  %582 = vmatprep.subr.mxu0 0.0
  %583 = vmatpush1.xpose.msra.mxu0 0.0
  %584 = vmatprep.subr.mxu0 0.0
  %585 = vmatpush1.xpose.msra.mxu0 0.0
  %586 = vmatprep.subr.mxu0 0.0
  %587 = vmatpush1.xpose.msra.mxu0 0.0
  %588 = vmatprep.subr.mxu0 0.0
  %589 = vmatpush1.xpose.msra.mxu0 0.0
  %590 = vmatprep.subr.mxu0 0.0
  %591 = vmatpush1.xpose.msra.mxu0 0.0
  %592 = vmatprep.subr.mxu0 0.0
  %593 = vmatpush1.xpose.msra.mxu0 0.0
  %594 = vmatprep.mubr.f32.mxu0 0.0
  %595 = vmatmul.mubr.f32.gmra.mrb[0].mxu0 %v526
  %v596 = vpop.f32.mrb[0].mxu0
  %v597 = vadd.f32 0.0, %v596
  %v598 = vpop.f32.mrb[0].mxu0
  %599 = vdwg.mxu0
  %600 = vrot.lane.b32.xlu0 %v140, 112
  %v601 = vpop.permute.xlu0 %600
  %v602 = vsel %vm145, %v140, 0
  %v604 = vsel %vm145, %v601, 0
  %606 = vmatprep.subr.mxu0 0.0
  %607 = vmatpush1.xpose.msra.mxu0 %v604
  %608 = vmatprep.subr.mxu0 0.0
  %609 = vmatpush1.xpose.msra.mxu0 0.0
  %610 = vmatprep.subr.mxu0 0.0
  %611 = vmatpush1.xpose.msra.mxu0 0.0
  %612 = vmatprep.subr.mxu0 0.0
  %613 = vmatpush1.xpose.msra.mxu0 0.0
  %614 = vmatprep.subr.mxu0 0.0
  %615 = vmatpush1.xpose.msra.mxu0 0.0
  %616 = vmatprep.subr.mxu0 0.0
  %617 = vmatpush1.xpose.msra.mxu0 0.0
  %618 = vmatprep.subr.mxu0 0.0
  %619 = vmatpush1.xpose.msra.mxu0 0.0
  %620 = vmatprep.subr.mxu0 0.0
  %621 = vmatpush1.xpose.msra.mxu0 0.0
  %622 = vmatprep.subr.mxu0 0.0
  %623 = vmatpush1.xpose.msra.mxu0 0.0
  %624 = vmatprep.subr.mxu0 0.0
  %625 = vmatpush1.xpose.msra.mxu0 0.0
  %626 = vmatprep.subr.mxu0 0.0
  %627 = vmatpush1.xpose.msra.mxu0 0.0
  %628 = vmatprep.subr.mxu0 0.0
  %629 = vmatpush1.xpose.msra.mxu0 0.0
  %630 = vmatprep.subr.mxu0 0.0
  %631 = vmatpush1.xpose.msra.mxu0 0.0
  %632 = vmatprep.subr.mxu0 0.0
  %633 = vmatpush1.xpose.msra.mxu0 0.0
  %634 = vmatprep.subr.mxu0 0.0
  %635 = vmatpush1.xpose.msra.mxu0 0.0
  %636 = vmatprep.subr.mxu0 0.0
  %637 = vmatpush1.xpose.msra.mxu0 0.0
  %638 = vmatprep.subr.mxu0 0.0
  %639 = vmatpush1.xpose.msra.mxu0 0.0
  %640 = vmatprep.subr.mxu0 0.0
  %641 = vmatpush1.xpose.msra.mxu0 0.0
  %642 = vmatprep.subr.mxu0 0.0
  %643 = vmatpush1.xpose.msra.mxu0 0.0
  %644 = vmatprep.subr.mxu0 0.0
  %645 = vmatpush1.xpose.msra.mxu0 0.0
  %646 = vmatprep.subr.mxu0 0.0
  %647 = vmatpush1.xpose.msra.mxu0 0.0
  %648 = vmatprep.subr.mxu0 0.0
  %649 = vmatpush1.xpose.msra.mxu0 0.0
  %650 = vmatprep.subr.mxu0 0.0
  %651 = vmatpush1.xpose.msra.mxu0 0.0
  %652 = vmatprep.subr.mxu0 0.0
  %653 = vmatpush1.xpose.msra.mxu0 0.0
  %654 = vmatprep.subr.mxu0 0.0
  %655 = vmatpush1.xpose.msra.mxu0 0.0
  %656 = vmatprep.subr.mxu0 0.0
  %657 = vmatpush1.xpose.msra.mxu0 0.0
  %658 = vmatprep.subr.mxu0 0.0
  %659 = vmatpush1.xpose.msra.mxu0 0.0
  %660 = vmatprep.subr.mxu0 0.0
  %661 = vmatpush1.xpose.msra.mxu0 0.0
  %662 = vmatprep.subr.mxu0 0.0
  %663 = vmatpush1.xpose.msra.mxu0 0.0
  %664 = vmatprep.subr.mxu0 0.0
  %665 = vmatpush1.xpose.msra.mxu0 0.0
  %666 = vmatprep.subr.mxu0 0.0
  %667 = vmatpush1.xpose.msra.mxu0 0.0
  %668 = vmatprep.subr.mxu0 0.0
  %669 = vmatpush1.xpose.msra.mxu0 0.0
  %670 = vmatprep.mubr.f32.mxu0 0.0
  %671 = vmatmul.mubr.f32.gmra.mrb[0].mxu0 %v602
  %v672 = vpop.f32.mrb[0].mxu0
  %v673 = vadd.f32 0.0, %v672
  %v674 = vpop.f32.mrb[0].mxu0
  %675 = vdwg.mxu0
  %676 = vrot.lane.b32.xlu0 %v142, 112
  %v677 = vpop.permute.xlu0 %676
  %v678 = vsel %vm145, %v142, 0
  %v680 = vsel %vm145, %v677, 0
  %682 = vmatprep.subr.mxu0 0.0
  %683 = vmatpush1.xpose.msra.mxu0 %v680
  %684 = vmatprep.subr.mxu0 0.0
  %685 = vmatpush1.xpose.msra.mxu0 0.0
  %686 = vmatprep.subr.mxu0 0.0
  %687 = vmatpush1.xpose.msra.mxu0 0.0
  %688 = vmatprep.subr.mxu0 0.0
  %689 = vmatpush1.xpose.msra.mxu0 0.0
  %690 = vmatprep.subr.mxu0 0.0
  %691 = vmatpush1.xpose.msra.mxu0 0.0
  %692 = vmatprep.subr.mxu0 0.0
  %693 = vmatpush1.xpose.msra.mxu0 0.0
  %694 = vmatprep.subr.mxu0 0.0
  %695 = vmatpush1.xpose.msra.mxu0 0.0
  %696 = vmatprep.subr.mxu0 0.0
  %697 = vmatpush1.xpose.msra.mxu0 0.0
  %698 = vmatprep.subr.mxu0 0.0
  %699 = vmatpush1.xpose.msra.mxu0 0.0
  %700 = vmatprep.subr.mxu0 0.0
  %701 = vmatpush1.xpose.msra.mxu0 0.0
  %702 = vmatprep.subr.mxu0 0.0
  %703 = vmatpush1.xpose.msra.mxu0 0.0
  %704 = vmatprep.subr.mxu0 0.0
  %705 = vmatpush1.xpose.msra.mxu0 0.0
  %706 = vmatprep.subr.mxu0 0.0
  %707 = vmatpush1.xpose.msra.mxu0 0.0
  %708 = vmatprep.subr.mxu0 0.0
  %709 = vmatpush1.xpose.msra.mxu0 0.0
  %710 = vmatprep.subr.mxu0 0.0
  %711 = vmatpush1.xpose.msra.mxu0 0.0
  %712 = vmatprep.subr.mxu0 0.0
  %713 = vmatpush1.xpose.msra.mxu0 0.0
  %714 = vmatprep.subr.mxu0 0.0
  %715 = vmatpush1.xpose.msra.mxu0 0.0
  %716 = vmatprep.subr.mxu0 0.0
  %717 = vmatpush1.xpose.msra.mxu0 0.0
  %718 = vmatprep.subr.mxu0 0.0
  %719 = vmatpush1.xpose.msra.mxu0 0.0
  %720 = vmatprep.subr.mxu0 0.0
  %721 = vmatpush1.xpose.msra.mxu0 0.0
  %722 = vmatprep.subr.mxu0 0.0
  %723 = vmatpush1.xpose.msra.mxu0 0.0
  %724 = vmatprep.subr.mxu0 0.0
  %725 = vmatpush1.xpose.msra.mxu0 0.0
  %726 = vmatprep.subr.mxu0 0.0
  %727 = vmatpush1.xpose.msra.mxu0 0.0
  %728 = vmatprep.subr.mxu0 0.0
  %729 = vmatpush1.xpose.msra.mxu0 0.0
  %730 = vmatprep.subr.mxu0 0.0
  %731 = vmatpush1.xpose.msra.mxu0 0.0
  %732 = vmatprep.subr.mxu0 0.0
  %733 = vmatpush1.xpose.msra.mxu0 0.0
  %734 = vmatprep.subr.mxu0 0.0
  %735 = vmatpush1.xpose.msra.mxu0 0.0
  %736 = vmatprep.subr.mxu0 0.0
  %737 = vmatpush1.xpose.msra.mxu0 0.0
  %738 = vmatprep.subr.mxu0 0.0
  %739 = vmatpush1.xpose.msra.mxu0 0.0
  %740 = vmatprep.subr.mxu0 0.0
  %741 = vmatpush1.xpose.msra.mxu0 0.0
  %742 = vmatprep.subr.mxu0 0.0
  %743 = vmatpush1.xpose.msra.mxu0 0.0
  %744 = vmatprep.subr.mxu0 0.0
  %745 = vmatpush1.xpose.msra.mxu0 0.0
  %746 = vmatprep.mubr.f32.mxu0 0.0
  %747 = vmatmul.mubr.f32.gmra.mrb[0].mxu0 %v678
  %v748 = vpop.f32.mrb[0].mxu0
  %v749 = vadd.f32 0.0, %v748
  %v750 = vpop.f32.mrb[0].mxu0
  %751 = vdwg.mxu0
  %v752 = vmul.f32 %v217, 0.5
  %v753 = vmul.f32 %v293, 0.5
  %v754 = vmul.f32 %v369, 0.5
  %v755 = vmul.f32 %v445, 0.5
  %v756 = vmul.f32 %v521, 0.5
  %v757 = vmul.f32 %v597, 0.5
  %v758 = vmul.f32 %v673, 0.5
  %v759 = vmul.f32 %v749, 0.5
  %vm760 = vcmask 64512
  %v761 = vsel %vm760, %v752, -inf
  %762 = vmax.xlane.f32.xlu0 %v761
  %v763 = vpop.xlane.xlu0 %762
  %v764 = vsel %vm760, %v753, -inf
  %765 = vmax.xlane.f32.xlu0 %v764
  %v766 = vpop.xlane.xlu0 %765
  %v767 = vsel %vm760, %v754, -inf
  %768 = vmax.xlane.f32.xlu0 %v767
  %v769 = vpop.xlane.xlu0 %768
  %v770 = vsel %vm760, %v755, -inf
  %771 = vmax.xlane.f32.xlu0 %v770
  %v772 = vpop.xlane.xlu0 %771
  %v773 = vsel %vm760, %v756, -inf
  %774 = vmax.xlane.f32.xlu0 %v773
  %v775 = vpop.xlane.xlu0 %774
  %v776 = vsel %vm760, %v757, -inf
  %777 = vmax.xlane.f32.xlu0 %v776
  %v778 = vpop.xlane.xlu0 %777
  %v779 = vsel %vm760, %v758, -inf
  %780 = vmax.xlane.f32.xlu0 %v779
  %v781 = vpop.xlane.xlu0 %780
  %v782 = vsel %vm760, %v759, -inf
  %783 = vmax.xlane.f32.xlu0 %v782
  %v784 = vpop.xlane.xlu0 %783
  %v785 = vsub.f32 %v752, %v763
  %v786 = vsub.f32 %v753, %v766
  %v787 = vsub.f32 %v754, %v769
  %v788 = vsub.f32 %v755, %v772
  %v789 = vsub.f32 %v756, %v775
  %v790 = vsub.f32 %v757, %v778
  %v791 = vsub.f32 %v758, %v781
  %v792 = vsub.f32 %v759, %v784
  %v793 = vmul.f32 %v785, 1.442695
  %v794 = vpow.pop %v793
  %v795 = vmul.f32 %v786, 1.442695
  %v796 = vpow.pop %v795
  %v797 = vmul.f32 %v787, 1.442695
  %v798 = vpow.pop %v797
  %v799 = vmul.f32 %v788, 1.442695
  %v800 = vpow.pop %v799
  %v801 = vmul.f32 %v789, 1.442695
  %v802 = vpow.pop %v801
  %v803 = vmul.f32 %v790, 1.442695
  %v804 = vpow.pop %v803
  %v805 = vmul.f32 %v791, 1.442695
  %v806 = vpow.pop %v805
  %v807 = vmul.f32 %v792, 1.442695
  %v808 = vpow.pop %v807
  %v809 = vsel %vm760, %v794, 0.0
  %810 = vadd.xlane.f32.xlu0 %v809
  %v811 = vpop.xlane.xlu0 %810
  %v812 = vsel %vm760, %v796, 0.0
  %813 = vadd.xlane.f32.xlu0 %v812
  %v814 = vpop.xlane.xlu0 %813
  %v815 = vsel %vm760, %v798, 0.0
  %816 = vadd.xlane.f32.xlu0 %v815
  %v817 = vpop.xlane.xlu0 %816
  %v818 = vsel %vm760, %v800, 0.0
  %819 = vadd.xlane.f32.xlu0 %v818
  %v820 = vpop.xlane.xlu0 %819
  %v821 = vsel %vm760, %v802, 0.0
  %822 = vadd.xlane.f32.xlu0 %v821
  %v823 = vpop.xlane.xlu0 %822
  %v824 = vsel %vm760, %v804, 0.0
  %825 = vadd.xlane.f32.xlu0 %v824
  %v826 = vpop.xlane.xlu0 %825
  %v827 = vsel %vm760, %v806, 0.0
  %828 = vadd.xlane.f32.xlu0 %v827
  %v829 = vpop.xlane.xlu0 %828
  %v830 = vsel %vm760, %v808, 0.0
  %831 = vadd.xlane.f32.xlu0 %v830
  %v832 = vpop.xlane.xlu0 %831
  %v833 = vrcp.pop %v811
  %v834 = vmul.f32 %v794, %v833
  %v835 = vrcp.pop %v814
  %v836 = vmul.f32 %v796, %v835
  %v837 = vrcp.pop %v817
  %v838 = vmul.f32 %v798, %v837
  %v839 = vrcp.pop %v820
  %v840 = vmul.f32 %v800, %v839
  %v841 = vrcp.pop %v823
  %v842 = vmul.f32 %v802, %v841
  %v843 = vrcp.pop %v826
  %v844 = vmul.f32 %v804, %v843
  %v845 = vrcp.pop %v829
  %v846 = vmul.f32 %v806, %v845
  %v847 = vrcp.pop %v832
  %v848 = vmul.f32 %v808, %v847
  %849 = vrot.lane.b32.xlu0 %v121, 96
  %v850 = vpop.permute.xlu0 %849
  %v853 = vsel %vm760, %v834, 0
  %855 = vmatprep.subr.mxu0 0.0
  %856 = vmatpush1.msra.mxu0 %v850
  %857 = vmatprep.subr.mxu0 0.0
  %858 = vmatpush1.msra.mxu0 0.0
  %859 = vmatprep.subr.mxu0 0.0
  %860 = vmatpush1.msra.mxu0 0.0
  %861 = vmatprep.subr.mxu0 0.0
  %862 = vmatpush1.msra.mxu0 0.0
  %863 = vmatprep.subr.mxu0 0.0
  %864 = vmatpush1.msra.mxu0 0.0
  %865 = vmatprep.subr.mxu0 0.0
  %866 = vmatpush1.msra.mxu0 0.0
  %867 = vmatprep.subr.mxu0 0.0
  %868 = vmatpush1.msra.mxu0 0.0
  %869 = vmatprep.subr.mxu0 0.0
  %870 = vmatpush1.msra.mxu0 0.0
  %871 = vmatprep.subr.mxu0 0.0
  %872 = vmatpush1.msra.mxu0 0.0
  %873 = vmatprep.subr.mxu0 0.0
  %874 = vmatpush1.msra.mxu0 0.0
  %875 = vmatprep.subr.mxu0 0.0
  %876 = vmatpush1.msra.mxu0 0.0
  %877 = vmatprep.subr.mxu0 0.0
  %878 = vmatpush1.msra.mxu0 0.0
  %879 = vmatprep.subr.mxu0 0.0
  %880 = vmatpush1.msra.mxu0 0.0
  %881 = vmatprep.subr.mxu0 0.0
  %882 = vmatpush1.msra.mxu0 0.0
  %883 = vmatprep.subr.mxu0 0.0
  %884 = vmatpush1.msra.mxu0 0.0
  %885 = vmatprep.subr.mxu0 0.0
  %886 = vmatpush1.msra.mxu0 0.0
  %887 = vmatprep.subr.mxu0 0.0
  %888 = vmatpush1.msra.mxu0 0.0
  %889 = vmatprep.subr.mxu0 0.0
  %890 = vmatpush1.msra.mxu0 0.0
  %891 = vmatprep.subr.mxu0 0.0
  %892 = vmatpush1.msra.mxu0 0.0
  %893 = vmatprep.subr.mxu0 0.0
  %894 = vmatpush1.msra.mxu0 0.0
  %895 = vmatprep.subr.mxu0 0.0
  %896 = vmatpush1.msra.mxu0 0.0
  %897 = vmatprep.subr.mxu0 0.0
  %898 = vmatpush1.msra.mxu0 0.0
  %899 = vmatprep.subr.mxu0 0.0
  %900 = vmatpush1.msra.mxu0 0.0
  %901 = vmatprep.subr.mxu0 0.0
  %902 = vmatpush1.msra.mxu0 0.0
  %903 = vmatprep.subr.mxu0 0.0
  %904 = vmatpush1.msra.mxu0 0.0
  %905 = vmatprep.subr.mxu0 0.0
  %906 = vmatpush1.msra.mxu0 0.0
  %907 = vmatprep.subr.mxu0 0.0
  %908 = vmatpush1.msra.mxu0 0.0
  %909 = vmatprep.subr.mxu0 0.0
  %910 = vmatpush1.msra.mxu0 0.0
  %911 = vmatprep.subr.mxu0 0.0
  %912 = vmatpush1.msra.mxu0 0.0
  %913 = vmatprep.subr.mxu0 0.0
  %914 = vmatpush1.msra.mxu0 0.0
  %915 = vmatprep.subr.mxu0 0.0
  %916 = vmatpush1.msra.mxu0 0.0
  %917 = vmatprep.subr.mxu0 0.0
  %918 = vmatpush1.msra.mxu0 0.0
  %919 = vmatprep.mubr.f32.mxu0 0.0
  %920 = vmatmul.mubr.f32.gmra.mrb[0].mxu0 %v853
  %v921 = vpop.f32.mrb[0].mxu0
  %v922 = vadd.f32 0.0, %v921
  %v923 = vpop.f32.mrb[0].mxu0
  %924 = vdwg.mxu0
  %925 = vrot.lane.b32.xlu0 %v126, 96
  %v926 = vpop.permute.xlu0 %925
  %v929 = vsel %vm760, %v836, 0
  %931 = vmatprep.subr.mxu0 0.0
  %932 = vmatpush1.msra.mxu0 %v926
  %933 = vmatprep.subr.mxu0 0.0
  %934 = vmatpush1.msra.mxu0 0.0
  %935 = vmatprep.subr.mxu0 0.0
  %936 = vmatpush1.msra.mxu0 0.0
  %937 = vmatprep.subr.mxu0 0.0
  %938 = vmatpush1.msra.mxu0 0.0
  %939 = vmatprep.subr.mxu0 0.0
  %940 = vmatpush1.msra.mxu0 0.0
  %941 = vmatprep.subr.mxu0 0.0
  %942 = vmatpush1.msra.mxu0 0.0
  %943 = vmatprep.subr.mxu0 0.0
  %944 = vmatpush1.msra.mxu0 0.0
  %945 = vmatprep.subr.mxu0 0.0
  %946 = vmatpush1.msra.mxu0 0.0
  %947 = vmatprep.subr.mxu0 0.0
  %948 = vmatpush1.msra.mxu0 0.0
  %949 = vmatprep.subr.mxu0 0.0
  %950 = vmatpush1.msra.mxu0 0.0
  %951 = vmatprep.subr.mxu0 0.0
  %952 = vmatpush1.msra.mxu0 0.0
  %953 = vmatprep.subr.mxu0 0.0
  %954 = vmatpush1.msra.mxu0 0.0
  %955 = vmatprep.subr.mxu0 0.0
  %956 = vmatpush1.msra.mxu0 0.0
  %957 = vmatprep.subr.mxu0 0.0
  %958 = vmatpush1.msra.mxu0 0.0
  %959 = vmatprep.subr.mxu0 0.0
  %960 = vmatpush1.msra.mxu0 0.0
  %961 = vmatprep.subr.mxu0 0.0
  %962 = vmatpush1.msra.mxu0 0.0
  %963 = vmatprep.subr.mxu0 0.0
  %964 = vmatpush1.msra.mxu0 0.0
  %965 = vmatprep.subr.mxu0 0.0
  %966 = vmatpush1.msra.mxu0 0.0
  %967 = vmatprep.subr.mxu0 0.0
  %968 = vmatpush1.msra.mxu0 0.0
  %969 = vmatprep.subr.mxu0 0.0
  %970 = vmatpush1.msra.mxu0 0.0
  %971 = vmatprep.subr.mxu0 0.0
  %972 = vmatpush1.msra.mxu0 0.0
  %973 = vmatprep.subr.mxu0 0.0
  %974 = vmatpush1.msra.mxu0 0.0
  %975 = vmatprep.subr.mxu0 0.0
  %976 = vmatpush1.msra.mxu0 0.0
  %977 = vmatprep.subr.mxu0 0.0
  %978 = vmatpush1.msra.mxu0 0.0
  %979 = vmatprep.subr.mxu0 0.0
  %980 = vmatpush1.msra.mxu0 0.0
  %981 = vmatprep.subr.mxu0 0.0
  %982 = vmatpush1.msra.mxu0 0.0
  %983 = vmatprep.subr.mxu0 0.0
  %984 = vmatpush1.msra.mxu0 0.0
  %985 = vmatprep.subr.mxu0 0.0
  %986 = vmatpush1.msra.mxu0 0.0
  %987 = vmatprep.subr.mxu0 0.0
  %988 = vmatpush1.msra.mxu0 0.0
  %989 = vmatprep.subr.mxu0 0.0
  %990 = vmatpush1.msra.mxu0 0.0
  %991 = vmatprep.subr.mxu0 0.0
  %992 = vmatpush1.msra.mxu0 0.0
  %993 = vmatprep.subr.mxu0 0.0
  %994 = vmatpush1.msra.mxu0 0.0
  %995 = vmatprep.mubr.f32.mxu0 0.0
  %996 = vmatmul.mubr.f32.gmra.mrb[0].mxu0 %v929
  %v997 = vpop.f32.mrb[0].mxu0
  %v998 = vadd.f32 0.0, %v997
  %v999 = vpop.f32.mrb[0].mxu0
  %1000 = vdwg.mxu0
  %1001 = vrot.lane.b32.xlu0 %v132, 96
  %v1002 = vpop.permute.xlu0 %1001
  %v1005 = vsel %vm760, %v838, 0
  %1007 = vmatprep.subr.mxu0 0.0
  %1008 = vmatpush1.msra.mxu0 %v1002
  %1009 = vmatprep.subr.mxu0 0.0
  %1010 = vmatpush1.msra.mxu0 0.0
  %1011 = vmatprep.subr.mxu0 0.0
  %1012 = vmatpush1.msra.mxu0 0.0
  %1013 = vmatprep.subr.mxu0 0.0
  %1014 = vmatpush1.msra.mxu0 0.0
  %1015 = vmatprep.subr.mxu0 0.0
  %1016 = vmatpush1.msra.mxu0 0.0
  %1017 = vmatprep.subr.mxu0 0.0
  %1018 = vmatpush1.msra.mxu0 0.0
  %1019 = vmatprep.subr.mxu0 0.0
  %1020 = vmatpush1.msra.mxu0 0.0
  %1021 = vmatprep.subr.mxu0 0.0
  %1022 = vmatpush1.msra.mxu0 0.0
  %1023 = vmatprep.subr.mxu0 0.0
  %1024 = vmatpush1.msra.mxu0 0.0
  %1025 = vmatprep.subr.mxu0 0.0
  %1026 = vmatpush1.msra.mxu0 0.0
  %1027 = vmatprep.subr.mxu0 0.0
  %1028 = vmatpush1.msra.mxu0 0.0
  %1029 = vmatprep.subr.mxu0 0.0
  %1030 = vmatpush1.msra.mxu0 0.0
  %1031 = vmatprep.subr.mxu0 0.0
  %1032 = vmatpush1.msra.mxu0 0.0
  %1033 = vmatprep.subr.mxu0 0.0
  %1034 = vmatpush1.msra.mxu0 0.0
  %1035 = vmatprep.subr.mxu0 0.0
  %1036 = vmatpush1.msra.mxu0 0.0
  %1037 = vmatprep.subr.mxu0 0.0
  %1038 = vmatpush1.msra.mxu0 0.0
  %1039 = vmatprep.subr.mxu0 0.0
  %1040 = vmatpush1.msra.mxu0 0.0
  %1041 = vmatprep.subr.mxu0 0.0
  %1042 = vmatpush1.msra.mxu0 0.0
  %1043 = vmatprep.subr.mxu0 0.0
  %1044 = vmatpush1.msra.mxu0 0.0
  %1045 = vmatprep.subr.mxu0 0.0
  %1046 = vmatpush1.msra.mxu0 0.0
  %1047 = vmatprep.subr.mxu0 0.0
  %1048 = vmatpush1.msra.mxu0 0.0
  %1049 = vmatprep.subr.mxu0 0.0
  %1050 = vmatpush1.msra.mxu0 0.0
  %1051 = vmatprep.subr.mxu0 0.0
  %1052 = vmatpush1.msra.mxu0 0.0
  %1053 = vmatprep.subr.mxu0 0.0
  %1054 = vmatpush1.msra.mxu0 0.0
  %1055 = vmatprep.subr.mxu0 0.0
  %1056 = vmatpush1.msra.mxu0 0.0
  %1057 = vmatprep.subr.mxu0 0.0
  %1058 = vmatpush1.msra.mxu0 0.0
  %1059 = vmatprep.subr.mxu0 0.0
  %1060 = vmatpush1.msra.mxu0 0.0
  %1061 = vmatprep.subr.mxu0 0.0
  %1062 = vmatpush1.msra.mxu0 0.0
  %1063 = vmatprep.subr.mxu0 0.0
  %1064 = vmatpush1.msra.mxu0 0.0
  %1065 = vmatprep.subr.mxu0 0.0
  %1066 = vmatpush1.msra.mxu0 0.0
  %1067 = vmatprep.subr.mxu0 0.0
  %1068 = vmatpush1.msra.mxu0 0.0
  %1069 = vmatprep.subr.mxu0 0.0
  %1070 = vmatpush1.msra.mxu0 0.0
  %1071 = vmatprep.mubr.f32.mxu0 0.0
  %1072 = vmatmul.mubr.f32.gmra.mrb[0].mxu0 %v1005
  %v1073 = vpop.f32.mrb[0].mxu0
  %v1074 = vadd.f32 0.0, %v1073
  %v1075 = vpop.f32.mrb[0].mxu0
  %1076 = vdwg.mxu0
  %1077 = vrot.lane.b32.xlu0 %v134, 96
  %v1078 = vpop.permute.xlu0 %1077
  %v1081 = vsel %vm760, %v840, 0
  %1083 = vmatprep.subr.mxu0 0.0
  %1084 = vmatpush1.msra.mxu0 %v1078
  %1085 = vmatprep.subr.mxu0 0.0
  %1086 = vmatpush1.msra.mxu0 0.0
  %1087 = vmatprep.subr.mxu0 0.0
  %1088 = vmatpush1.msra.mxu0 0.0
  %1089 = vmatprep.subr.mxu0 0.0
  %1090 = vmatpush1.msra.mxu0 0.0
  %1091 = vmatprep.subr.mxu0 0.0
  %1092 = vmatpush1.msra.mxu0 0.0
  %1093 = vmatprep.subr.mxu0 0.0
  %1094 = vmatpush1.msra.mxu0 0.0
  %1095 = vmatprep.subr.mxu0 0.0
  %1096 = vmatpush1.msra.mxu0 0.0
  %1097 = vmatprep.subr.mxu0 0.0
  %1098 = vmatpush1.msra.mxu0 0.0
  %1099 = vmatprep.subr.mxu0 0.0
  %1100 = vmatpush1.msra.mxu0 0.0
  %1101 = vmatprep.subr.mxu0 0.0
  %1102 = vmatpush1.msra.mxu0 0.0
  %1103 = vmatprep.subr.mxu0 0.0
  %1104 = vmatpush1.msra.mxu0 0.0
  %1105 = vmatprep.subr.mxu0 0.0
  %1106 = vmatpush1.msra.mxu0 0.0
  %1107 = vmatprep.subr.mxu0 0.0
  %1108 = vmatpush1.msra.mxu0 0.0
  %1109 = vmatprep.subr.mxu0 0.0
  %1110 = vmatpush1.msra.mxu0 0.0
  %1111 = vmatprep.subr.mxu0 0.0
  %1112 = vmatpush1.msra.mxu0 0.0
  %1113 = vmatprep.subr.mxu0 0.0
  %1114 = vmatpush1.msra.mxu0 0.0
  %1115 = vmatprep.subr.mxu0 0.0
  %1116 = vmatpush1.msra.mxu0 0.0
  %1117 = vmatprep.subr.mxu0 0.0
  %1118 = vmatpush1.msra.mxu0 0.0
  %1119 = vmatprep.subr.mxu0 0.0
  %1120 = vmatpush1.msra.mxu0 0.0
  %1121 = vmatprep.subr.mxu0 0.0
  %1122 = vmatpush1.msra.mxu0 0.0
  %1123 = vmatprep.subr.mxu0 0.0
  %1124 = vmatpush1.msra.mxu0 0.0
  %1125 = vmatprep.subr.mxu0 0.0
  %1126 = vmatpush1.msra.mxu0 0.0
  %1127 = vmatprep.subr.mxu0 0.0
  %1128 = vmatpush1.msra.mxu0 0.0
  %1129 = vmatprep.subr.mxu0 0.0
  %1130 = vmatpush1.msra.mxu0 0.0
  %1131 = vmatprep.subr.mxu0 0.0
  %1132 = vmatpush1.msra.mxu0 0.0
  %1133 = vmatprep.subr.mxu0 0.0
  %1134 = vmatpush1.msra.mxu0 0.0
  %1135 = vmatprep.subr.mxu0 0.0
  %1136 = vmatpush1.msra.mxu0 0.0
  %1137 = vmatprep.subr.mxu0 0.0
  %1138 = vmatpush1.msra.mxu0 0.0
  %1139 = vmatprep.subr.mxu0 0.0
  %1140 = vmatpush1.msra.mxu0 0.0
  %1141 = vmatprep.subr.mxu0 0.0
  %1142 = vmatpush1.msra.mxu0 0.0
  %1143 = vmatprep.subr.mxu0 0.0
  %1144 = vmatpush1.msra.mxu0 0.0
  %1145 = vmatprep.subr.mxu0 0.0
  %1146 = vmatpush1.msra.mxu0 0.0
  %1147 = vmatprep.mubr.f32.mxu0 0.0
  %1148 = vmatmul.mubr.f32.gmra.mrb[0].mxu0 %v1081
  %v1149 = vpop.f32.mrb[0].mxu0
  %v1150 = vadd.f32 0.0, %v1149
  %v1151 = vpop.f32.mrb[0].mxu0
  %1152 = vdwg.mxu0
  %1153 = vrot.lane.b32.xlu0 %v136, 96
  %v1154 = vpop.permute.xlu0 %1153
  %v1157 = vsel %vm760, %v842, 0
  %1159 = vmatprep.subr.mxu0 0.0
  %1160 = vmatpush1.msra.mxu0 %v1154
  %1161 = vmatprep.subr.mxu0 0.0
  %1162 = vmatpush1.msra.mxu0 0.0
  %1163 = vmatprep.subr.mxu0 0.0
  %1164 = vmatpush1.msra.mxu0 0.0
  %1165 = vmatprep.subr.mxu0 0.0
  %1166 = vmatpush1.msra.mxu0 0.0
  %1167 = vmatprep.subr.mxu0 0.0
  %1168 = vmatpush1.msra.mxu0 0.0
  %1169 = vmatprep.subr.mxu0 0.0
  %1170 = vmatpush1.msra.mxu0 0.0
  %1171 = vmatprep.subr.mxu0 0.0
  %1172 = vmatpush1.msra.mxu0 0.0
  %1173 = vmatprep.subr.mxu0 0.0
  %1174 = vmatpush1.msra.mxu0 0.0
  %1175 = vmatprep.subr.mxu0 0.0
  %1176 = vmatpush1.msra.mxu0 0.0
  %1177 = vmatprep.subr.mxu0 0.0
  %1178 = vmatpush1.msra.mxu0 0.0
  %1179 = vmatprep.subr.mxu0 0.0
  %1180 = vmatpush1.msra.mxu0 0.0
  %1181 = vmatprep.subr.mxu0 0.0
  %1182 = vmatpush1.msra.mxu0 0.0
  %1183 = vmatprep.subr.mxu0 0.0
  %1184 = vmatpush1.msra.mxu0 0.0
  %1185 = vmatprep.subr.mxu0 0.0
  %1186 = vmatpush1.msra.mxu0 0.0
  %1187 = vmatprep.subr.mxu0 0.0
  %1188 = vmatpush1.msra.mxu0 0.0
  %1189 = vmatprep.subr.mxu0 0.0
  %1190 = vmatpush1.msra.mxu0 0.0
  %1191 = vmatprep.subr.mxu0 0.0
  %1192 = vmatpush1.msra.mxu0 0.0
  %1193 = vmatprep.subr.mxu0 0.0
  %1194 = vmatpush1.msra.mxu0 0.0
  %1195 = vmatprep.subr.mxu0 0.0
  %1196 = vmatpush1.msra.mxu0 0.0
  %1197 = vmatprep.subr.mxu0 0.0
  %1198 = vmatpush1.msra.mxu0 0.0
  %1199 = vmatprep.subr.mxu0 0.0
  %1200 = vmatpush1.msra.mxu0 0.0
  %1201 = vmatprep.subr.mxu0 0.0
  %1202 = vmatpush1.msra.mxu0 0.0
  %1203 = vmatprep.subr.mxu0 0.0
  %1204 = vmatpush1.msra.mxu0 0.0
  %1205 = vmatprep.subr.mxu0 0.0
  %1206 = vmatpush1.msra.mxu0 0.0
  %1207 = vmatprep.subr.mxu0 0.0
  %1208 = vmatpush1.msra.mxu0 0.0
  %1209 = vmatprep.subr.mxu0 0.0
  %1210 = vmatpush1.msra.mxu0 0.0
  %1211 = vmatprep.subr.mxu0 0.0
  %1212 = vmatpush1.msra.mxu0 0.0
  %1213 = vmatprep.subr.mxu0 0.0
  %1214 = vmatpush1.msra.mxu0 0.0
  %1215 = vmatprep.subr.mxu0 0.0
  %1216 = vmatpush1.msra.mxu0 0.0
  %1217 = vmatprep.subr.mxu0 0.0
  %1218 = vmatpush1.msra.mxu0 0.0
  %1219 = vmatprep.subr.mxu0 0.0
  %1220 = vmatpush1.msra.mxu0 0.0
  %1221 = vmatprep.subr.mxu0 0.0
  %1222 = vmatpush1.msra.mxu0 0.0
  %1223 = vmatprep.mubr.f32.mxu0 0.0
  %1224 = vmatmul.mubr.f32.gmra.mrb[0].mxu0 %v1157
  %v1225 = vpop.f32.mrb[0].mxu0
  %v1226 = vadd.f32 0.0, %v1225
  %v1227 = vpop.f32.mrb[0].mxu0
  %1228 = vdwg.mxu0
  %1229 = vrot.lane.b32.xlu0 %v138, 96
  %v1230 = vpop.permute.xlu0 %1229
  %v1233 = vsel %vm760, %v844, 0
  %1235 = vmatprep.subr.mxu0 0.0
  %1236 = vmatpush1.msra.mxu0 %v1230
  %1237 = vmatprep.subr.mxu0 0.0
  %1238 = vmatpush1.msra.mxu0 0.0
  %1239 = vmatprep.subr.mxu0 0.0
  %1240 = vmatpush1.msra.mxu0 0.0
  %1241 = vmatprep.subr.mxu0 0.0
  %1242 = vmatpush1.msra.mxu0 0.0
  %1243 = vmatprep.subr.mxu0 0.0
  %1244 = vmatpush1.msra.mxu0 0.0
  %1245 = vmatprep.subr.mxu0 0.0
  %1246 = vmatpush1.msra.mxu0 0.0
  %1247 = vmatprep.subr.mxu0 0.0
  %1248 = vmatpush1.msra.mxu0 0.0
  %1249 = vmatprep.subr.mxu0 0.0
  %1250 = vmatpush1.msra.mxu0 0.0
  %1251 = vmatprep.subr.mxu0 0.0
  %1252 = vmatpush1.msra.mxu0 0.0
  %1253 = vmatprep.subr.mxu0 0.0
  %1254 = vmatpush1.msra.mxu0 0.0
  %1255 = vmatprep.subr.mxu0 0.0
  %1256 = vmatpush1.msra.mxu0 0.0
  %1257 = vmatprep.subr.mxu0 0.0
  %1258 = vmatpush1.msra.mxu0 0.0
  %1259 = vmatprep.subr.mxu0 0.0
  %1260 = vmatpush1.msra.mxu0 0.0
  %1261 = vmatprep.subr.mxu0 0.0
  %1262 = vmatpush1.msra.mxu0 0.0
  %1263 = vmatprep.subr.mxu0 0.0
  %1264 = vmatpush1.msra.mxu0 0.0
  %1265 = vmatprep.subr.mxu0 0.0
  %1266 = vmatpush1.msra.mxu0 0.0
  %1267 = vmatprep.subr.mxu0 0.0
  %1268 = vmatpush1.msra.mxu0 0.0
  %1269 = vmatprep.subr.mxu0 0.0
  %1270 = vmatpush1.msra.mxu0 0.0
  %1271 = vmatprep.subr.mxu0 0.0
  %1272 = vmatpush1.msra.mxu0 0.0
  %1273 = vmatprep.subr.mxu0 0.0
  %1274 = vmatpush1.msra.mxu0 0.0
  %1275 = vmatprep.subr.mxu0 0.0
  %1276 = vmatpush1.msra.mxu0 0.0
  %1277 = vmatprep.subr.mxu0 0.0
  %1278 = vmatpush1.msra.mxu0 0.0
  %1279 = vmatprep.subr.mxu0 0.0
  %1280 = vmatpush1.msra.mxu0 0.0
  %1281 = vmatprep.subr.mxu0 0.0
  %1282 = vmatpush1.msra.mxu0 0.0
  %1283 = vmatprep.subr.mxu0 0.0
  %1284 = vmatpush1.msra.mxu0 0.0
  %1285 = vmatprep.subr.mxu0 0.0
  %1286 = vmatpush1.msra.mxu0 0.0
  %1287 = vmatprep.subr.mxu0 0.0
  %1288 = vmatpush1.msra.mxu0 0.0
  %1289 = vmatprep.subr.mxu0 0.0
  %1290 = vmatpush1.msra.mxu0 0.0
  %1291 = vmatprep.subr.mxu0 0.0
  %1292 = vmatpush1.msra.mxu0 0.0
  %1293 = vmatprep.subr.mxu0 0.0
  %1294 = vmatpush1.msra.mxu0 0.0
  %1295 = vmatprep.subr.mxu0 0.0
  %1296 = vmatpush1.msra.mxu0 0.0
  %1297 = vmatprep.subr.mxu0 0.0
  %1298 = vmatpush1.msra.mxu0 0.0
  %1299 = vmatprep.mubr.f32.mxu0 0.0
  %1300 = vmatmul.mubr.f32.gmra.mrb[0].mxu0 %v1233
  %v1301 = vpop.f32.mrb[0].mxu0
  %v1302 = vadd.f32 0.0, %v1301
  %v1303 = vpop.f32.mrb[0].mxu0
  %1304 = vdwg.mxu0
  %1305 = vrot.lane.b32.xlu0 %v140, 96
  %v1306 = vpop.permute.xlu0 %1305
  %v1309 = vsel %vm760, %v846, 0
  %1311 = vmatprep.subr.mxu0 0.0
  %1312 = vmatpush1.msra.mxu0 %v1306
  %1313 = vmatprep.subr.mxu0 0.0
  %1314 = vmatpush1.msra.mxu0 0.0
  %1315 = vmatprep.subr.mxu0 0.0
  %1316 = vmatpush1.msra.mxu0 0.0
  %1317 = vmatprep.subr.mxu0 0.0
  %1318 = vmatpush1.msra.mxu0 0.0
  %1319 = vmatprep.subr.mxu0 0.0
  %1320 = vmatpush1.msra.mxu0 0.0
  %1321 = vmatprep.subr.mxu0 0.0
  %1322 = vmatpush1.msra.mxu0 0.0
  %1323 = vmatprep.subr.mxu0 0.0
  %1324 = vmatpush1.msra.mxu0 0.0
  %1325 = vmatprep.subr.mxu0 0.0
  %1326 = vmatpush1.msra.mxu0 0.0
  %1327 = vmatprep.subr.mxu0 0.0
  %1328 = vmatpush1.msra.mxu0 0.0
  %1329 = vmatprep.subr.mxu0 0.0
  %1330 = vmatpush1.msra.mxu0 0.0
  %1331 = vmatprep.subr.mxu0 0.0
  %1332 = vmatpush1.msra.mxu0 0.0
  %1333 = vmatprep.subr.mxu0 0.0
  %1334 = vmatpush1.msra.mxu0 0.0
  %1335 = vmatprep.subr.mxu0 0.0
  %1336 = vmatpush1.msra.mxu0 0.0
  %1337 = vmatprep.subr.mxu0 0.0
  %1338 = vmatpush1.msra.mxu0 0.0
  %1339 = vmatprep.subr.mxu0 0.0
  %1340 = vmatpush1.msra.mxu0 0.0
  %1341 = vmatprep.subr.mxu0 0.0
  %1342 = vmatpush1.msra.mxu0 0.0
  %1343 = vmatprep.subr.mxu0 0.0
  %1344 = vmatpush1.msra.mxu0 0.0
  %1345 = vmatprep.subr.mxu0 0.0
  %1346 = vmatpush1.msra.mxu0 0.0
  %1347 = vmatprep.subr.mxu0 0.0
  %1348 = vmatpush1.msra.mxu0 0.0
  %1349 = vmatprep.subr.mxu0 0.0
  %1350 = vmatpush1.msra.mxu0 0.0
  %1351 = vmatprep.subr.mxu0 0.0
  %1352 = vmatpush1.msra.mxu0 0.0
  %1353 = vmatprep.subr.mxu0 0.0
  %1354 = vmatpush1.msra.mxu0 0.0
  %1355 = vmatprep.subr.mxu0 0.0
  %1356 = vmatpush1.msra.mxu0 0.0
  %1357 = vmatprep.subr.mxu0 0.0
  %1358 = vmatpush1.msra.mxu0 0.0
  %1359 = vmatprep.subr.mxu0 0.0
  %1360 = vmatpush1.msra.mxu0 0.0
  %1361 = vmatprep.subr.mxu0 0.0
  %1362 = vmatpush1.msra.mxu0 0.0
  %1363 = vmatprep.subr.mxu0 0.0
  %1364 = vmatpush1.msra.mxu0 0.0
  %1365 = vmatprep.subr.mxu0 0.0
  %1366 = vmatpush1.msra.mxu0 0.0
  %1367 = vmatprep.subr.mxu0 0.0
  %1368 = vmatpush1.msra.mxu0 0.0
  %1369 = vmatprep.subr.mxu0 0.0
  %1370 = vmatpush1.msra.mxu0 0.0
  %1371 = vmatprep.subr.mxu0 0.0
  %1372 = vmatpush1.msra.mxu0 0.0
  %1373 = vmatprep.subr.mxu0 0.0
  %1374 = vmatpush1.msra.mxu0 0.0
  %1375 = vmatprep.mubr.f32.mxu0 0.0
  %1376 = vmatmul.mubr.f32.gmra.mrb[0].mxu0 %v1309
  %v1377 = vpop.f32.mrb[0].mxu0
  %v1378 = vadd.f32 0.0, %v1377
  %v1379 = vpop.f32.mrb[0].mxu0
  %1380 = vdwg.mxu0
  %1381 = vrot.lane.b32.xlu0 %v142, 96
  %v1382 = vpop.permute.xlu0 %1381
  %v1385 = vsel %vm760, %v848, 0
  %1387 = vmatprep.subr.mxu0 0.0
  %1388 = vmatpush1.msra.mxu0 %v1382
  %1389 = vmatprep.subr.mxu0 0.0
  %1390 = vmatpush1.msra.mxu0 0.0
  %1391 = vmatprep.subr.mxu0 0.0
  %1392 = vmatpush1.msra.mxu0 0.0
  %1393 = vmatprep.subr.mxu0 0.0
  %1394 = vmatpush1.msra.mxu0 0.0
  %1395 = vmatprep.subr.mxu0 0.0
  %1396 = vmatpush1.msra.mxu0 0.0
  %1397 = vmatprep.subr.mxu0 0.0
  %1398 = vmatpush1.msra.mxu0 0.0
  %1399 = vmatprep.subr.mxu0 0.0
  %1400 = vmatpush1.msra.mxu0 0.0
  %1401 = vmatprep.subr.mxu0 0.0
  %1402 = vmatpush1.msra.mxu0 0.0
  %1403 = vmatprep.subr.mxu0 0.0
  %1404 = vmatpush1.msra.mxu0 0.0
  %1405 = vmatprep.subr.mxu0 0.0
  %1406 = vmatpush1.msra.mxu0 0.0
  %1407 = vmatprep.subr.mxu0 0.0
  %1408 = vmatpush1.msra.mxu0 0.0
  %1409 = vmatprep.subr.mxu0 0.0
  %1410 = vmatpush1.msra.mxu0 0.0
  %1411 = vmatprep.subr.mxu0 0.0
  %1412 = vmatpush1.msra.mxu0 0.0
  %1413 = vmatprep.subr.mxu0 0.0
  %1414 = vmatpush1.msra.mxu0 0.0
  %1415 = vmatprep.subr.mxu0 0.0
  %1416 = vmatpush1.msra.mxu0 0.0
  %1417 = vmatprep.subr.mxu0 0.0
  %1418 = vmatpush1.msra.mxu0 0.0
  %1419 = vmatprep.subr.mxu0 0.0
  %1420 = vmatpush1.msra.mxu0 0.0
  %1421 = vmatprep.subr.mxu0 0.0
  %1422 = vmatpush1.msra.mxu0 0.0
  %1423 = vmatprep.subr.mxu0 0.0
  %1424 = vmatpush1.msra.mxu0 0.0
  %1425 = vmatprep.subr.mxu0 0.0
  %1426 = vmatpush1.msra.mxu0 0.0
  %1427 = vmatprep.subr.mxu0 0.0
  %1428 = vmatpush1.msra.mxu0 0.0
  %1429 = vmatprep.subr.mxu0 0.0
  %1430 = vmatpush1.msra.mxu0 0.0
  %1431 = vmatprep.subr.mxu0 0.0
  %1432 = vmatpush1.msra.mxu0 0.0
  %1433 = vmatprep.subr.mxu0 0.0
  %1434 = vmatpush1.msra.mxu0 0.0
  %1435 = vmatprep.subr.mxu0 0.0
  %1436 = vmatpush1.msra.mxu0 0.0
  %1437 = vmatprep.subr.mxu0 0.0
  %1438 = vmatpush1.msra.mxu0 0.0
  %1439 = vmatprep.subr.mxu0 0.0
  %1440 = vmatpush1.msra.mxu0 0.0
  %1441 = vmatprep.subr.mxu0 0.0
  %1442 = vmatpush1.msra.mxu0 0.0
  %1443 = vmatprep.subr.mxu0 0.0
  %1444 = vmatpush1.msra.mxu0 0.0
  %1445 = vmatprep.subr.mxu0 0.0
  %1446 = vmatpush1.msra.mxu0 0.0
  %1447 = vmatprep.subr.mxu0 0.0
  %1448 = vmatpush1.msra.mxu0 0.0
  %1449 = vmatprep.subr.mxu0 0.0
  %1450 = vmatpush1.msra.mxu0 0.0
  %1451 = vmatprep.mubr.f32.mxu0 0.0
  %1452 = vmatmul.mubr.f32.gmra.mrb[0].mxu0 %v1385
  %v1453 = vpop.f32.mrb[0].mxu0
  %v1454 = vadd.f32 0.0, %v1453
  %v1455 = vpop.f32.mrb[0].mxu0
  %1456 = vdwg.mxu0
  %1459 = vrot.lane.b32.xlu0 %v1074, 4
  %v1460 = vpop.permute.xlu0 %1459
  %1461 = vrot.lane.b32.xlu0 %v1150, 4
  %v1462 = vpop.permute.xlu0 %1461
  %1467 = vrot.lane.b32.xlu0 %v1226, 8
  %v1468 = vpop.permute.xlu0 %1467
  %1469 = vrot.lane.b32.xlu0 %v1302, 8
  %v1470 = vpop.permute.xlu0 %1469
  %1475 = vrot.lane.b32.xlu0 %v1378, 12
  %v1476 = vpop.permute.xlu0 %1475
  %1477 = vrot.lane.b32.xlu0 %v1454, 12
  %v1478 = vpop.permute.xlu0 %1477
  %v1481 = vsel %vm145, %v922, %v1460
  %v1482 = vsel %vm145, %v998, %v1462
  %v1483 = vsel %vm760, %v1481, %v1468
  %v1484 = vsel %vm760, %v1482, %v1470
  %vm1485 = vcmask 97280
  %v1486 = vsel %vm1485, %v1483, %v1476
  %v1487 = vsel %vm1485, %v1484, %v1478
  %v1488 = vld [vmem:[%s3] sm:$0xff]
  %v1489 = vld [vmem:[%s3 + $0x8] sm:$0xff]
  %v1490 = vlaneseq
  %v1491 = vshrl.u32 %v1490, 7
  %v1492 = vsub.s32 0, %v1491
  %v1493 = vrot.slane %v37, %v1492
  %v1495 = vsel %vm47, %v1486, 0
  %v1498 = vsel %vm47, %v1487, 0
  %1500 = vmatprep.subr.mxu0 0.0
  %1501 = vmatpush1.msra.mxu0 %v1488
  %1502 = vmatprep.subr.mxu0 0.0
  %1503 = vmatpush1.msra.mxu0 %v1489
  %1504 = vmatprep.subr.mxu0 0.0
  %1505 = vmatpush1.msra.mxu0 0.0
  %1506 = vmatprep.subr.mxu0 0.0
  %1507 = vmatpush1.msra.mxu0 0.0
  %1508 = vmatprep.subr.mxu0 0.0
  %1509 = vmatpush1.msra.mxu0 0.0
  %1510 = vmatprep.subr.mxu0 0.0
  %1511 = vmatpush1.msra.mxu0 0.0
  %1512 = vmatprep.subr.mxu0 0.0
  %1513 = vmatpush1.msra.mxu0 0.0
  %1514 = vmatprep.subr.mxu0 0.0
  %1515 = vmatpush1.msra.mxu0 0.0
  %1516 = vmatprep.subr.mxu0 0.0
  %1517 = vmatpush1.msra.mxu0 0.0
  %1518 = vmatprep.subr.mxu0 0.0
  %1519 = vmatpush1.msra.mxu0 0.0
  %1520 = vmatprep.subr.mxu0 0.0
  %1521 = vmatpush1.msra.mxu0 0.0
  %1522 = vmatprep.subr.mxu0 0.0
  %1523 = vmatpush1.msra.mxu0 0.0
  %1524 = vmatprep.subr.mxu0 0.0
  %1525 = vmatpush1.msra.mxu0 0.0
  %1526 = vmatprep.subr.mxu0 0.0
  %1527 = vmatpush1.msra.mxu0 0.0
  %1528 = vmatprep.subr.mxu0 0.0
  %1529 = vmatpush1.msra.mxu0 0.0
  %1530 = vmatprep.subr.mxu0 0.0
  %1531 = vmatpush1.msra.mxu0 0.0
  %1532 = vmatprep.subr.mxu0 0.0
  %1533 = vmatpush1.msra.mxu0 0.0
  %1534 = vmatprep.subr.mxu0 0.0
  %1535 = vmatpush1.msra.mxu0 0.0
  %1536 = vmatprep.subr.mxu0 0.0
  %1537 = vmatpush1.msra.mxu0 0.0
  %1538 = vmatprep.subr.mxu0 0.0
  %1539 = vmatpush1.msra.mxu0 0.0
  %1540 = vmatprep.subr.mxu0 0.0
  %1541 = vmatpush1.msra.mxu0 0.0
  %1542 = vmatprep.subr.mxu0 0.0
  %1543 = vmatpush1.msra.mxu0 0.0
  %1544 = vmatprep.subr.mxu0 0.0
  %1545 = vmatpush1.msra.mxu0 0.0
  %1546 = vmatprep.subr.mxu0 0.0
  %1547 = vmatpush1.msra.mxu0 0.0
  %1548 = vmatprep.subr.mxu0 0.0
  %1549 = vmatpush1.msra.mxu0 0.0
  %1550 = vmatprep.subr.mxu0 0.0
  %1551 = vmatpush1.msra.mxu0 0.0
  %1552 = vmatprep.subr.mxu0 0.0
  %1553 = vmatpush1.msra.mxu0 0.0
  %1554 = vmatprep.subr.mxu0 0.0
  %1555 = vmatpush1.msra.mxu0 0.0
  %1556 = vmatprep.subr.mxu0 0.0
  %1557 = vmatpush1.msra.mxu0 0.0
  %1558 = vmatprep.subr.mxu0 0.0
  %1559 = vmatpush1.msra.mxu0 0.0
  %1560 = vmatprep.subr.mxu0 0.0
  %1561 = vmatpush1.msra.mxu0 0.0
  %1562 = vmatprep.subr.mxu0 0.0
  %1563 = vmatpush1.msra.mxu0 0.0
  %1564 = vmatprep.mubr.f32.mxu0 0.0
  %1565 = vmatmul.mubr.f32.gmra.mrb[0].mxu0 %v1495
  %v1566 = vpop.f32.mrb[0].mxu0
  %v1567 = vadd.f32 %v1493, %v1566
  %v1568 = vpop.f32.mrb[0].mxu0
  %1569 = vmatprep.mubr.f32.mxu0 0.0
  %1570 = vmatmul.mubr.f32.gmra.mrb[0].mxu0 %v1498
  %v1571 = vpop.f32.mrb[0].mxu0
  %v1572 = vadd.f32 %v1493, %v1571
  %v1573 = vpop.f32.mrb[0].mxu0
  %1574 = vdwg.mxu0
  %v1575 = vadd.f32 %v35, %v1567
  %v1576 = vadd.f32 %v36, %v1572
  %v1577 = vsel %vm47, %v1575, 0.0
  %1578 = vadd.xlane.f32.xlu0 %v1577
  %v1579 = vpop.xlane.xlu0 %1578
  %v1580 = vsel %vm47, %v1576, 0.0
  %1581 = vadd.xlane.f32.xlu0 %v1580
  %v1582 = vpop.xlane.xlu0 %1581
  %v1583 = vrcp.pop 16.0
  %v1584 = vmul.f32 %v1579, %v1583
  %v1585 = vmul.f32 %v1582, %v1583
  %v1586 = vsub.f32 %v1575, %v1584
  %v1587 = vsub.f32 %v1576, %v1585
  %v1588 = vmul.f32 %v1586, %v1586
  %v1589 = vmul.f32 %v1587, %v1587
  %v1590 = vsel %vm47, %v1588, 0.0
  %1591 = vadd.xlane.f32.xlu0 %v1590
  %v1592 = vpop.xlane.xlu0 %1591
  %v1593 = vsel %vm47, %v1589, 0.0
  %1594 = vadd.xlane.f32.xlu0 %v1593
  %v1595 = vpop.xlane.xlu0 %1594
  %v1596 = vmul.f32 %v1592, %v1583
  %v1597 = vmul.f32 %v1595, %v1583
  %v1598 = vadd.f32 %v1596, 1e-05
  %v1599 = vadd.f32 %v1597, 1e-05
  %v1600 = vrsqrt.pop %v1598
  %v1601 = vrsqrt.pop %v1599
  %v1602 = vmul.f32 %v1586, %v1600
  %v1603 = vmul.f32 %v1587, %v1601
  %v1604 = vlaneseq
  %v1605 = vshrl.u32 %v1604, 7
  %v1606 = vsub.s32 1, %v1605
  %v1607 = vrot.slane %v37, %v1606
  %v1608 = vmul.f32 %v1602, %v1607
  %v1609 = vmul.f32 %v1603, %v1607
  %v1610 = vlaneseq
  %v1611 = vshrl.u32 %v1610, 7
  %v1612 = vsub.s32 2, %v1611
  %v1613 = vrot.slane %v37, %v1612
  %v1614 = vadd.f32 %v1608, %v1613
  %v1615 = vadd.f32 %v1609, %v1613
  %v1616 = vld [vmem:[%s4] sm:$0xff]
  %v1617 = vld [vmem:[%s4 + $0x8] sm:$0xff]
  %v1618 = vld [vmem:[%s5] sm:$0x1]
  %v1620 = vlaneseq
  %v1621 = vshrl.u32 %v1620, 7
  %v1622 = vsub.s32 0, %v1621
  %v1623 = vrot.slane %v1618, %v1622
  %v1626 = vsel %vm47, %v1614, 0
  %v1629 = vsel %vm47, %v1615, 0
  %1631 = vmatprep.subr.mxu0 0.0
  %1632 = vmatpush1.msra.mxu0 %v1616
  %1633 = vmatprep.subr.mxu0 0.0
  %1634 = vmatpush1.msra.mxu0 %v1617
  %1635 = vmatprep.subr.mxu0 0.0
  %1636 = vmatpush1.msra.mxu0 0.0
  %1637 = vmatprep.subr.mxu0 0.0
  %1638 = vmatpush1.msra.mxu0 0.0
  %1639 = vmatprep.subr.mxu0 0.0
  %1640 = vmatpush1.msra.mxu0 0.0
  %1641 = vmatprep.subr.mxu0 0.0
  %1642 = vmatpush1.msra.mxu0 0.0
  %1643 = vmatprep.subr.mxu0 0.0
  %1644 = vmatpush1.msra.mxu0 0.0
  %1645 = vmatprep.subr.mxu0 0.0
  %1646 = vmatpush1.msra.mxu0 0.0
  %1647 = vmatprep.subr.mxu0 0.0
  %1648 = vmatpush1.msra.mxu0 0.0
  %1649 = vmatprep.subr.mxu0 0.0
  %1650 = vmatpush1.msra.mxu0 0.0
  %1651 = vmatprep.subr.mxu0 0.0
  %1652 = vmatpush1.msra.mxu0 0.0
  %1653 = vmatprep.subr.mxu0 0.0
  %1654 = vmatpush1.msra.mxu0 0.0
  %1655 = vmatprep.subr.mxu0 0.0
  %1656 = vmatpush1.msra.mxu0 0.0
  %1657 = vmatprep.subr.mxu0 0.0
  %1658 = vmatpush1.msra.mxu0 0.0
  %1659 = vmatprep.subr.mxu0 0.0
  %1660 = vmatpush1.msra.mxu0 0.0
  %1661 = vmatprep.subr.mxu0 0.0
  %1662 = vmatpush1.msra.mxu0 0.0
  %1663 = vmatprep.subr.mxu0 0.0
  %1664 = vmatpush1.msra.mxu0 0.0
  %1665 = vmatprep.subr.mxu0 0.0
  %1666 = vmatpush1.msra.mxu0 0.0
  %1667 = vmatprep.subr.mxu0 0.0
  %1668 = vmatpush1.msra.mxu0 0.0
  %1669 = vmatprep.subr.mxu0 0.0
  %1670 = vmatpush1.msra.mxu0 0.0
  %1671 = vmatprep.subr.mxu0 0.0
  %1672 = vmatpush1.msra.mxu0 0.0
  %1673 = vmatprep.subr.mxu0 0.0
  %1674 = vmatpush1.msra.mxu0 0.0
  %1675 = vmatprep.subr.mxu0 0.0
  %1676 = vmatpush1.msra.mxu0 0.0
  %1677 = vmatprep.subr.mxu0 0.0
  %1678 = vmatpush1.msra.mxu0 0.0
  %1679 = vmatprep.subr.mxu0 0.0
  %1680 = vmatpush1.msra.mxu0 0.0
  %1681 = vmatprep.subr.mxu0 0.0
  %1682 = vmatpush1.msra.mxu0 0.0
  %1683 = vmatprep.subr.mxu0 0.0
  %1684 = vmatpush1.msra.mxu0 0.0
  %1685 = vmatprep.subr.mxu0 0.0
  %1686 = vmatpush1.msra.mxu0 0.0
  %1687 = vmatprep.subr.mxu0 0.0
  %1688 = vmatpush1.msra.mxu0 0.0
  %1689 = vmatprep.subr.mxu0 0.0
  %1690 = vmatpush1.msra.mxu0 0.0
  %1691 = vmatprep.subr.mxu0 0.0
  %1692 = vmatpush1.msra.mxu0 0.0
  %1693 = vmatprep.subr.mxu0 0.0
  %1694 = vmatpush1.msra.mxu0 0.0
  %1695 = vmatprep.mubr.f32.mxu0 0.0
  %1696 = vmatmul.mubr.f32.gmra.mrb[0].mxu0 %v1626
  %v1697 = vpop.f32.mrb[0].mxu0
  %v1698 = vadd.f32 %v1623, %v1697
  %v1699 = vpop.f32.mrb[0].mxu0
  %1700 = vmatprep.mubr.f32.mxu0 0.0
  %1701 = vmatmul.mubr.f32.gmra.mrb[0].mxu0 %v1629
  %v1702 = vpop.f32.mrb[0].mxu0
  %v1703 = vadd.f32 %v1623, %v1702
  %v1704 = vpop.f32.mrb[0].mxu0
  %1705 = vdwg.mxu0
  %v1706 = vmax.f32 %v1698, 0.0
  %v1707 = vmax.f32 %v1703, 0.0
  %v1708 = vld [vmem:[%s6] sm:$0xff]
  %v1709 = vld [vmem:[%s6 + $0x8] sm:$0xff]
  %v1710 = vld [vmem:[%s6 + $0x10] sm:$0xff]
  %v1711 = vld [vmem:[%s6 + $0x18] sm:$0xff]
  %v1712 = vlaneseq
  %v1713 = vshrl.u32 %v1712, 7
  %v1714 = vsub.s32 3, %v1713
  %v1715 = vrot.slane %v37, %v1714
  %vm1716 = vcmask 261120
  %v1718 = vsel %vm1716, %v1706, 0
  %v1721 = vsel %vm1716, %v1707, 0
  %1723 = vmatprep.subr.mxu0 0.0
  %1724 = vmatpush1.msra.mxu0 %v1708
  %1725 = vmatprep.subr.mxu0 0.0
  %1726 = vmatpush1.msra.mxu0 %v1709
  %1727 = vmatprep.subr.mxu0 0.0
  %1728 = vmatpush1.msra.mxu0 %v1710
  %1729 = vmatprep.subr.mxu0 0.0
  %1730 = vmatpush1.msra.mxu0 %v1711
  %1731 = vmatprep.subr.mxu0 0.0
  %1732 = vmatpush1.msra.mxu0 0.0
  %1733 = vmatprep.subr.mxu0 0.0
  %1734 = vmatpush1.msra.mxu0 0.0
  %1735 = vmatprep.subr.mxu0 0.0
  %1736 = vmatpush1.msra.mxu0 0.0
  %1737 = vmatprep.subr.mxu0 0.0
  %1738 = vmatpush1.msra.mxu0 0.0
  %1739 = vmatprep.subr.mxu0 0.0
  %1740 = vmatpush1.msra.mxu0 0.0
  %1741 = vmatprep.subr.mxu0 0.0
  %1742 = vmatpush1.msra.mxu0 0.0
  %1743 = vmatprep.subr.mxu0 0.0
  %1744 = vmatpush1.msra.mxu0 0.0
  %1745 = vmatprep.subr.mxu0 0.0
  %1746 = vmatpush1.msra.mxu0 0.0
  %1747 = vmatprep.subr.mxu0 0.0
  %1748 = vmatpush1.msra.mxu0 0.0
  %1749 = vmatprep.subr.mxu0 0.0
  %1750 = vmatpush1.msra.mxu0 0.0
  %1751 = vmatprep.subr.mxu0 0.0
  %1752 = vmatpush1.msra.mxu0 0.0
  %1753 = vmatprep.subr.mxu0 0.0
  %1754 = vmatpush1.msra.mxu0 0.0
  %1755 = vmatprep.subr.mxu0 0.0
  %1756 = vmatpush1.msra.mxu0 0.0
  %1757 = vmatprep.subr.mxu0 0.0
  %1758 = vmatpush1.msra.mxu0 0.0
  %1759 = vmatprep.subr.mxu0 0.0
  %1760 = vmatpush1.msra.mxu0 0.0
  %1761 = vmatprep.subr.mxu0 0.0
  %1762 = vmatpush1.msra.mxu0 0.0
  %1763 = vmatprep.subr.mxu0 0.0
  %1764 = vmatpush1.msra.mxu0 0.0
  %1765 = vmatprep.subr.mxu0 0.0
  %1766 = vmatpush1.msra.mxu0 0.0
  %1767 = vmatprep.subr.mxu0 0.0
  %1768 = vmatpush1.msra.mxu0 0.0
  %1769 = vmatprep.subr.mxu0 0.0
  %1770 = vmatpush1.msra.mxu0 0.0
  %1771 = vmatprep.subr.mxu0 0.0
  %1772 = vmatpush1.msra.mxu0 0.0
  %1773 = vmatprep.subr.mxu0 0.0
  %1774 = vmatpush1.msra.mxu0 0.0
  %1775 = vmatprep.subr.mxu0 0.0
  %1776 = vmatpush1.msra.mxu0 0.0
  %1777 = vmatprep.subr.mxu0 0.0
  %1778 = vmatpush1.msra.mxu0 0.0
  %1779 = vmatprep.subr.mxu0 0.0
  %1780 = vmatpush1.msra.mxu0 0.0
  %1781 = vmatprep.subr.mxu0 0.0
  %1782 = vmatpush1.msra.mxu0 0.0
  %1783 = vmatprep.subr.mxu0 0.0
  %1784 = vmatpush1.msra.mxu0 0.0
  %1785 = vmatprep.subr.mxu0 0.0
  %1786 = vmatpush1.msra.mxu0 0.0
  %1787 = vmatprep.mubr.f32.mxu0 0.0
  %1788 = vmatmul.mubr.f32.gmra.mrb[0].mxu0 %v1718
  %v1789 = vpop.f32.mrb[0].mxu0
  %v1790 = vadd.f32 %v1715, %v1789
  %v1791 = vpop.f32.mrb[0].mxu0
  %1792 = vmatprep.mubr.f32.mxu0 0.0
  %1793 = vmatmul.mubr.f32.gmra.mrb[0].mxu0 %v1721
  %v1794 = vpop.f32.mrb[0].mxu0
  %v1795 = vadd.f32 %v1715, %v1794
  %v1796 = vpop.f32.mrb[0].mxu0
  %1797 = vdwg.mxu0
  %v1798 = vadd.f32 %v1614, %v1790
  %v1799 = vadd.f32 %v1615, %v1795
  %v1800 = vsel %vm47, %v1798, 0.0
  %1801 = vadd.xlane.f32.xlu0 %v1800
  %v1802 = vpop.xlane.xlu0 %1801
  %v1803 = vsel %vm47, %v1799, 0.0
  %1804 = vadd.xlane.f32.xlu0 %v1803
  %v1805 = vpop.xlane.xlu0 %1804
  %v1806 = vmul.f32 %v1802, %v1583
  %v1807 = vmul.f32 %v1805, %v1583
  %v1808 = vsub.f32 %v1798, %v1806
  %v1809 = vsub.f32 %v1799, %v1807
  %v1810 = vmul.f32 %v1808, %v1808
  %v1811 = vmul.f32 %v1809, %v1809
  %v1812 = vsel %vm47, %v1810, 0.0
  %1813 = vadd.xlane.f32.xlu0 %v1812
  %v1814 = vpop.xlane.xlu0 %1813
  %v1815 = vsel %vm47, %v1811, 0.0
  %1816 = vadd.xlane.f32.xlu0 %v1815
  %v1817 = vpop.xlane.xlu0 %1816
  %v1818 = vmul.f32 %v1814, %v1583
  %v1819 = vmul.f32 %v1817, %v1583
  %v1820 = vadd.f32 %v1818, 1e-05
  %v1821 = vadd.f32 %v1819, 1e-05
  %v1822 = vrsqrt.pop %v1820
  %v1823 = vrsqrt.pop %v1821
  %v1824 = vmul.f32 %v1808, %v1822
  %v1825 = vmul.f32 %v1809, %v1823
  %v1826 = vlaneseq
  %v1827 = vshrl.u32 %v1826, 7
  %v1828 = vsub.s32 4, %v1827
  %v1829 = vrot.slane %v37, %v1828
  %v1830 = vmul.f32 %v1824, %v1829
  %v1831 = vmul.f32 %v1825, %v1829
  %v1832 = vlaneseq
  %v1833 = vshrl.u32 %v1832, 7
  %v1834 = vsub.s32 5, %v1833
  %v1835 = vrot.slane %v37, %v1834
  %v1836 = vadd.f32 %v1830, %v1835
  %v1837 = vadd.f32 %v1831, %v1835
  %s1838 = scalar_lea.vmem %s7, 8
  %v1839 = vld [vmem:[%s1838] sm:$0x3f]
  %s1840 = scalar_lea.vmem %s1, 16
  %v1841 = vld [vmem:[%s1840] sm:$0xff]
  %v1842 = vld [vmem:[%s1840 + $0x8] sm:$0xff]
  %s1843 = scalar_lea.vmem %s2, 1
  %v1844 = vld [vmem:[%s1843] sm:$0x1]
  %v1846 = vlaneseq
  %v1847 = vshrl.u32 %v1846, 7
  %v1848 = vsub.s32 0, %v1847
  %v1849 = vrot.slane %v1844, %v1848
  %v1852 = vsel %vm47, %v1836, 0
  %v1855 = vsel %vm47, %v1837, 0
  %1857 = vmatprep.subr.mxu0 0.0
  %1858 = vmatpush1.msra.mxu0 %v1841
  %1859 = vmatprep.subr.mxu0 0.0
  %1860 = vmatpush1.msra.mxu0 %v1842
  %1861 = vmatprep.subr.mxu0 0.0
  %1862 = vmatpush1.msra.mxu0 0.0
  %1863 = vmatprep.subr.mxu0 0.0
  %1864 = vmatpush1.msra.mxu0 0.0
  %1865 = vmatprep.subr.mxu0 0.0
  %1866 = vmatpush1.msra.mxu0 0.0
  %1867 = vmatprep.subr.mxu0 0.0
  %1868 = vmatpush1.msra.mxu0 0.0
  %1869 = vmatprep.subr.mxu0 0.0
  %1870 = vmatpush1.msra.mxu0 0.0
  %1871 = vmatprep.subr.mxu0 0.0
  %1872 = vmatpush1.msra.mxu0 0.0
  %1873 = vmatprep.subr.mxu0 0.0
  %1874 = vmatpush1.msra.mxu0 0.0
  %1875 = vmatprep.subr.mxu0 0.0
  %1876 = vmatpush1.msra.mxu0 0.0
  %1877 = vmatprep.subr.mxu0 0.0
  %1878 = vmatpush1.msra.mxu0 0.0
  %1879 = vmatprep.subr.mxu0 0.0
  %1880 = vmatpush1.msra.mxu0 0.0
  %1881 = vmatprep.subr.mxu0 0.0
  %1882 = vmatpush1.msra.mxu0 0.0
  %1883 = vmatprep.subr.mxu0 0.0
  %1884 = vmatpush1.msra.mxu0 0.0
  %1885 = vmatprep.subr.mxu0 0.0
  %1886 = vmatpush1.msra.mxu0 0.0
  %1887 = vmatprep.subr.mxu0 0.0
  %1888 = vmatpush1.msra.mxu0 0.0
  %1889 = vmatprep.subr.mxu0 0.0
  %1890 = vmatpush1.msra.mxu0 0.0
  %1891 = vmatprep.subr.mxu0 0.0
  %1892 = vmatpush1.msra.mxu0 0.0
  %1893 = vmatprep.subr.mxu0 0.0
  %1894 = vmatpush1.msra.mxu0 0.0
  %1895 = vmatprep.subr.mxu0 0.0
  %1896 = vmatpush1.msra.mxu0 0.0
  %1897 = vmatprep.subr.mxu0 0.0
  %1898 = vmatpush1.msra.mxu0 0.0
  %1899 = vmatprep.subr.mxu0 0.0
  %1900 = vmatpush1.msra.mxu0 0.0
  %1901 = vmatprep.subr.mxu0 0.0
  %1902 = vmatpush1.msra.mxu0 0.0
  %1903 = vmatprep.subr.mxu0 0.0
  %1904 = vmatpush1.msra.mxu0 0.0
  %1905 = vmatprep.subr.mxu0 0.0
  %1906 = vmatpush1.msra.mxu0 0.0
  %1907 = vmatprep.subr.mxu0 0.0
  %1908 = vmatpush1.msra.mxu0 0.0
  %1909 = vmatprep.subr.mxu0 0.0
  %1910 = vmatpush1.msra.mxu0 0.0
  %1911 = vmatprep.subr.mxu0 0.0
  %1912 = vmatpush1.msra.mxu0 0.0
  %1913 = vmatprep.subr.mxu0 0.0
  %1914 = vmatpush1.msra.mxu0 0.0
  %1915 = vmatprep.subr.mxu0 0.0
  %1916 = vmatpush1.msra.mxu0 0.0
  %1917 = vmatprep.subr.mxu0 0.0
  %1918 = vmatpush1.msra.mxu0 0.0
  %1919 = vmatprep.subr.mxu0 0.0
  %1920 = vmatpush1.msra.mxu0 0.0
  %1921 = vmatprep.mubr.f32.mxu0 0.0
  %1922 = vmatmul.mubr.f32.gmra.mrb[0].mxu0 %v1852
  %v1923 = vpop.f32.mrb[0].mxu0
  %v1924 = vadd.f32 %v1849, %v1923
  %v1925 = vpop.f32.mrb[0].mxu0
  %1926 = vmatprep.mubr.f32.mxu0 0.0
  %1927 = vmatmul.mubr.f32.gmra.mrb[0].mxu0 %v1855
  %v1928 = vpop.f32.mrb[0].mxu0
  %v1929 = vadd.f32 %v1849, %v1928
  %v1930 = vpop.f32.mrb[0].mxu0
  %1931 = vdwg.mxu0
  %1934 = vrot.lane.b32.xlu0 %v1924, 124
  %v1935 = vpop.permute.xlu0 %1934
  %1936 = vrot.lane.b32.xlu0 %v1929, 124
  %v1937 = vpop.permute.xlu0 %1936
  %1938 = vrot.lane.b32.xlu0 %v1924, 120
  %v1939 = vpop.permute.xlu0 %1938
  %1940 = vrot.lane.b32.xlu0 %v1929, 120
  %v1941 = vpop.permute.xlu0 %1940
  %1942 = vrot.lane.b32.xlu0 %v1924, 116
  %v1943 = vpop.permute.xlu0 %1942
  %1944 = vrot.lane.b32.xlu0 %v1929, 116
  %v1945 = vpop.permute.xlu0 %1944
  %1946 = vrot.lane.b32.xlu0 %v1924, 112
  %v1947 = vpop.permute.xlu0 %1946
  %v1948 = vsel %vm145, %v1924, 0
  %v1950 = vsel %vm145, %v1947, 0
  %1952 = vmatprep.subr.mxu0 0.0
  %1953 = vmatpush1.xpose.msra.mxu0 %v1950
  %1954 = vmatprep.subr.mxu0 0.0
  %1955 = vmatpush1.xpose.msra.mxu0 0.0
  %1956 = vmatprep.subr.mxu0 0.0
  %1957 = vmatpush1.xpose.msra.mxu0 0.0
  %1958 = vmatprep.subr.mxu0 0.0
  %1959 = vmatpush1.xpose.msra.mxu0 0.0
  %1960 = vmatprep.subr.mxu0 0.0
  %1961 = vmatpush1.xpose.msra.mxu0 0.0
  %1962 = vmatprep.subr.mxu0 0.0
  %1963 = vmatpush1.xpose.msra.mxu0 0.0
  %1964 = vmatprep.subr.mxu0 0.0
  %1965 = vmatpush1.xpose.msra.mxu0 0.0
  %1966 = vmatprep.subr.mxu0 0.0
  %1967 = vmatpush1.xpose.msra.mxu0 0.0
  %1968 = vmatprep.subr.mxu0 0.0
  %1969 = vmatpush1.xpose.msra.mxu0 0.0
  %1970 = vmatprep.subr.mxu0 0.0
  %1971 = vmatpush1.xpose.msra.mxu0 0.0
  %1972 = vmatprep.subr.mxu0 0.0
  %1973 = vmatpush1.xpose.msra.mxu0 0.0
  %1974 = vmatprep.subr.mxu0 0.0
  %1975 = vmatpush1.xpose.msra.mxu0 0.0
  %1976 = vmatprep.subr.mxu0 0.0
  %1977 = vmatpush1.xpose.msra.mxu0 0.0
  %1978 = vmatprep.subr.mxu0 0.0
  %1979 = vmatpush1.xpose.msra.mxu0 0.0
  %1980 = vmatprep.subr.mxu0 0.0
  %1981 = vmatpush1.xpose.msra.mxu0 0.0
  %1982 = vmatprep.subr.mxu0 0.0
  %1983 = vmatpush1.xpose.msra.mxu0 0.0
  %1984 = vmatprep.subr.mxu0 0.0
  %1985 = vmatpush1.xpose.msra.mxu0 0.0
  %1986 = vmatprep.subr.mxu0 0.0
  %1987 = vmatpush1.xpose.msra.mxu0 0.0
  %1988 = vmatprep.subr.mxu0 0.0
  %1989 = vmatpush1.xpose.msra.mxu0 0.0
  %1990 = vmatprep.subr.mxu0 0.0
  %1991 = vmatpush1.xpose.msra.mxu0 0.0
  %1992 = vmatprep.subr.mxu0 0.0
  %1993 = vmatpush1.xpose.msra.mxu0 0.0
  %1994 = vmatprep.subr.mxu0 0.0
  %1995 = vmatpush1.xpose.msra.mxu0 0.0
  %1996 = vmatprep.subr.mxu0 0.0
  %1997 = vmatpush1.xpose.msra.mxu0 0.0
  %1998 = vmatprep.subr.mxu0 0.0
  %1999 = vmatpush1.xpose.msra.mxu0 0.0
  %2000 = vmatprep.subr.mxu0 0.0
  %2001 = vmatpush1.xpose.msra.mxu0 0.0
  %2002 = vmatprep.subr.mxu0 0.0
  %2003 = vmatpush1.xpose.msra.mxu0 0.0
  %2004 = vmatprep.subr.mxu0 0.0
  %2005 = vmatpush1.xpose.msra.mxu0 0.0
  %2006 = vmatprep.subr.mxu0 0.0
  %2007 = vmatpush1.xpose.msra.mxu0 0.0
  %2008 = vmatprep.subr.mxu0 0.0
  %2009 = vmatpush1.xpose.msra.mxu0 0.0
  %2010 = vmatprep.subr.mxu0 0.0
  %2011 = vmatpush1.xpose.msra.mxu0 0.0
  %2012 = vmatprep.subr.mxu0 0.0
  %2013 = vmatpush1.xpose.msra.mxu0 0.0
  %2014 = vmatprep.subr.mxu0 0.0
  %2015 = vmatpush1.xpose.msra.mxu0 0.0
  %2016 = vmatprep.mubr.f32.mxu0 0.0
  %2017 = vmatmul.mubr.f32.gmra.mrb[0].mxu0 %v1948
  %v2018 = vpop.f32.mrb[0].mxu0
  %v2019 = vadd.f32 0.0, %v2018
  %v2020 = vpop.f32.mrb[0].mxu0
  %2021 = vdwg.mxu0
  %2022 = vrot.lane.b32.xlu0 %v1929, 112
  %v2023 = vpop.permute.xlu0 %2022
  %v2024 = vsel %vm145, %v1929, 0
  %v2026 = vsel %vm145, %v2023, 0
  %2028 = vmatprep.subr.mxu0 0.0
  %2029 = vmatpush1.xpose.msra.mxu0 %v2026
  %2030 = vmatprep.subr.mxu0 0.0
  %2031 = vmatpush1.xpose.msra.mxu0 0.0
  %2032 = vmatprep.subr.mxu0 0.0
  %2033 = vmatpush1.xpose.msra.mxu0 0.0
  %2034 = vmatprep.subr.mxu0 0.0
  %2035 = vmatpush1.xpose.msra.mxu0 0.0
  %2036 = vmatprep.subr.mxu0 0.0
  %2037 = vmatpush1.xpose.msra.mxu0 0.0
  %2038 = vmatprep.subr.mxu0 0.0
  %2039 = vmatpush1.xpose.msra.mxu0 0.0
  %2040 = vmatprep.subr.mxu0 0.0
  %2041 = vmatpush1.xpose.msra.mxu0 0.0
  %2042 = vmatprep.subr.mxu0 0.0
  %2043 = vmatpush1.xpose.msra.mxu0 0.0
  %2044 = vmatprep.subr.mxu0 0.0
  %2045 = vmatpush1.xpose.msra.mxu0 0.0
  %2046 = vmatprep.subr.mxu0 0.0
  %2047 = vmatpush1.xpose.msra.mxu0 0.0
  %2048 = vmatprep.subr.mxu0 0.0
  %2049 = vmatpush1.xpose.msra.mxu0 0.0
  %2050 = vmatprep.subr.mxu0 0.0
  %2051 = vmatpush1.xpose.msra.mxu0 0.0
  %2052 = vmatprep.subr.mxu0 0.0
  %2053 = vmatpush1.xpose.msra.mxu0 0.0
  %2054 = vmatprep.subr.mxu0 0.0
  %2055 = vmatpush1.xpose.msra.mxu0 0.0
  %2056 = vmatprep.subr.mxu0 0.0
  %2057 = vmatpush1.xpose.msra.mxu0 0.0
  %2058 = vmatprep.subr.mxu0 0.0
  %2059 = vmatpush1.xpose.msra.mxu0 0.0
  %2060 = vmatprep.subr.mxu0 0.0
  %2061 = vmatpush1.xpose.msra.mxu0 0.0
  %2062 = vmatprep.subr.mxu0 0.0
  %2063 = vmatpush1.xpose.msra.mxu0 0.0
  %2064 = vmatprep.subr.mxu0 0.0
  %2065 = vmatpush1.xpose.msra.mxu0 0.0
  %2066 = vmatprep.subr.mxu0 0.0
  %2067 = vmatpush1.xpose.msra.mxu0 0.0
  %2068 = vmatprep.subr.mxu0 0.0
  %2069 = vmatpush1.xpose.msra.mxu0 0.0
  %2070 = vmatprep.subr.mxu0 0.0
  %2071 = vmatpush1.xpose.msra.mxu0 0.0
  %2072 = vmatprep.subr.mxu0 0.0
  %2073 = vmatpush1.xpose.msra.mxu0 0.0
  %2074 = vmatprep.subr.mxu0 0.0
  %2075 = vmatpush1.xpose.msra.mxu0 0.0
  %2076 = vmatprep.subr.mxu0 0.0
  %2077 = vmatpush1.xpose.msra.mxu0 0.0
  %2078 = vmatprep.subr.mxu0 0.0
  %2079 = vmatpush1.xpose.msra.mxu0 0.0
  %2080 = vmatprep.subr.mxu0 0.0
  %2081 = vmatpush1.xpose.msra.mxu0 0.0
  %2082 = vmatprep.subr.mxu0 0.0
  %2083 = vmatpush1.xpose.msra.mxu0 0.0
  %2084 = vmatprep.subr.mxu0 0.0
  %2085 = vmatpush1.xpose.msra.mxu0 0.0
  %2086 = vmatprep.subr.mxu0 0.0
  %2087 = vmatpush1.xpose.msra.mxu0 0.0
  %2088 = vmatprep.subr.mxu0 0.0
  %2089 = vmatpush1.xpose.msra.mxu0 0.0
  %2090 = vmatprep.subr.mxu0 0.0
  %2091 = vmatpush1.xpose.msra.mxu0 0.0
  %2092 = vmatprep.mubr.f32.mxu0 0.0
  %2093 = vmatmul.mubr.f32.gmra.mrb[0].mxu0 %v2024
  %v2094 = vpop.f32.mrb[0].mxu0
  %v2095 = vadd.f32 0.0, %v2094
  %v2096 = vpop.f32.mrb[0].mxu0
  %2097 = vdwg.mxu0
  %2098 = vrot.lane.b32.xlu0 %v1935, 112
  %v2099 = vpop.permute.xlu0 %2098
  %v2100 = vsel %vm145, %v1935, 0
  %v2102 = vsel %vm145, %v2099, 0
  %2104 = vmatprep.subr.mxu0 0.0
  %2105 = vmatpush1.xpose.msra.mxu0 %v2102
  %2106 = vmatprep.subr.mxu0 0.0
  %2107 = vmatpush1.xpose.msra.mxu0 0.0
  %2108 = vmatprep.subr.mxu0 0.0
  %2109 = vmatpush1.xpose.msra.mxu0 0.0
  %2110 = vmatprep.subr.mxu0 0.0
  %2111 = vmatpush1.xpose.msra.mxu0 0.0
  %2112 = vmatprep.subr.mxu0 0.0
  %2113 = vmatpush1.xpose.msra.mxu0 0.0
  %2114 = vmatprep.subr.mxu0 0.0
  %2115 = vmatpush1.xpose.msra.mxu0 0.0
  %2116 = vmatprep.subr.mxu0 0.0
  %2117 = vmatpush1.xpose.msra.mxu0 0.0
  %2118 = vmatprep.subr.mxu0 0.0
  %2119 = vmatpush1.xpose.msra.mxu0 0.0
  %2120 = vmatprep.subr.mxu0 0.0
  %2121 = vmatpush1.xpose.msra.mxu0 0.0
  %2122 = vmatprep.subr.mxu0 0.0
  %2123 = vmatpush1.xpose.msra.mxu0 0.0
  %2124 = vmatprep.subr.mxu0 0.0
  %2125 = vmatpush1.xpose.msra.mxu0 0.0
  %2126 = vmatprep.subr.mxu0 0.0
  %2127 = vmatpush1.xpose.msra.mxu0 0.0
  %2128 = vmatprep.subr.mxu0 0.0
  %2129 = vmatpush1.xpose.msra.mxu0 0.0
  %2130 = vmatprep.subr.mxu0 0.0
  %2131 = vmatpush1.xpose.msra.mxu0 0.0
  %2132 = vmatprep.subr.mxu0 0.0
  %2133 = vmatpush1.xpose.msra.mxu0 0.0
  %2134 = vmatprep.subr.mxu0 0.0
  %2135 = vmatpush1.xpose.msra.mxu0 0.0
  %2136 = vmatprep.subr.mxu0 0.0
  %2137 = vmatpush1.xpose.msra.mxu0 0.0
  %2138 = vmatprep.subr.mxu0 0.0
  %2139 = vmatpush1.xpose.msra.mxu0 0.0
  %2140 = vmatprep.subr.mxu0 0.0
  %2141 = vmatpush1.xpose.msra.mxu0 0.0
  %2142 = vmatprep.subr.mxu0 0.0
  %2143 = vmatpush1.xpose.msra.mxu0 0.0
  %2144 = vmatprep.subr.mxu0 0.0
  %2145 = vmatpush1.xpose.msra.mxu0 0.0
  %2146 = vmatprep.subr.mxu0 0.0
  %2147 = vmatpush1.xpose.msra.mxu0 0.0
  %2148 = vmatprep.subr.mxu0 0.0
  %2149 = vmatpush1.xpose.msra.mxu0 0.0
  %2150 = vmatprep.subr.mxu0 0.0
  %2151 = vmatpush1.xpose.msra.mxu0 0.0
  %2152 = vmatprep.subr.mxu0 0.0
  %2153 = vmatpush1.xpose.msra.mxu0 0.0
  %2154 = vmatprep.subr.mxu0 0.0
  %2155 = vmatpush1.xpose.msra.mxu0 0.0
  %2156 = vmatprep.subr.mxu0 0.0
  %2157 = vmatpush1.xpose.msra.mxu0 0.0
  %2158 = vmatprep.subr.mxu0 0.0
  %2159 = vmatpush1.xpose.msra.mxu0 0.0
  %2160 = vmatprep.subr.mxu0 0.0
  %2161 = vmatpush1.xpose.msra.mxu0 0.0
  %2162 = vmatprep.subr.mxu0 0.0
  %2163 = vmatpush1.xpose.msra.mxu0 0.0
  %2164 = vmatprep.subr.mxu0 0.0
  %2165 = vmatpush1.xpose.msra.mxu0 0.0
  %2166 = vmatprep.subr.mxu0 0.0
  %2167 = vmatpush1.xpose.msra.mxu0 0.0
  %2168 = vmatprep.mubr.f32.mxu0 0.0
  %2169 = vmatmul.mubr.f32.gmra.mrb[0].mxu0 %v2100
  %v2170 = vpop.f32.mrb[0].mxu0
  %v2171 = vadd.f32 0.0, %v2170
  %v2172 = vpop.f32.mrb[0].mxu0
  %2173 = vdwg.mxu0
  %2174 = vrot.lane.b32.xlu0 %v1937, 112
  %v2175 = vpop.permute.xlu0 %2174
  %v2176 = vsel %vm145, %v1937, 0
  %v2178 = vsel %vm145, %v2175, 0
  %2180 = vmatprep.subr.mxu0 0.0
  %2181 = vmatpush1.xpose.msra.mxu0 %v2178
  %2182 = vmatprep.subr.mxu0 0.0
  %2183 = vmatpush1.xpose.msra.mxu0 0.0
  %2184 = vmatprep.subr.mxu0 0.0
  %2185 = vmatpush1.xpose.msra.mxu0 0.0
  %2186 = vmatprep.subr.mxu0 0.0
  %2187 = vmatpush1.xpose.msra.mxu0 0.0
  %2188 = vmatprep.subr.mxu0 0.0
  %2189 = vmatpush1.xpose.msra.mxu0 0.0
  %2190 = vmatprep.subr.mxu0 0.0
  %2191 = vmatpush1.xpose.msra.mxu0 0.0
  %2192 = vmatprep.subr.mxu0 0.0
  %2193 = vmatpush1.xpose.msra.mxu0 0.0
  %2194 = vmatprep.subr.mxu0 0.0
  %2195 = vmatpush1.xpose.msra.mxu0 0.0
  %2196 = vmatprep.subr.mxu0 0.0
  %2197 = vmatpush1.xpose.msra.mxu0 0.0
  %2198 = vmatprep.subr.mxu0 0.0
  %2199 = vmatpush1.xpose.msra.mxu0 0.0
  %2200 = vmatprep.subr.mxu0 0.0
  %2201 = vmatpush1.xpose.msra.mxu0 0.0
  %2202 = vmatprep.subr.mxu0 0.0
  %2203 = vmatpush1.xpose.msra.mxu0 0.0
  %2204 = vmatprep.subr.mxu0 0.0
  %2205 = vmatpush1.xpose.msra.mxu0 0.0
  %2206 = vmatprep.subr.mxu0 0.0
  %2207 = vmatpush1.xpose.msra.mxu0 0.0
  %2208 = vmatprep.subr.mxu0 0.0
  %2209 = vmatpush1.xpose.msra.mxu0 0.0
  %2210 = vmatprep.subr.mxu0 0.0
  %2211 = vmatpush1.xpose.msra.mxu0 0.0
  %2212 = vmatprep.subr.mxu0 0.0
  %2213 = vmatpush1.xpose.msra.mxu0 0.0
  %2214 = vmatprep.subr.mxu0 0.0
  %2215 = vmatpush1.xpose.msra.mxu0 0.0
  %2216 = vmatprep.subr.mxu0 0.0
  %2217 = vmatpush1.xpose.msra.mxu0 0.0
  %2218 = vmatprep.subr.mxu0 0.0
  %2219 = vmatpush1.xpose.msra.mxu0 0.0
  %2220 = vmatprep.subr.mxu0 0.0
  %2221 = vmatpush1.xpose.msra.mxu0 0.0
  %2222 = vmatprep.subr.mxu0 0.0
  %2223 = vmatpush1.xpose.msra.mxu0 0.0
  %2224 = vmatprep.subr.mxu0 0.0
  %2225 = vmatpush1.xpose.msra.mxu0 0.0
  %2226 = vmatprep.subr.mxu0 0.0
  %2227 = vmatpush1.xpose.msra.mxu0 0.0
  %2228 = vmatprep.subr.mxu0 0.0
  %2229 = vmatpush1.xpose.msra.mxu0 0.0
  %2230 = vmatprep.subr.mxu0 0.0
  %2231 = vmatpush1.xpose.msra.mxu0 0.0
  %2232 = vmatprep.subr.mxu0 0.0
  %2233 = vmatpush1.xpose.msra.mxu0 0.0
  %2234 = vmatprep.subr.mxu0 0.0
  %2235 = vmatpush1.xpose.msra.mxu0 0.0
  %2236 = vmatprep.subr.mxu0 0.0
  %2237 = vmatpush1.xpose.msra.mxu0 0.0
  %2238 = vmatprep.subr.mxu0 0.0
  %2239 = vmatpush1.xpose.msra.mxu0 0.0
  %2240 = vmatprep.subr.mxu0 0.0
  %2241 = vmatpush1.xpose.msra.mxu0 0.0
  %2242 = vmatprep.subr.mxu0 0.0
  %2243 = vmatpush1.xpose.msra.mxu0 0.0
  %2244 = vmatprep.mubr.f32.mxu0 0.0
  %2245 = vmatmul.mubr.f32.gmra.mrb[0].mxu0 %v2176
  %v2246 = vpop.f32.mrb[0].mxu0
  %v2247 = vadd.f32 0.0, %v2246
  %v2248 = vpop.f32.mrb[0].mxu0
  %2249 = vdwg.mxu0
  %2250 = vrot.lane.b32.xlu0 %v1939, 112
  %v2251 = vpop.permute.xlu0 %2250
  %v2252 = vsel %vm145, %v1939, 0
  %v2254 = vsel %vm145, %v2251, 0
  %2256 = vmatprep.subr.mxu0 0.0
  %2257 = vmatpush1.xpose.msra.mxu0 %v2254
  %2258 = vmatprep.subr.mxu0 0.0
  %2259 = vmatpush1.xpose.msra.mxu0 0.0
  %2260 = vmatprep.subr.mxu0 0.0
  %2261 = vmatpush1.xpose.msra.mxu0 0.0
  %2262 = vmatprep.subr.mxu0 0.0
  %2263 = vmatpush1.xpose.msra.mxu0 0.0
  %2264 = vmatprep.subr.mxu0 0.0
  %2265 = vmatpush1.xpose.msra.mxu0 0.0
  %2266 = vmatprep.subr.mxu0 0.0
  %2267 = vmatpush1.xpose.msra.mxu0 0.0
  %2268 = vmatprep.subr.mxu0 0.0
  %2269 = vmatpush1.xpose.msra.mxu0 0.0
  %2270 = vmatprep.subr.mxu0 0.0
  %2271 = vmatpush1.xpose.msra.mxu0 0.0
  %2272 = vmatprep.subr.mxu0 0.0
  %2273 = vmatpush1.xpose.msra.mxu0 0.0
  %2274 = vmatprep.subr.mxu0 0.0
  %2275 = vmatpush1.xpose.msra.mxu0 0.0
  %2276 = vmatprep.subr.mxu0 0.0
  %2277 = vmatpush1.xpose.msra.mxu0 0.0
  %2278 = vmatprep.subr.mxu0 0.0
  %2279 = vmatpush1.xpose.msra.mxu0 0.0
  %2280 = vmatprep.subr.mxu0 0.0
  %2281 = vmatpush1.xpose.msra.mxu0 0.0
  %2282 = vmatprep.subr.mxu0 0.0
  %2283 = vmatpush1.xpose.msra.mxu0 0.0
  %2284 = vmatprep.subr.mxu0 0.0
  %2285 = vmatpush1.xpose.msra.mxu0 0.0
  %2286 = vmatprep.subr.mxu0 0.0
  %2287 = vmatpush1.xpose.msra.mxu0 0.0
  %2288 = vmatprep.subr.mxu0 0.0
  %2289 = vmatpush1.xpose.msra.mxu0 0.0
  %2290 = vmatprep.subr.mxu0 0.0
  %2291 = vmatpush1.xpose.msra.mxu0 0.0
  %2292 = vmatprep.subr.mxu0 0.0
  %2293 = vmatpush1.xpose.msra.mxu0 0.0
  %2294 = vmatprep.subr.mxu0 0.0
  %2295 = vmatpush1.xpose.msra.mxu0 0.0
  %2296 = vmatprep.subr.mxu0 0.0
  %2297 = vmatpush1.xpose.msra.mxu0 0.0
  %2298 = vmatprep.subr.mxu0 0.0
  %2299 = vmatpush1.xpose.msra.mxu0 0.0
  %2300 = vmatprep.subr.mxu0 0.0
  %2301 = vmatpush1.xpose.msra.mxu0 0.0
  %2302 = vmatprep.subr.mxu0 0.0
  %2303 = vmatpush1.xpose.msra.mxu0 0.0
  %2304 = vmatprep.subr.mxu0 0.0
  %2305 = vmatpush1.xpose.msra.mxu0 0.0
  %2306 = vmatprep.subr.mxu0 0.0
  %2307 = vmatpush1.xpose.msra.mxu0 0.0
  %2308 = vmatprep.subr.mxu0 0.0
  %2309 = vmatpush1.xpose.msra.mxu0 0.0
  %2310 = vmatprep.subr.mxu0 0.0
  %2311 = vmatpush1.xpose.msra.mxu0 0.0
  %2312 = vmatprep.subr.mxu0 0.0
  %2313 = vmatpush1.xpose.msra.mxu0 0.0
  %2314 = vmatprep.subr.mxu0 0.0
  %2315 = vmatpush1.xpose.msra.mxu0 0.0
  %2316 = vmatprep.subr.mxu0 0.0
  %2317 = vmatpush1.xpose.msra.mxu0 0.0
  %2318 = vmatprep.subr.mxu0 0.0
  %2319 = vmatpush1.xpose.msra.mxu0 0.0
  %2320 = vmatprep.mubr.f32.mxu0 0.0
  %2321 = vmatmul.mubr.f32.gmra.mrb[0].mxu0 %v2252
  %v2322 = vpop.f32.mrb[0].mxu0
  %v2323 = vadd.f32 0.0, %v2322
  %v2324 = vpop.f32.mrb[0].mxu0
  %2325 = vdwg.mxu0
  %2326 = vrot.lane.b32.xlu0 %v1941, 112
  %v2327 = vpop.permute.xlu0 %2326
  %v2328 = vsel %vm145, %v1941, 0
  %v2330 = vsel %vm145, %v2327, 0
  %2332 = vmatprep.subr.mxu0 0.0
  %2333 = vmatpush1.xpose.msra.mxu0 %v2330
  %2334 = vmatprep.subr.mxu0 0.0
  %2335 = vmatpush1.xpose.msra.mxu0 0.0
  %2336 = vmatprep.subr.mxu0 0.0
  %2337 = vmatpush1.xpose.msra.mxu0 0.0
  %2338 = vmatprep.subr.mxu0 0.0
  %2339 = vmatpush1.xpose.msra.mxu0 0.0
  %2340 = vmatprep.subr.mxu0 0.0
  %2341 = vmatpush1.xpose.msra.mxu0 0.0
  %2342 = vmatprep.subr.mxu0 0.0
  %2343 = vmatpush1.xpose.msra.mxu0 0.0
  %2344 = vmatprep.subr.mxu0 0.0
  %2345 = vmatpush1.xpose.msra.mxu0 0.0
  %2346 = vmatprep.subr.mxu0 0.0
  %2347 = vmatpush1.xpose.msra.mxu0 0.0
  %2348 = vmatprep.subr.mxu0 0.0
  %2349 = vmatpush1.xpose.msra.mxu0 0.0
  %2350 = vmatprep.subr.mxu0 0.0
  %2351 = vmatpush1.xpose.msra.mxu0 0.0
  %2352 = vmatprep.subr.mxu0 0.0
  %2353 = vmatpush1.xpose.msra.mxu0 0.0
  %2354 = vmatprep.subr.mxu0 0.0
  %2355 = vmatpush1.xpose.msra.mxu0 0.0
  %2356 = vmatprep.subr.mxu0 0.0
  %2357 = vmatpush1.xpose.msra.mxu0 0.0
  %2358 = vmatprep.subr.mxu0 0.0
  %2359 = vmatpush1.xpose.msra.mxu0 0.0
  %2360 = vmatprep.subr.mxu0 0.0
  %2361 = vmatpush1.xpose.msra.mxu0 0.0
  %2362 = vmatprep.subr.mxu0 0.0
  %2363 = vmatpush1.xpose.msra.mxu0 0.0
  %2364 = vmatprep.subr.mxu0 0.0
  %2365 = vmatpush1.xpose.msra.mxu0 0.0
  %2366 = vmatprep.subr.mxu0 0.0
  %2367 = vmatpush1.xpose.msra.mxu0 0.0
  %2368 = vmatprep.subr.mxu0 0.0
  %2369 = vmatpush1.xpose.msra.mxu0 0.0
  %2370 = vmatprep.subr.mxu0 0.0
  %2371 = vmatpush1.xpose.msra.mxu0 0.0
  %2372 = vmatprep.subr.mxu0 0.0
  %2373 = vmatpush1.xpose.msra.mxu0 0.0
  %2374 = vmatprep.subr.mxu0 0.0
  %2375 = vmatpush1.xpose.msra.mxu0 0.0
  %2376 = vmatprep.subr.mxu0 0.0
  %2377 = vmatpush1.xpose.msra.mxu0 0.0
  %2378 = vmatprep.subr.mxu0 0.0
  %2379 = vmatpush1.xpose.msra.mxu0 0.0
  %2380 = vmatprep.subr.mxu0 0.0
  %2381 = vmatpush1.xpose.msra.mxu0 0.0
  %2382 = vmatprep.subr.mxu0 0.0
  %2383 = vmatpush1.xpose.msra.mxu0 0.0
  %2384 = vmatprep.subr.mxu0 0.0
  %2385 = vmatpush1.xpose.msra.mxu0 0.0
  %2386 = vmatprep.subr.mxu0 0.0
  %2387 = vmatpush1.xpose.msra.mxu0 0.0
  %2388 = vmatprep.subr.mxu0 0.0
  %2389 = vmatpush1.xpose.msra.mxu0 0.0
  %2390 = vmatprep.subr.mxu0 0.0
  %2391 = vmatpush1.xpose.msra.mxu0 0.0
  %2392 = vmatprep.subr.mxu0 0.0
  %2393 = vmatpush1.xpose.msra.mxu0 0.0
  %2394 = vmatprep.subr.mxu0 0.0
  %2395 = vmatpush1.xpose.msra.mxu0 0.0
  %2396 = vmatprep.mubr.f32.mxu0 0.0
  %2397 = vmatmul.mubr.f32.gmra.mrb[0].mxu0 %v2328
  %v2398 = vpop.f32.mrb[0].mxu0
  %v2399 = vadd.f32 0.0, %v2398
  %v2400 = vpop.f32.mrb[0].mxu0
  %2401 = vdwg.mxu0
  %2402 = vrot.lane.b32.xlu0 %v1943, 112
  %v2403 = vpop.permute.xlu0 %2402
  %v2404 = vsel %vm145, %v1943, 0
  %v2406 = vsel %vm145, %v2403, 0
  %2408 = vmatprep.subr.mxu0 0.0
  %2409 = vmatpush1.xpose.msra.mxu0 %v2406
  %2410 = vmatprep.subr.mxu0 0.0
  %2411 = vmatpush1.xpose.msra.mxu0 0.0
  %2412 = vmatprep.subr.mxu0 0.0
  %2413 = vmatpush1.xpose.msra.mxu0 0.0
  %2414 = vmatprep.subr.mxu0 0.0
  %2415 = vmatpush1.xpose.msra.mxu0 0.0
  %2416 = vmatprep.subr.mxu0 0.0
  %2417 = vmatpush1.xpose.msra.mxu0 0.0
  %2418 = vmatprep.subr.mxu0 0.0
  %2419 = vmatpush1.xpose.msra.mxu0 0.0
  %2420 = vmatprep.subr.mxu0 0.0
  %2421 = vmatpush1.xpose.msra.mxu0 0.0
  %2422 = vmatprep.subr.mxu0 0.0
  %2423 = vmatpush1.xpose.msra.mxu0 0.0
  %2424 = vmatprep.subr.mxu0 0.0
  %2425 = vmatpush1.xpose.msra.mxu0 0.0
  %2426 = vmatprep.subr.mxu0 0.0
  %2427 = vmatpush1.xpose.msra.mxu0 0.0
  %2428 = vmatprep.subr.mxu0 0.0
  %2429 = vmatpush1.xpose.msra.mxu0 0.0
  %2430 = vmatprep.subr.mxu0 0.0
  %2431 = vmatpush1.xpose.msra.mxu0 0.0
  %2432 = vmatprep.subr.mxu0 0.0
  %2433 = vmatpush1.xpose.msra.mxu0 0.0
  %2434 = vmatprep.subr.mxu0 0.0
  %2435 = vmatpush1.xpose.msra.mxu0 0.0
  %2436 = vmatprep.subr.mxu0 0.0
  %2437 = vmatpush1.xpose.msra.mxu0 0.0
  %2438 = vmatprep.subr.mxu0 0.0
  %2439 = vmatpush1.xpose.msra.mxu0 0.0
  %2440 = vmatprep.subr.mxu0 0.0
  %2441 = vmatpush1.xpose.msra.mxu0 0.0
  %2442 = vmatprep.subr.mxu0 0.0
  %2443 = vmatpush1.xpose.msra.mxu0 0.0
  %2444 = vmatprep.subr.mxu0 0.0
  %2445 = vmatpush1.xpose.msra.mxu0 0.0
  %2446 = vmatprep.subr.mxu0 0.0
  %2447 = vmatpush1.xpose.msra.mxu0 0.0
  %2448 = vmatprep.subr.mxu0 0.0
  %2449 = vmatpush1.xpose.msra.mxu0 0.0
  %2450 = vmatprep.subr.mxu0 0.0
  %2451 = vmatpush1.xpose.msra.mxu0 0.0
  %2452 = vmatprep.subr.mxu0 0.0
  %2453 = vmatpush1.xpose.msra.mxu0 0.0
  %2454 = vmatprep.subr.mxu0 0.0
  %2455 = vmatpush1.xpose.msra.mxu0 0.0
  %2456 = vmatprep.subr.mxu0 0.0
  %2457 = vmatpush1.xpose.msra.mxu0 0.0
  %2458 = vmatprep.subr.mxu0 0.0
  %2459 = vmatpush1.xpose.msra.mxu0 0.0
  %2460 = vmatprep.subr.mxu0 0.0
  %2461 = vmatpush1.xpose.msra.mxu0 0.0
  %2462 = vmatprep.subr.mxu0 0.0
  %2463 = vmatpush1.xpose.msra.mxu0 0.0
  %2464 = vmatprep.subr.mxu0 0.0
  %2465 = vmatpush1.xpose.msra.mxu0 0.0
  %2466 = vmatprep.subr.mxu0 0.0
  %2467 = vmatpush1.xpose.msra.mxu0 0.0
  %2468 = vmatprep.subr.mxu0 0.0
  %2469 = vmatpush1.xpose.msra.mxu0 0.0
  %2470 = vmatprep.subr.mxu0 0.0
  %2471 = vmatpush1.xpose.msra.mxu0 0.0
  %2472 = vmatprep.mubr.f32.mxu0 0.0
  %2473 = vmatmul.mubr.f32.gmra.mrb[0].mxu0 %v2404
  %v2474 = vpop.f32.mrb[0].mxu0
  %v2475 = vadd.f32 0.0, %v2474
  %v2476 = vpop.f32.mrb[0].mxu0
  %2477 = vdwg.mxu0
  %2478 = vrot.lane.b32.xlu0 %v1945, 112
  %v2479 = vpop.permute.xlu0 %2478
  %v2480 = vsel %vm145, %v1945, 0
  %v2482 = vsel %vm145, %v2479, 0
  %2484 = vmatprep.subr.mxu0 0.0
  %2485 = vmatpush1.xpose.msra.mxu0 %v2482
  %2486 = vmatprep.subr.mxu0 0.0
  %2487 = vmatpush1.xpose.msra.mxu0 0.0
  %2488 = vmatprep.subr.mxu0 0.0
  %2489 = vmatpush1.xpose.msra.mxu0 0.0
  %2490 = vmatprep.subr.mxu0 0.0
  %2491 = vmatpush1.xpose.msra.mxu0 0.0
  %2492 = vmatprep.subr.mxu0 0.0
  %2493 = vmatpush1.xpose.msra.mxu0 0.0
  %2494 = vmatprep.subr.mxu0 0.0
  %2495 = vmatpush1.xpose.msra.mxu0 0.0
  %2496 = vmatprep.subr.mxu0 0.0
  %2497 = vmatpush1.xpose.msra.mxu0 0.0
  %2498 = vmatprep.subr.mxu0 0.0
  %2499 = vmatpush1.xpose.msra.mxu0 0.0
  %2500 = vmatprep.subr.mxu0 0.0
  %2501 = vmatpush1.xpose.msra.mxu0 0.0
  %2502 = vmatprep.subr.mxu0 0.0
  %2503 = vmatpush1.xpose.msra.mxu0 0.0
  %2504 = vmatprep.subr.mxu0 0.0
  %2505 = vmatpush1.xpose.msra.mxu0 0.0
  %2506 = vmatprep.subr.mxu0 0.0
  %2507 = vmatpush1.xpose.msra.mxu0 0.0
  %2508 = vmatprep.subr.mxu0 0.0
  %2509 = vmatpush1.xpose.msra.mxu0 0.0
  %2510 = vmatprep.subr.mxu0 0.0
  %2511 = vmatpush1.xpose.msra.mxu0 0.0
  %2512 = vmatprep.subr.mxu0 0.0
  %2513 = vmatpush1.xpose.msra.mxu0 0.0
  %2514 = vmatprep.subr.mxu0 0.0
  %2515 = vmatpush1.xpose.msra.mxu0 0.0
  %2516 = vmatprep.subr.mxu0 0.0
  %2517 = vmatpush1.xpose.msra.mxu0 0.0
  %2518 = vmatprep.subr.mxu0 0.0
  %2519 = vmatpush1.xpose.msra.mxu0 0.0
  %2520 = vmatprep.subr.mxu0 0.0
  %2521 = vmatpush1.xpose.msra.mxu0 0.0
  %2522 = vmatprep.subr.mxu0 0.0
  %2523 = vmatpush1.xpose.msra.mxu0 0.0
  %2524 = vmatprep.subr.mxu0 0.0
  %2525 = vmatpush1.xpose.msra.mxu0 0.0
  %2526 = vmatprep.subr.mxu0 0.0
  %2527 = vmatpush1.xpose.msra.mxu0 0.0
  %2528 = vmatprep.subr.mxu0 0.0
  %2529 = vmatpush1.xpose.msra.mxu0 0.0
  %2530 = vmatprep.subr.mxu0 0.0
  %2531 = vmatpush1.xpose.msra.mxu0 0.0
  %2532 = vmatprep.subr.mxu0 0.0
  %2533 = vmatpush1.xpose.msra.mxu0 0.0
  %2534 = vmatprep.subr.mxu0 0.0
  %2535 = vmatpush1.xpose.msra.mxu0 0.0
  %2536 = vmatprep.subr.mxu0 0.0
  %2537 = vmatpush1.xpose.msra.mxu0 0.0
  %2538 = vmatprep.subr.mxu0 0.0
  %2539 = vmatpush1.xpose.msra.mxu0 0.0
  %2540 = vmatprep.subr.mxu0 0.0
  %2541 = vmatpush1.xpose.msra.mxu0 0.0
  %2542 = vmatprep.subr.mxu0 0.0
  %2543 = vmatpush1.xpose.msra.mxu0 0.0
  %2544 = vmatprep.subr.mxu0 0.0
  %2545 = vmatpush1.xpose.msra.mxu0 0.0
  %2546 = vmatprep.subr.mxu0 0.0
  %2547 = vmatpush1.xpose.msra.mxu0 0.0
  %2548 = vmatprep.mubr.f32.mxu0 0.0
  %2549 = vmatmul.mubr.f32.gmra.mrb[0].mxu0 %v2480
  %v2550 = vpop.f32.mrb[0].mxu0
  %v2551 = vadd.f32 0.0, %v2550
  %v2552 = vpop.f32.mrb[0].mxu0
  %2553 = vdwg.mxu0
  %v2554 = vmul.f32 %v2019, 0.5
  %v2555 = vmul.f32 %v2095, 0.5
  %v2556 = vmul.f32 %v2171, 0.5
  %v2557 = vmul.f32 %v2247, 0.5
  %v2558 = vmul.f32 %v2323, 0.5
  %v2559 = vmul.f32 %v2399, 0.5
  %v2560 = vmul.f32 %v2475, 0.5
  %v2561 = vmul.f32 %v2551, 0.5
  %v2562 = vsel %vm760, %v2554, -inf
  %2563 = vmax.xlane.f32.xlu0 %v2562
  %v2564 = vpop.xlane.xlu0 %2563
  %v2565 = vsel %vm760, %v2555, -inf
  %2566 = vmax.xlane.f32.xlu0 %v2565
  %v2567 = vpop.xlane.xlu0 %2566
  %v2568 = vsel %vm760, %v2556, -inf
  %2569 = vmax.xlane.f32.xlu0 %v2568
  %v2570 = vpop.xlane.xlu0 %2569
  %v2571 = vsel %vm760, %v2557, -inf
  %2572 = vmax.xlane.f32.xlu0 %v2571
  %v2573 = vpop.xlane.xlu0 %2572
  %v2574 = vsel %vm760, %v2558, -inf
  %2575 = vmax.xlane.f32.xlu0 %v2574
  %v2576 = vpop.xlane.xlu0 %2575
  %v2577 = vsel %vm760, %v2559, -inf
  %2578 = vmax.xlane.f32.xlu0 %v2577
  %v2579 = vpop.xlane.xlu0 %2578
  %v2580 = vsel %vm760, %v2560, -inf
  %2581 = vmax.xlane.f32.xlu0 %v2580
  %v2582 = vpop.xlane.xlu0 %2581
  %v2583 = vsel %vm760, %v2561, -inf
  %2584 = vmax.xlane.f32.xlu0 %v2583
  %v2585 = vpop.xlane.xlu0 %2584
  %v2586 = vsub.f32 %v2554, %v2564
  %v2587 = vsub.f32 %v2555, %v2567
  %v2588 = vsub.f32 %v2556, %v2570
  %v2589 = vsub.f32 %v2557, %v2573
  %v2590 = vsub.f32 %v2558, %v2576
  %v2591 = vsub.f32 %v2559, %v2579
  %v2592 = vsub.f32 %v2560, %v2582
  %v2593 = vsub.f32 %v2561, %v2585
  %v2594 = vmul.f32 %v2586, 1.442695
  %v2595 = vpow.pop %v2594
  %v2596 = vmul.f32 %v2587, 1.442695
  %v2597 = vpow.pop %v2596
  %v2598 = vmul.f32 %v2588, 1.442695
  %v2599 = vpow.pop %v2598
  %v2600 = vmul.f32 %v2589, 1.442695
  %v2601 = vpow.pop %v2600
  %v2602 = vmul.f32 %v2590, 1.442695
  %v2603 = vpow.pop %v2602
  %v2604 = vmul.f32 %v2591, 1.442695
  %v2605 = vpow.pop %v2604
  %v2606 = vmul.f32 %v2592, 1.442695
  %v2607 = vpow.pop %v2606
  %v2608 = vmul.f32 %v2593, 1.442695
  %v2609 = vpow.pop %v2608
  %v2610 = vsel %vm760, %v2595, 0.0
  %2611 = vadd.xlane.f32.xlu0 %v2610
  %v2612 = vpop.xlane.xlu0 %2611
  %v2613 = vsel %vm760, %v2597, 0.0
  %2614 = vadd.xlane.f32.xlu0 %v2613
  %v2615 = vpop.xlane.xlu0 %2614
  %v2616 = vsel %vm760, %v2599, 0.0
  %2617 = vadd.xlane.f32.xlu0 %v2616
  %v2618 = vpop.xlane.xlu0 %2617
  %v2619 = vsel %vm760, %v2601, 0.0
  %2620 = vadd.xlane.f32.xlu0 %v2619
  %v2621 = vpop.xlane.xlu0 %2620
  %v2622 = vsel %vm760, %v2603, 0.0
  %2623 = vadd.xlane.f32.xlu0 %v2622
  %v2624 = vpop.xlane.xlu0 %2623
  %v2625 = vsel %vm760, %v2605, 0.0
  %2626 = vadd.xlane.f32.xlu0 %v2625
  %v2627 = vpop.xlane.xlu0 %2626
  %v2628 = vsel %vm760, %v2607, 0.0
  %2629 = vadd.xlane.f32.xlu0 %v2628
  %v2630 = vpop.xlane.xlu0 %2629
  %v2631 = vsel %vm760, %v2609, 0.0
  %2632 = vadd.xlane.f32.xlu0 %v2631
  %v2633 = vpop.xlane.xlu0 %2632
  %v2634 = vrcp.pop %v2612
  %v2635 = vmul.f32 %v2595, %v2634
  %v2636 = vrcp.pop %v2615
  %v2637 = vmul.f32 %v2597, %v2636
  %v2638 = vrcp.pop %v2618
  %v2639 = vmul.f32 %v2599, %v2638
  %v2640 = vrcp.pop %v2621
  %v2641 = vmul.f32 %v2601, %v2640
  %v2642 = vrcp.pop %v2624
  %v2643 = vmul.f32 %v2603, %v2642
  %v2644 = vrcp.pop %v2627
  %v2645 = vmul.f32 %v2605, %v2644
  %v2646 = vrcp.pop %v2630
  %v2647 = vmul.f32 %v2607, %v2646
  %v2648 = vrcp.pop %v2633
  %v2649 = vmul.f32 %v2609, %v2648
  %2650 = vrot.lane.b32.xlu0 %v1924, 96
  %v2651 = vpop.permute.xlu0 %2650
  %v2654 = vsel %vm760, %v2635, 0
  %2656 = vmatprep.subr.mxu0 0.0
  %2657 = vmatpush1.msra.mxu0 %v2651
  %2658 = vmatprep.subr.mxu0 0.0
  %2659 = vmatpush1.msra.mxu0 0.0
  %2660 = vmatprep.subr.mxu0 0.0
  %2661 = vmatpush1.msra.mxu0 0.0
  %2662 = vmatprep.subr.mxu0 0.0
  %2663 = vmatpush1.msra.mxu0 0.0
  %2664 = vmatprep.subr.mxu0 0.0
  %2665 = vmatpush1.msra.mxu0 0.0
  %2666 = vmatprep.subr.mxu0 0.0
  %2667 = vmatpush1.msra.mxu0 0.0
  %2668 = vmatprep.subr.mxu0 0.0
  %2669 = vmatpush1.msra.mxu0 0.0
  %2670 = vmatprep.subr.mxu0 0.0
  %2671 = vmatpush1.msra.mxu0 0.0
  %2672 = vmatprep.subr.mxu0 0.0
  %2673 = vmatpush1.msra.mxu0 0.0
  %2674 = vmatprep.subr.mxu0 0.0
  %2675 = vmatpush1.msra.mxu0 0.0
  %2676 = vmatprep.subr.mxu0 0.0
  %2677 = vmatpush1.msra.mxu0 0.0
  %2678 = vmatprep.subr.mxu0 0.0
  %2679 = vmatpush1.msra.mxu0 0.0
  %2680 = vmatprep.subr.mxu0 0.0
  %2681 = vmatpush1.msra.mxu0 0.0
  %2682 = vmatprep.subr.mxu0 0.0
  %2683 = vmatpush1.msra.mxu0 0.0
  %2684 = vmatprep.subr.mxu0 0.0
  %2685 = vmatpush1.msra.mxu0 0.0
  %2686 = vmatprep.subr.mxu0 0.0
  %2687 = vmatpush1.msra.mxu0 0.0
  %2688 = vmatprep.subr.mxu0 0.0
  %2689 = vmatpush1.msra.mxu0 0.0
  %2690 = vmatprep.subr.mxu0 0.0
  %2691 = vmatpush1.msra.mxu0 0.0
  %2692 = vmatprep.subr.mxu0 0.0
  %2693 = vmatpush1.msra.mxu0 0.0
  %2694 = vmatprep.subr.mxu0 0.0
  %2695 = vmatpush1.msra.mxu0 0.0
  %2696 = vmatprep.subr.mxu0 0.0
  %2697 = vmatpush1.msra.mxu0 0.0
  %2698 = vmatprep.subr.mxu0 0.0
  %2699 = vmatpush1.msra.mxu0 0.0
  %2700 = vmatprep.subr.mxu0 0.0
  %2701 = vmatpush1.msra.mxu0 0.0
  %2702 = vmatprep.subr.mxu0 0.0
  %2703 = vmatpush1.msra.mxu0 0.0
  %2704 = vmatprep.subr.mxu0 0.0
  %2705 = vmatpush1.msra.mxu0 0.0
  %2706 = vmatprep.subr.mxu0 0.0
  %2707 = vmatpush1.msra.mxu0 0.0
  %2708 = vmatprep.subr.mxu0 0.0
  %2709 = vmatpush1.msra.mxu0 0.0
  %2710 = vmatprep.subr.mxu0 0.0
  %2711 = vmatpush1.msra.mxu0 0.0
  %2712 = vmatprep.subr.mxu0 0.0
  %2713 = vmatpush1.msra.mxu0 0.0
  %2714 = vmatprep.subr.mxu0 0.0
  %2715 = vmatpush1.msra.mxu0 0.0
  %2716 = vmatprep.subr.mxu0 0.0
  %2717 = vmatpush1.msra.mxu0 0.0
  %2718 = vmatprep.subr.mxu0 0.0
  %2719 = vmatpush1.msra.mxu0 0.0
  %2720 = vmatprep.mubr.f32.mxu0 0.0
  %2721 = vmatmul.mubr.f32.gmra.mrb[0].mxu0 %v2654
  %v2722 = vpop.f32.mrb[0].mxu0
  %v2723 = vadd.f32 0.0, %v2722
  %v2724 = vpop.f32.mrb[0].mxu0
  %2725 = vdwg.mxu0
  %2726 = vrot.lane.b32.xlu0 %v1929, 96
  %v2727 = vpop.permute.xlu0 %2726
  %v2730 = vsel %vm760, %v2637, 0
  %2732 = vmatprep.subr.mxu0 0.0
  %2733 = vmatpush1.msra.mxu0 %v2727
  %2734 = vmatprep.subr.mxu0 0.0
  %2735 = vmatpush1.msra.mxu0 0.0
  %2736 = vmatprep.subr.mxu0 0.0
  %2737 = vmatpush1.msra.mxu0 0.0
  %2738 = vmatprep.subr.mxu0 0.0
  %2739 = vmatpush1.msra.mxu0 0.0
  %2740 = vmatprep.subr.mxu0 0.0
  %2741 = vmatpush1.msra.mxu0 0.0
  %2742 = vmatprep.subr.mxu0 0.0
  %2743 = vmatpush1.msra.mxu0 0.0
  %2744 = vmatprep.subr.mxu0 0.0
  %2745 = vmatpush1.msra.mxu0 0.0
  %2746 = vmatprep.subr.mxu0 0.0
  %2747 = vmatpush1.msra.mxu0 0.0
  %2748 = vmatprep.subr.mxu0 0.0
  %2749 = vmatpush1.msra.mxu0 0.0
  %2750 = vmatprep.subr.mxu0 0.0
  %2751 = vmatpush1.msra.mxu0 0.0
  %2752 = vmatprep.subr.mxu0 0.0
  %2753 = vmatpush1.msra.mxu0 0.0
  %2754 = vmatprep.subr.mxu0 0.0
  %2755 = vmatpush1.msra.mxu0 0.0
  %2756 = vmatprep.subr.mxu0 0.0
  %2757 = vmatpush1.msra.mxu0 0.0
  %2758 = vmatprep.subr.mxu0 0.0
  %2759 = vmatpush1.msra.mxu0 0.0
  %2760 = vmatprep.subr.mxu0 0.0
  %2761 = vmatpush1.msra.mxu0 0.0
  %2762 = vmatprep.subr.mxu0 0.0
  %2763 = vmatpush1.msra.mxu0 0.0
  %2764 = vmatprep.subr.mxu0 0.0
  %2765 = vmatpush1.msra.mxu0 0.0
  %2766 = vmatprep.subr.mxu0 0.0
  %2767 = vmatpush1.msra.mxu0 0.0
  %2768 = vmatprep.subr.mxu0 0.0
  %2769 = vmatpush1.msra.mxu0 0.0
  %2770 = vmatprep.subr.mxu0 0.0
  %2771 = vmatpush1.msra.mxu0 0.0
  %2772 = vmatprep.subr.mxu0 0.0
  %2773 = vmatpush1.msra.mxu0 0.0
  %2774 = vmatprep.subr.mxu0 0.0
  %2775 = vmatpush1.msra.mxu0 0.0
  %2776 = vmatprep.subr.mxu0 0.0
  %2777 = vmatpush1.msra.mxu0 0.0
  %2778 = vmatprep.subr.mxu0 0.0
  %2779 = vmatpush1.msra.mxu0 0.0
  %2780 = vmatprep.subr.mxu0 0.0
  %2781 = vmatpush1.msra.mxu0 0.0
  %2782 = vmatprep.subr.mxu0 0.0
  %2783 = vmatpush1.msra.mxu0 0.0
  %2784 = vmatprep.subr.mxu0 0.0
  %2785 = vmatpush1.msra.mxu0 0.0
  %2786 = vmatprep.subr.mxu0 0.0
  %2787 = vmatpush1.msra.mxu0 0.0
  %2788 = vmatprep.subr.mxu0 0.0
  %2789 = vmatpush1.msra.mxu0 0.0
  %2790 = vmatprep.subr.mxu0 0.0
  %2791 = vmatpush1.msra.mxu0 0.0
  %2792 = vmatprep.subr.mxu0 0.0
  %2793 = vmatpush1.msra.mxu0 0.0
  %2794 = vmatprep.subr.mxu0 0.0
  %2795 = vmatpush1.msra.mxu0 0.0
  %2796 = vmatprep.mubr.f32.mxu0 0.0
  %2797 = vmatmul.mubr.f32.gmra.mrb[0].mxu0 %v2730
  %v2798 = vpop.f32.mrb[0].mxu0
  %v2799 = vadd.f32 0.0, %v2798
  %v2800 = vpop.f32.mrb[0].mxu0
  %2801 = vdwg.mxu0
  %2802 = vrot.lane.b32.xlu0 %v1935, 96
  %v2803 = vpop.permute.xlu0 %2802
  %v2806 = vsel %vm760, %v2639, 0
  %2808 = vmatprep.subr.mxu0 0.0
  %2809 = vmatpush1.msra.mxu0 %v2803
  %2810 = vmatprep.subr.mxu0 0.0
  %2811 = vmatpush1.msra.mxu0 0.0
  %2812 = vmatprep.subr.mxu0 0.0
  %2813 = vmatpush1.msra.mxu0 0.0
  %2814 = vmatprep.subr.mxu0 0.0
  %2815 = vmatpush1.msra.mxu0 0.0
  %2816 = vmatprep.subr.mxu0 0.0
  %2817 = vmatpush1.msra.mxu0 0.0
  %2818 = vmatprep.subr.mxu0 0.0
  %2819 = vmatpush1.msra.mxu0 0.0
  %2820 = vmatprep.subr.mxu0 0.0
  %2821 = vmatpush1.msra.mxu0 0.0
  %2822 = vmatprep.subr.mxu0 0.0
  %2823 = vmatpush1.msra.mxu0 0.0
  %2824 = vmatprep.subr.mxu0 0.0
  %2825 = vmatpush1.msra.mxu0 0.0
  %2826 = vmatprep.subr.mxu0 0.0
  %2827 = vmatpush1.msra.mxu0 0.0
  %2828 = vmatprep.subr.mxu0 0.0
  %2829 = vmatpush1.msra.mxu0 0.0
  %2830 = vmatprep.subr.mxu0 0.0
  %2831 = vmatpush1.msra.mxu0 0.0
  %2832 = vmatprep.subr.mxu0 0.0
  %2833 = vmatpush1.msra.mxu0 0.0
  %2834 = vmatprep.subr.mxu0 0.0
  %2835 = vmatpush1.msra.mxu0 0.0
  %2836 = vmatprep.subr.mxu0 0.0
  %2837 = vmatpush1.msra.mxu0 0.0
  %2838 = vmatprep.subr.mxu0 0.0
  %2839 = vmatpush1.msra.mxu0 0.0
  %2840 = vmatprep.subr.mxu0 0.0
  %2841 = vmatpush1.msra.mxu0 0.0
  %2842 = vmatprep.subr.mxu0 0.0
  %2843 = vmatpush1.msra.mxu0 0.0
  %2844 = vmatprep.subr.mxu0 0.0
  %2845 = vmatpush1.msra.mxu0 0.0
  %2846 = vmatprep.subr.mxu0 0.0
  %2847 = vmatpush1.msra.mxu0 0.0
  %2848 = vmatprep.subr.mxu0 0.0
  %2849 = vmatpush1.msra.mxu0 0.0
  %2850 = vmatprep.subr.mxu0 0.0
  %2851 = vmatpush1.msra.mxu0 0.0
  %2852 = vmatprep.subr.mxu0 0.0
  %2853 = vmatpush1.msra.mxu0 0.0
  %2854 = vmatprep.subr.mxu0 0.0
  %2855 = vmatpush1.msra.mxu0 0.0
  %2856 = vmatprep.subr.mxu0 0.0
  %2857 = vmatpush1.msra.mxu0 0.0
  %2858 = vmatprep.subr.mxu0 0.0
  %2859 = vmatpush1.msra.mxu0 0.0
  %2860 = vmatprep.subr.mxu0 0.0
  %2861 = vmatpush1.msra.mxu0 0.0
  %2862 = vmatprep.subr.mxu0 0.0
  %2863 = vmatpush1.msra.mxu0 0.0
  %2864 = vmatprep.subr.mxu0 0.0
  %2865 = vmatpush1.msra.mxu0 0.0
  %2866 = vmatprep.subr.mxu0 0.0
  %2867 = vmatpush1.msra.mxu0 0.0
  %2868 = vmatprep.subr.mxu0 0.0
  %2869 = vmatpush1.msra.mxu0 0.0
  %2870 = vmatprep.subr.mxu0 0.0
  %2871 = vmatpush1.msra.mxu0 0.0
  %2872 = vmatprep.mubr.f32.mxu0 0.0
  %2873 = vmatmul.mubr.f32.gmra.mrb[0].mxu0 %v2806
  %v2874 = vpop.f32.mrb[0].mxu0
  %v2875 = vadd.f32 0.0, %v2874
  %v2876 = vpop.f32.mrb[0].mxu0
  %2877 = vdwg.mxu0
  %2878 = vrot.lane.b32.xlu0 %v1937, 96
  %v2879 = vpop.permute.xlu0 %2878
  %v2882 = vsel %vm760, %v2641, 0
  %2884 = vmatprep.subr.mxu0 0.0
  %2885 = vmatpush1.msra.mxu0 %v2879
  %2886 = vmatprep.subr.mxu0 0.0
  %2887 = vmatpush1.msra.mxu0 0.0
  %2888 = vmatprep.subr.mxu0 0.0
  %2889 = vmatpush1.msra.mxu0 0.0
  %2890 = vmatprep.subr.mxu0 0.0
  %2891 = vmatpush1.msra.mxu0 0.0
  %2892 = vmatprep.subr.mxu0 0.0
  %2893 = vmatpush1.msra.mxu0 0.0
  %2894 = vmatprep.subr.mxu0 0.0
  %2895 = vmatpush1.msra.mxu0 0.0
  %2896 = vmatprep.subr.mxu0 0.0
  %2897 = vmatpush1.msra.mxu0 0.0
  %2898 = vmatprep.subr.mxu0 0.0
  %2899 = vmatpush1.msra.mxu0 0.0
  %2900 = vmatprep.subr.mxu0 0.0
  %2901 = vmatpush1.msra.mxu0 0.0
  %2902 = vmatprep.subr.mxu0 0.0
  %2903 = vmatpush1.msra.mxu0 0.0
  %2904 = vmatprep.subr.mxu0 0.0
  %2905 = vmatpush1.msra.mxu0 0.0
  %2906 = vmatprep.subr.mxu0 0.0
  %2907 = vmatpush1.msra.mxu0 0.0
  %2908 = vmatprep.subr.mxu0 0.0
  %2909 = vmatpush1.msra.mxu0 0.0
  %2910 = vmatprep.subr.mxu0 0.0
  %2911 = vmatpush1.msra.mxu0 0.0
  %2912 = vmatprep.subr.mxu0 0.0
  %2913 = vmatpush1.msra.mxu0 0.0
  %2914 = vmatprep.subr.mxu0 0.0
  %2915 = vmatpush1.msra.mxu0 0.0
  %2916 = vmatprep.subr.mxu0 0.0
  %2917 = vmatpush1.msra.mxu0 0.0
  %2918 = vmatprep.subr.mxu0 0.0
  %2919 = vmatpush1.msra.mxu0 0.0
  %2920 = vmatprep.subr.mxu0 0.0
  %2921 = vmatpush1.msra.mxu0 0.0
  %2922 = vmatprep.subr.mxu0 0.0
  %2923 = vmatpush1.msra.mxu0 0.0
  %2924 = vmatprep.subr.mxu0 0.0
  %2925 = vmatpush1.msra.mxu0 0.0
  %2926 = vmatprep.subr.mxu0 0.0
  %2927 = vmatpush1.msra.mxu0 0.0
  %2928 = vmatprep.subr.mxu0 0.0
  %2929 = vmatpush1.msra.mxu0 0.0
  %2930 = vmatprep.subr.mxu0 0.0
  %2931 = vmatpush1.msra.mxu0 0.0
  %2932 = vmatprep.subr.mxu0 0.0
  %2933 = vmatpush1.msra.mxu0 0.0
  %2934 = vmatprep.subr.mxu0 0.0
  %2935 = vmatpush1.msra.mxu0 0.0
  %2936 = vmatprep.subr.mxu0 0.0
  %2937 = vmatpush1.msra.mxu0 0.0
  %2938 = vmatprep.subr.mxu0 0.0
  %2939 = vmatpush1.msra.mxu0 0.0
  %2940 = vmatprep.subr.mxu0 0.0
  %2941 = vmatpush1.msra.mxu0 0.0
  %2942 = vmatprep.subr.mxu0 0.0
  %2943 = vmatpush1.msra.mxu0 0.0
  %2944 = vmatprep.subr.mxu0 0.0
  %2945 = vmatpush1.msra.mxu0 0.0
  %2946 = vmatprep.subr.mxu0 0.0
  %2947 = vmatpush1.msra.mxu0 0.0
  %2948 = vmatprep.mubr.f32.mxu0 0.0
  %2949 = vmatmul.mubr.f32.gmra.mrb[0].mxu0 %v2882
  %v2950 = vpop.f32.mrb[0].mxu0
  %v2951 = vadd.f32 0.0, %v2950
  %v2952 = vpop.f32.mrb[0].mxu0
  %2953 = vdwg.mxu0
  %2954 = vrot.lane.b32.xlu0 %v1939, 96
  %v2955 = vpop.permute.xlu0 %2954
  %v2958 = vsel %vm760, %v2643, 0
  %2960 = vmatprep.subr.mxu0 0.0
  %2961 = vmatpush1.msra.mxu0 %v2955
  %2962 = vmatprep.subr.mxu0 0.0
  %2963 = vmatpush1.msra.mxu0 0.0
  %2964 = vmatprep.subr.mxu0 0.0
  %2965 = vmatpush1.msra.mxu0 0.0
  %2966 = vmatprep.subr.mxu0 0.0
  %2967 = vmatpush1.msra.mxu0 0.0
  %2968 = vmatprep.subr.mxu0 0.0
  %2969 = vmatpush1.msra.mxu0 0.0
  %2970 = vmatprep.subr.mxu0 0.0
  %2971 = vmatpush1.msra.mxu0 0.0
  %2972 = vmatprep.subr.mxu0 0.0
  %2973 = vmatpush1.msra.mxu0 0.0
  %2974 = vmatprep.subr.mxu0 0.0
  %2975 = vmatpush1.msra.mxu0 0.0
  %2976 = vmatprep.subr.mxu0 0.0
  %2977 = vmatpush1.msra.mxu0 0.0
  %2978 = vmatprep.subr.mxu0 0.0
  %2979 = vmatpush1.msra.mxu0 0.0
  %2980 = vmatprep.subr.mxu0 0.0
  %2981 = vmatpush1.msra.mxu0 0.0
  %2982 = vmatprep.subr.mxu0 0.0
  %2983 = vmatpush1.msra.mxu0 0.0
  %2984 = vmatprep.subr.mxu0 0.0
  %2985 = vmatpush1.msra.mxu0 0.0
  %2986 = vmatprep.subr.mxu0 0.0
  %2987 = vmatpush1.msra.mxu0 0.0
  %2988 = vmatprep.subr.mxu0 0.0
  %2989 = vmatpush1.msra.mxu0 0.0
  %2990 = vmatprep.subr.mxu0 0.0
  %2991 = vmatpush1.msra.mxu0 0.0
  %2992 = vmatprep.subr.mxu0 0.0
  %2993 = vmatpush1.msra.mxu0 0.0
  %2994 = vmatprep.subr.mxu0 0.0
  %2995 = vmatpush1.msra.mxu0 0.0
  %2996 = vmatprep.subr.mxu0 0.0
  %2997 = vmatpush1.msra.mxu0 0.0
  %2998 = vmatprep.subr.mxu0 0.0
  %2999 = vmatpush1.msra.mxu0 0.0
  %3000 = vmatprep.subr.mxu0 0.0
  %3001 = vmatpush1.msra.mxu0 0.0
  %3002 = vmatprep.subr.mxu0 0.0
  %3003 = vmatpush1.msra.mxu0 0.0
  %3004 = vmatprep.subr.mxu0 0.0
  %3005 = vmatpush1.msra.mxu0 0.0
  %3006 = vmatprep.subr.mxu0 0.0
  %3007 = vmatpush1.msra.mxu0 0.0
  %3008 = vmatprep.subr.mxu0 0.0
  %3009 = vmatpush1.msra.mxu0 0.0
  %3010 = vmatprep.subr.mxu0 0.0
  %3011 = vmatpush1.msra.mxu0 0.0
  %3012 = vmatprep.subr.mxu0 0.0
  %3013 = vmatpush1.msra.mxu0 0.0
  %3014 = vmatprep.subr.mxu0 0.0
  %3015 = vmatpush1.msra.mxu0 0.0
  %3016 = vmatprep.subr.mxu0 0.0
  %3017 = vmatpush1.msra.mxu0 0.0
  %3018 = vmatprep.subr.mxu0 0.0
  %3019 = vmatpush1.msra.mxu0 0.0
  %3020 = vmatprep.subr.mxu0 0.0
  %3021 = vmatpush1.msra.mxu0 0.0
  %3022 = vmatprep.subr.mxu0 0.0
  %3023 = vmatpush1.msra.mxu0 0.0
  %3024 = vmatprep.mubr.f32.mxu0 0.0
  %3025 = vmatmul.mubr.f32.gmra.mrb[0].mxu0 %v2958
  %v3026 = vpop.f32.mrb[0].mxu0
  %v3027 = vadd.f32 0.0, %v3026
  %v3028 = vpop.f32.mrb[0].mxu0
  %3029 = vdwg.mxu0
  %3030 = vrot.lane.b32.xlu0 %v1941, 96
  %v3031 = vpop.permute.xlu0 %3030
  %v3034 = vsel %vm760, %v2645, 0
  %3036 = vmatprep.subr.mxu0 0.0
  %3037 = vmatpush1.msra.mxu0 %v3031
  %3038 = vmatprep.subr.mxu0 0.0
  %3039 = vmatpush1.msra.mxu0 0.0
  %3040 = vmatprep.subr.mxu0 0.0
  %3041 = vmatpush1.msra.mxu0 0.0
  %3042 = vmatprep.subr.mxu0 0.0
  %3043 = vmatpush1.msra.mxu0 0.0
  %3044 = vmatprep.subr.mxu0 0.0
  %3045 = vmatpush1.msra.mxu0 0.0
  %3046 = vmatprep.subr.mxu0 0.0
  %3047 = vmatpush1.msra.mxu0 0.0
  %3048 = vmatprep.subr.mxu0 0.0
  %3049 = vmatpush1.msra.mxu0 0.0
  %3050 = vmatprep.subr.mxu0 0.0
  %3051 = vmatpush1.msra.mxu0 0.0
  %3052 = vmatprep.subr.mxu0 0.0
  %3053 = vmatpush1.msra.mxu0 0.0
  %3054 = vmatprep.subr.mxu0 0.0
  %3055 = vmatpush1.msra.mxu0 0.0
  %3056 = vmatprep.subr.mxu0 0.0
  %3057 = vmatpush1.msra.mxu0 0.0
  %3058 = vmatprep.subr.mxu0 0.0
  %3059 = vmatpush1.msra.mxu0 0.0
  %3060 = vmatprep.subr.mxu0 0.0
  %3061 = vmatpush1.msra.mxu0 0.0
  %3062 = vmatprep.subr.mxu0 0.0
  %3063 = vmatpush1.msra.mxu0 0.0
  %3064 = vmatprep.subr.mxu0 0.0
  %3065 = vmatpush1.msra.mxu0 0.0
  %3066 = vmatprep.subr.mxu0 0.0
  %3067 = vmatpush1.msra.mxu0 0.0
  %3068 = vmatprep.subr.mxu0 0.0
  %3069 = vmatpush1.msra.mxu0 0.0
  %3070 = vmatprep.subr.mxu0 0.0
  %3071 = vmatpush1.msra.mxu0 0.0
  %3072 = vmatprep.subr.mxu0 0.0
  %3073 = vmatpush1.msra.mxu0 0.0
  %3074 = vmatprep.subr.mxu0 0.0
  %3075 = vmatpush1.msra.mxu0 0.0
  %3076 = vmatprep.subr.mxu0 0.0
  %3077 = vmatpush1.msra.mxu0 0.0
  %3078 = vmatprep.subr.mxu0 0.0
  %3079 = vmatpush1.msra.mxu0 0.0
  %3080 = vmatprep.subr.mxu0 0.0
  %3081 = vmatpush1.msra.mxu0 0.0
  %3082 = vmatprep.subr.mxu0 0.0
  %3083 = vmatpush1.msra.mxu0 0.0
  %3084 = vmatprep.subr.mxu0 0.0
  %3085 = vmatpush1.msra.mxu0 0.0
  %3086 = vmatprep.subr.mxu0 0.0
  %3087 = vmatpush1.msra.mxu0 0.0
  %3088 = vmatprep.subr.mxu0 0.0
  %3089 = vmatpush1.msra.mxu0 0.0
  %3090 = vmatprep.subr.mxu0 0.0
  %3091 = vmatpush1.msra.mxu0 0.0
  %3092 = vmatprep.subr.mxu0 0.0
  %3093 = vmatpush1.msra.mxu0 0.0
  %3094 = vmatprep.subr.mxu0 0.0
  %3095 = vmatpush1.msra.mxu0 0.0
  %3096 = vmatprep.subr.mxu0 0.0
  %3097 = vmatpush1.msra.mxu0 0.0
  %3098 = vmatprep.subr.mxu0 0.0
  %3099 = vmatpush1.msra.mxu0 0.0
  %3100 = vmatprep.mubr.f32.mxu0 0.0
  %3101 = vmatmul.mubr.f32.gmra.mrb[0].mxu0 %v3034
  %v3102 = vpop.f32.mrb[0].mxu0
  %v3103 = vadd.f32 0.0, %v3102
  %v3104 = vpop.f32.mrb[0].mxu0
  %3105 = vdwg.mxu0
  %3106 = vrot.lane.b32.xlu0 %v1943, 96
  %v3107 = vpop.permute.xlu0 %3106
  %v3110 = vsel %vm760, %v2647, 0
  %3112 = vmatprep.subr.mxu0 0.0
  %3113 = vmatpush1.msra.mxu0 %v3107
  %3114 = vmatprep.subr.mxu0 0.0
  %3115 = vmatpush1.msra.mxu0 0.0
  %3116 = vmatprep.subr.mxu0 0.0
  %3117 = vmatpush1.msra.mxu0 0.0
  %3118 = vmatprep.subr.mxu0 0.0
  %3119 = vmatpush1.msra.mxu0 0.0
  %3120 = vmatprep.subr.mxu0 0.0
  %3121 = vmatpush1.msra.mxu0 0.0
  %3122 = vmatprep.subr.mxu0 0.0
  %3123 = vmatpush1.msra.mxu0 0.0
  %3124 = vmatprep.subr.mxu0 0.0
  %3125 = vmatpush1.msra.mxu0 0.0
  %3126 = vmatprep.subr.mxu0 0.0
  %3127 = vmatpush1.msra.mxu0 0.0
  %3128 = vmatprep.subr.mxu0 0.0
  %3129 = vmatpush1.msra.mxu0 0.0
  %3130 = vmatprep.subr.mxu0 0.0
  %3131 = vmatpush1.msra.mxu0 0.0
  %3132 = vmatprep.subr.mxu0 0.0
  %3133 = vmatpush1.msra.mxu0 0.0
  %3134 = vmatprep.subr.mxu0 0.0
  %3135 = vmatpush1.msra.mxu0 0.0
  %3136 = vmatprep.subr.mxu0 0.0
  %3137 = vmatpush1.msra.mxu0 0.0
  %3138 = vmatprep.subr.mxu0 0.0
  %3139 = vmatpush1.msra.mxu0 0.0
  %3140 = vmatprep.subr.mxu0 0.0
  %3141 = vmatpush1.msra.mxu0 0.0
  %3142 = vmatprep.subr.mxu0 0.0
  %3143 = vmatpush1.msra.mxu0 0.0
  %3144 = vmatprep.subr.mxu0 0.0
  %3145 = vmatpush1.msra.mxu0 0.0
  %3146 = vmatprep.subr.mxu0 0.0
  %3147 = vmatpush1.msra.mxu0 0.0
  %3148 = vmatprep.subr.mxu0 0.0
  %3149 = vmatpush1.msra.mxu0 0.0
  %3150 = vmatprep.subr.mxu0 0.0
  %3151 = vmatpush1.msra.mxu0 0.0
  %3152 = vmatprep.subr.mxu0 0.0
  %3153 = vmatpush1.msra.mxu0 0.0
  %3154 = vmatprep.subr.mxu0 0.0
  %3155 = vmatpush1.msra.mxu0 0.0
  %3156 = vmatprep.subr.mxu0 0.0
  %3157 = vmatpush1.msra.mxu0 0.0
  %3158 = vmatprep.subr.mxu0 0.0
  %3159 = vmatpush1.msra.mxu0 0.0
  %3160 = vmatprep.subr.mxu0 0.0
  %3161 = vmatpush1.msra.mxu0 0.0
  %3162 = vmatprep.subr.mxu0 0.0
  %3163 = vmatpush1.msra.mxu0 0.0
  %3164 = vmatprep.subr.mxu0 0.0
  %3165 = vmatpush1.msra.mxu0 0.0
  %3166 = vmatprep.subr.mxu0 0.0
  %3167 = vmatpush1.msra.mxu0 0.0
  %3168 = vmatprep.subr.mxu0 0.0
  %3169 = vmatpush1.msra.mxu0 0.0
  %3170 = vmatprep.subr.mxu0 0.0
  %3171 = vmatpush1.msra.mxu0 0.0
  %3172 = vmatprep.subr.mxu0 0.0
  %3173 = vmatpush1.msra.mxu0 0.0
  %3174 = vmatprep.subr.mxu0 0.0
  %3175 = vmatpush1.msra.mxu0 0.0
  %3176 = vmatprep.mubr.f32.mxu0 0.0
  %3177 = vmatmul.mubr.f32.gmra.mrb[0].mxu0 %v3110
  %v3178 = vpop.f32.mrb[0].mxu0
  %v3179 = vadd.f32 0.0, %v3178
  %v3180 = vpop.f32.mrb[0].mxu0
  %3181 = vdwg.mxu0
  %3182 = vrot.lane.b32.xlu0 %v1945, 96
  %v3183 = vpop.permute.xlu0 %3182
  %v3186 = vsel %vm760, %v2649, 0
  %3188 = vmatprep.subr.mxu0 0.0
  %3189 = vmatpush1.msra.mxu0 %v3183
  %3190 = vmatprep.subr.mxu0 0.0
  %3191 = vmatpush1.msra.mxu0 0.0
  %3192 = vmatprep.subr.mxu0 0.0
  %3193 = vmatpush1.msra.mxu0 0.0
  %3194 = vmatprep.subr.mxu0 0.0
  %3195 = vmatpush1.msra.mxu0 0.0
  %3196 = vmatprep.subr.mxu0 0.0
  %3197 = vmatpush1.msra.mxu0 0.0
  %3198 = vmatprep.subr.mxu0 0.0
  %3199 = vmatpush1.msra.mxu0 0.0
  %3200 = vmatprep.subr.mxu0 0.0
  %3201 = vmatpush1.msra.mxu0 0.0
  %3202 = vmatprep.subr.mxu0 0.0
  %3203 = vmatpush1.msra.mxu0 0.0
  %3204 = vmatprep.subr.mxu0 0.0
  %3205 = vmatpush1.msra.mxu0 0.0
  %3206 = vmatprep.subr.mxu0 0.0
  %3207 = vmatpush1.msra.mxu0 0.0
  %3208 = vmatprep.subr.mxu0 0.0
  %3209 = vmatpush1.msra.mxu0 0.0
  %3210 = vmatprep.subr.mxu0 0.0
  %3211 = vmatpush1.msra.mxu0 0.0
  %3212 = vmatprep.subr.mxu0 0.0
  %3213 = vmatpush1.msra.mxu0 0.0
  %3214 = vmatprep.subr.mxu0 0.0
  %3215 = vmatpush1.msra.mxu0 0.0
  %3216 = vmatprep.subr.mxu0 0.0
  %3217 = vmatpush1.msra.mxu0 0.0
  %3218 = vmatprep.subr.mxu0 0.0
  %3219 = vmatpush1.msra.mxu0 0.0
  %3220 = vmatprep.subr.mxu0 0.0
  %3221 = vmatpush1.msra.mxu0 0.0
  %3222 = vmatprep.subr.mxu0 0.0
  %3223 = vmatpush1.msra.mxu0 0.0
  %3224 = vmatprep.subr.mxu0 0.0
  %3225 = vmatpush1.msra.mxu0 0.0
  %3226 = vmatprep.subr.mxu0 0.0
  %3227 = vmatpush1.msra.mxu0 0.0
  %3228 = vmatprep.subr.mxu0 0.0
  %3229 = vmatpush1.msra.mxu0 0.0
  %3230 = vmatprep.subr.mxu0 0.0
  %3231 = vmatpush1.msra.mxu0 0.0
  %3232 = vmatprep.subr.mxu0 0.0
  %3233 = vmatpush1.msra.mxu0 0.0
  %3234 = vmatprep.subr.mxu0 0.0
  %3235 = vmatpush1.msra.mxu0 0.0
  %3236 = vmatprep.subr.mxu0 0.0
  %3237 = vmatpush1.msra.mxu0 0.0
  %3238 = vmatprep.subr.mxu0 0.0
  %3239 = vmatpush1.msra.mxu0 0.0
  %3240 = vmatprep.subr.mxu0 0.0
  %3241 = vmatpush1.msra.mxu0 0.0
  %3242 = vmatprep.subr.mxu0 0.0
  %3243 = vmatpush1.msra.mxu0 0.0
  %3244 = vmatprep.subr.mxu0 0.0
  %3245 = vmatpush1.msra.mxu0 0.0
  %3246 = vmatprep.subr.mxu0 0.0
  %3247 = vmatpush1.msra.mxu0 0.0
  %3248 = vmatprep.subr.mxu0 0.0
  %3249 = vmatpush1.msra.mxu0 0.0
  %3250 = vmatprep.subr.mxu0 0.0
  %3251 = vmatpush1.msra.mxu0 0.0
  %3252 = vmatprep.mubr.f32.mxu0 0.0
  %3253 = vmatmul.mubr.f32.gmra.mrb[0].mxu0 %v3186
  %v3254 = vpop.f32.mrb[0].mxu0
  %v3255 = vadd.f32 0.0, %v3254
  %v3256 = vpop.f32.mrb[0].mxu0
  %3257 = vdwg.mxu0
  %3260 = vrot.lane.b32.xlu0 %v2875, 4
  %v3261 = vpop.permute.xlu0 %3260
  %3262 = vrot.lane.b32.xlu0 %v2951, 4
  %v3263 = vpop.permute.xlu0 %3262
  %3268 = vrot.lane.b32.xlu0 %v3027, 8
  %v3269 = vpop.permute.xlu0 %3268
  %3270 = vrot.lane.b32.xlu0 %v3103, 8
  %v3271 = vpop.permute.xlu0 %3270
  %3276 = vrot.lane.b32.xlu0 %v3179, 12
  %v3277 = vpop.permute.xlu0 %3276
  %3278 = vrot.lane.b32.xlu0 %v3255, 12
  %v3279 = vpop.permute.xlu0 %3278
  %v3282 = vsel %vm145, %v2723, %v3261
  %v3283 = vsel %vm145, %v2799, %v3263
  %v3284 = vsel %vm760, %v3282, %v3269
  %v3285 = vsel %vm760, %v3283, %v3271
  %v3286 = vsel %vm1485, %v3284, %v3277
  %v3287 = vsel %vm1485, %v3285, %v3279
  %s3288 = scalar_lea.vmem %s3, 16
  %v3289 = vld [vmem:[%s3288] sm:$0xff]
  %v3290 = vld [vmem:[%s3288 + $0x8] sm:$0xff]
  %v3291 = vlaneseq
  %v3292 = vshrl.u32 %v3291, 7
  %v3293 = vsub.s32 0, %v3292
  %v3294 = vrot.slane %v1839, %v3293
  %v3296 = vsel %vm47, %v3286, 0
  %v3299 = vsel %vm47, %v3287, 0
  %3301 = vmatprep.subr.mxu0 0.0
  %3302 = vmatpush1.msra.mxu0 %v3289
  %3303 = vmatprep.subr.mxu0 0.0
  %3304 = vmatpush1.msra.mxu0 %v3290
  %3305 = vmatprep.subr.mxu0 0.0
  %3306 = vmatpush1.msra.mxu0 0.0
  %3307 = vmatprep.subr.mxu0 0.0
  %3308 = vmatpush1.msra.mxu0 0.0
  %3309 = vmatprep.subr.mxu0 0.0
  %3310 = vmatpush1.msra.mxu0 0.0
  %3311 = vmatprep.subr.mxu0 0.0
  %3312 = vmatpush1.msra.mxu0 0.0
  %3313 = vmatprep.subr.mxu0 0.0
  %3314 = vmatpush1.msra.mxu0 0.0
  %3315 = vmatprep.subr.mxu0 0.0
  %3316 = vmatpush1.msra.mxu0 0.0
  %3317 = vmatprep.subr.mxu0 0.0
  %3318 = vmatpush1.msra.mxu0 0.0
  %3319 = vmatprep.subr.mxu0 0.0
  %3320 = vmatpush1.msra.mxu0 0.0
  %3321 = vmatprep.subr.mxu0 0.0
  %3322 = vmatpush1.msra.mxu0 0.0
  %3323 = vmatprep.subr.mxu0 0.0
  %3324 = vmatpush1.msra.mxu0 0.0
  %3325 = vmatprep.subr.mxu0 0.0
  %3326 = vmatpush1.msra.mxu0 0.0
  %3327 = vmatprep.subr.mxu0 0.0
  %3328 = vmatpush1.msra.mxu0 0.0
  %3329 = vmatprep.subr.mxu0 0.0
  %3330 = vmatpush1.msra.mxu0 0.0
  %3331 = vmatprep.subr.mxu0 0.0
  %3332 = vmatpush1.msra.mxu0 0.0
  %3333 = vmatprep.subr.mxu0 0.0
  %3334 = vmatpush1.msra.mxu0 0.0
  %3335 = vmatprep.subr.mxu0 0.0
  %3336 = vmatpush1.msra.mxu0 0.0
  %3337 = vmatprep.subr.mxu0 0.0
  %3338 = vmatpush1.msra.mxu0 0.0
  %3339 = vmatprep.subr.mxu0 0.0
  %3340 = vmatpush1.msra.mxu0 0.0
  %3341 = vmatprep.subr.mxu0 0.0
  %3342 = vmatpush1.msra.mxu0 0.0
  %3343 = vmatprep.subr.mxu0 0.0
  %3344 = vmatpush1.msra.mxu0 0.0
  %3345 = vmatprep.subr.mxu0 0.0
  %3346 = vmatpush1.msra.mxu0 0.0
  %3347 = vmatprep.subr.mxu0 0.0
  %3348 = vmatpush1.msra.mxu0 0.0
  %3349 = vmatprep.subr.mxu0 0.0
  %3350 = vmatpush1.msra.mxu0 0.0
  %3351 = vmatprep.subr.mxu0 0.0
  %3352 = vmatpush1.msra.mxu0 0.0
  %3353 = vmatprep.subr.mxu0 0.0
  %3354 = vmatpush1.msra.mxu0 0.0
  %3355 = vmatprep.subr.mxu0 0.0
  %3356 = vmatpush1.msra.mxu0 0.0
  %3357 = vmatprep.subr.mxu0 0.0
  %3358 = vmatpush1.msra.mxu0 0.0
  %3359 = vmatprep.subr.mxu0 0.0
  %3360 = vmatpush1.msra.mxu0 0.0
  %3361 = vmatprep.subr.mxu0 0.0
  %3362 = vmatpush1.msra.mxu0 0.0
  %3363 = vmatprep.subr.mxu0 0.0
  %3364 = vmatpush1.msra.mxu0 0.0
  %3365 = vmatprep.mubr.f32.mxu0 0.0
  %3366 = vmatmul.mubr.f32.gmra.mrb[0].mxu0 %v3296
  %v3367 = vpop.f32.mrb[0].mxu0
  %v3368 = vadd.f32 %v3294, %v3367
  %v3369 = vpop.f32.mrb[0].mxu0
  %3370 = vmatprep.mubr.f32.mxu0 0.0
  %3371 = vmatmul.mubr.f32.gmra.mrb[0].mxu0 %v3299
  %v3372 = vpop.f32.mrb[0].mxu0
  %v3373 = vadd.f32 %v3294, %v3372
  %v3374 = vpop.f32.mrb[0].mxu0
  %3375 = vdwg.mxu0
  %v3376 = vadd.f32 %v1836, %v3368
  %v3377 = vadd.f32 %v1837, %v3373
  %v3378 = vsel %vm47, %v3376, 0.0
  %3379 = vadd.xlane.f32.xlu0 %v3378
  %v3380 = vpop.xlane.xlu0 %3379
  %v3381 = vsel %vm47, %v3377, 0.0
  %3382 = vadd.xlane.f32.xlu0 %v3381
  %v3383 = vpop.xlane.xlu0 %3382
  %v3384 = vmul.f32 %v3380, %v1583
  %v3385 = vmul.f32 %v3383, %v1583
  %v3386 = vsub.f32 %v3376, %v3384
  %v3387 = vsub.f32 %v3377, %v3385
  %v3388 = vmul.f32 %v3386, %v3386
  %v3389 = vmul.f32 %v3387, %v3387
  %v3390 = vsel %vm47, %v3388, 0.0
  %3391 = vadd.xlane.f32.xlu0 %v3390
  %v3392 = vpop.xlane.xlu0 %3391
  %v3393 = vsel %vm47, %v3389, 0.0
  %3394 = vadd.xlane.f32.xlu0 %v3393
  %v3395 = vpop.xlane.xlu0 %3394
  %v3396 = vmul.f32 %v3392, %v1583
  %v3397 = vmul.f32 %v3395, %v1583
  %v3398 = vadd.f32 %v3396, 1e-05
  %v3399 = vadd.f32 %v3397, 1e-05
  %v3400 = vrsqrt.pop %v3398
  %v3401 = vrsqrt.pop %v3399
  %v3402 = vmul.f32 %v3386, %v3400
  %v3403 = vmul.f32 %v3387, %v3401
  %v3404 = vlaneseq
  %v3405 = vshrl.u32 %v3404, 7
  %v3406 = vsub.s32 1, %v3405
  %v3407 = vrot.slane %v1839, %v3406
  %v3408 = vmul.f32 %v3402, %v3407
  %v3409 = vmul.f32 %v3403, %v3407
  %v3410 = vlaneseq
  %v3411 = vshrl.u32 %v3410, 7
  %v3412 = vsub.s32 2, %v3411
  %v3413 = vrot.slane %v1839, %v3412
  %v3414 = vadd.f32 %v3408, %v3413
  %v3415 = vadd.f32 %v3409, %v3413
  %s3416 = scalar_lea.vmem %s4, 16
  %v3417 = vld [vmem:[%s3416] sm:$0xff]
  %v3418 = vld [vmem:[%s3416 + $0x8] sm:$0xff]
  %s3419 = scalar_lea.vmem %s5, 1
  %v3420 = vld [vmem:[%s3419] sm:$0x1]
  %v3422 = vlaneseq
  %v3423 = vshrl.u32 %v3422, 7
  %v3424 = vsub.s32 0, %v3423
  %v3425 = vrot.slane %v3420, %v3424
  %v3428 = vsel %vm47, %v3414, 0
  %v3431 = vsel %vm47, %v3415, 0
  %3433 = vmatprep.subr.mxu0 0.0
  %3434 = vmatpush1.msra.mxu0 %v3417
  %3435 = vmatprep.subr.mxu0 0.0
  %3436 = vmatpush1.msra.mxu0 %v3418
  %3437 = vmatprep.subr.mxu0 0.0
  %3438 = vmatpush1.msra.mxu0 0.0
  %3439 = vmatprep.subr.mxu0 0.0
  %3440 = vmatpush1.msra.mxu0 0.0
  %3441 = vmatprep.subr.mxu0 0.0
  %3442 = vmatpush1.msra.mxu0 0.0
  %3443 = vmatprep.subr.mxu0 0.0
  %3444 = vmatpush1.msra.mxu0 0.0
  %3445 = vmatprep.subr.mxu0 0.0
  %3446 = vmatpush1.msra.mxu0 0.0
  %3447 = vmatprep.subr.mxu0 0.0
  %3448 = vmatpush1.msra.mxu0 0.0
  %3449 = vmatprep.subr.mxu0 0.0
  %3450 = vmatpush1.msra.mxu0 0.0
  %3451 = vmatprep.subr.mxu0 0.0
  %3452 = vmatpush1.msra.mxu0 0.0
  %3453 = vmatprep.subr.mxu0 0.0
  %3454 = vmatpush1.msra.mxu0 0.0
  %3455 = vmatprep.subr.mxu0 0.0
  %3456 = vmatpush1.msra.mxu0 0.0
  %3457 = vmatprep.subr.mxu0 0.0
  %3458 = vmatpush1.msra.mxu0 0.0
  %3459 = vmatprep.subr.mxu0 0.0
  %3460 = vmatpush1.msra.mxu0 0.0
  %3461 = vmatprep.subr.mxu0 0.0
  %3462 = vmatpush1.msra.mxu0 0.0
  %3463 = vmatprep.subr.mxu0 0.0
  %3464 = vmatpush1.msra.mxu0 0.0
  %3465 = vmatprep.subr.mxu0 0.0
  %3466 = vmatpush1.msra.mxu0 0.0
  %3467 = vmatprep.subr.mxu0 0.0
  %3468 = vmatpush1.msra.mxu0 0.0
  %3469 = vmatprep.subr.mxu0 0.0
  %3470 = vmatpush1.msra.mxu0 0.0
  %3471 = vmatprep.subr.mxu0 0.0
  %3472 = vmatpush1.msra.mxu0 0.0
  %3473 = vmatprep.subr.mxu0 0.0
  %3474 = vmatpush1.msra.mxu0 0.0
  %3475 = vmatprep.subr.mxu0 0.0
  %3476 = vmatpush1.msra.mxu0 0.0
  %3477 = vmatprep.subr.mxu0 0.0
  %3478 = vmatpush1.msra.mxu0 0.0
  %3479 = vmatprep.subr.mxu0 0.0
  %3480 = vmatpush1.msra.mxu0 0.0
  %3481 = vmatprep.subr.mxu0 0.0
  %3482 = vmatpush1.msra.mxu0 0.0
  %3483 = vmatprep.subr.mxu0 0.0
  %3484 = vmatpush1.msra.mxu0 0.0
  %3485 = vmatprep.subr.mxu0 0.0
  %3486 = vmatpush1.msra.mxu0 0.0
  %3487 = vmatprep.subr.mxu0 0.0
  %3488 = vmatpush1.msra.mxu0 0.0
  %3489 = vmatprep.subr.mxu0 0.0
  %3490 = vmatpush1.msra.mxu0 0.0
  %3491 = vmatprep.subr.mxu0 0.0
  %3492 = vmatpush1.msra.mxu0 0.0
  %3493 = vmatprep.subr.mxu0 0.0
  %3494 = vmatpush1.msra.mxu0 0.0
  %3495 = vmatprep.subr.mxu0 0.0
  %3496 = vmatpush1.msra.mxu0 0.0
  %3497 = vmatprep.mubr.f32.mxu0 0.0
  %3498 = vmatmul.mubr.f32.gmra.mrb[0].mxu0 %v3428
  %v3499 = vpop.f32.mrb[0].mxu0
  %v3500 = vadd.f32 %v3425, %v3499
  %v3501 = vpop.f32.mrb[0].mxu0
  %3502 = vmatprep.mubr.f32.mxu0 0.0
  %3503 = vmatmul.mubr.f32.gmra.mrb[0].mxu0 %v3431
  %v3504 = vpop.f32.mrb[0].mxu0
  %v3505 = vadd.f32 %v3425, %v3504
  %v3506 = vpop.f32.mrb[0].mxu0
  %3507 = vdwg.mxu0
  %v3508 = vmax.f32 %v3500, 0.0
  %v3509 = vmax.f32 %v3505, 0.0
  %s3510 = scalar_lea.vmem %s6, 32
  %v3511 = vld [vmem:[%s3510] sm:$0xff]
  %v3512 = vld [vmem:[%s3510 + $0x8] sm:$0xff]
  %v3513 = vld [vmem:[%s3510 + $0x10] sm:$0xff]
  %v3514 = vld [vmem:[%s3510 + $0x18] sm:$0xff]
  %v3515 = vlaneseq
  %v3516 = vshrl.u32 %v3515, 7
  %v3517 = vsub.s32 3, %v3516
  %v3518 = vrot.slane %v1839, %v3517
  %v3520 = vsel %vm1716, %v3508, 0
  %v3523 = vsel %vm1716, %v3509, 0
  %3525 = vmatprep.subr.mxu0 0.0
  %3526 = vmatpush1.msra.mxu0 %v3511
  %3527 = vmatprep.subr.mxu0 0.0
  %3528 = vmatpush1.msra.mxu0 %v3512
  %3529 = vmatprep.subr.mxu0 0.0
  %3530 = vmatpush1.msra.mxu0 %v3513
  %3531 = vmatprep.subr.mxu0 0.0
  %3532 = vmatpush1.msra.mxu0 %v3514
  %3533 = vmatprep.subr.mxu0 0.0
  %3534 = vmatpush1.msra.mxu0 0.0
  %3535 = vmatprep.subr.mxu0 0.0
  %3536 = vmatpush1.msra.mxu0 0.0
  %3537 = vmatprep.subr.mxu0 0.0
  %3538 = vmatpush1.msra.mxu0 0.0
  %3539 = vmatprep.subr.mxu0 0.0
  %3540 = vmatpush1.msra.mxu0 0.0
  %3541 = vmatprep.subr.mxu0 0.0
  %3542 = vmatpush1.msra.mxu0 0.0
  %3543 = vmatprep.subr.mxu0 0.0
  %3544 = vmatpush1.msra.mxu0 0.0
  %3545 = vmatprep.subr.mxu0 0.0
  %3546 = vmatpush1.msra.mxu0 0.0
  %3547 = vmatprep.subr.mxu0 0.0
  %3548 = vmatpush1.msra.mxu0 0.0
  %3549 = vmatprep.subr.mxu0 0.0
  %3550 = vmatpush1.msra.mxu0 0.0
  %3551 = vmatprep.subr.mxu0 0.0
  %3552 = vmatpush1.msra.mxu0 0.0
  %3553 = vmatprep.subr.mxu0 0.0
  %3554 = vmatpush1.msra.mxu0 0.0
  %3555 = vmatprep.subr.mxu0 0.0
  %3556 = vmatpush1.msra.mxu0 0.0
  %3557 = vmatprep.subr.mxu0 0.0
  %3558 = vmatpush1.msra.mxu0 0.0
  %3559 = vmatprep.subr.mxu0 0.0
  %3560 = vmatpush1.msra.mxu0 0.0
  %3561 = vmatprep.subr.mxu0 0.0
  %3562 = vmatpush1.msra.mxu0 0.0
  %3563 = vmatprep.subr.mxu0 0.0
  %3564 = vmatpush1.msra.mxu0 0.0
  %3565 = vmatprep.subr.mxu0 0.0
  %3566 = vmatpush1.msra.mxu0 0.0
  %3567 = vmatprep.subr.mxu0 0.0
  %3568 = vmatpush1.msra.mxu0 0.0
  %3569 = vmatprep.subr.mxu0 0.0
  %3570 = vmatpush1.msra.mxu0 0.0
  %3571 = vmatprep.subr.mxu0 0.0
  %3572 = vmatpush1.msra.mxu0 0.0
  %3573 = vmatprep.subr.mxu0 0.0
  %3574 = vmatpush1.msra.mxu0 0.0
  %3575 = vmatprep.subr.mxu0 0.0
  %3576 = vmatpush1.msra.mxu0 0.0
  %3577 = vmatprep.subr.mxu0 0.0
  %3578 = vmatpush1.msra.mxu0 0.0
  %3579 = vmatprep.subr.mxu0 0.0
  %3580 = vmatpush1.msra.mxu0 0.0
  %3581 = vmatprep.subr.mxu0 0.0
  %3582 = vmatpush1.msra.mxu0 0.0
  %3583 = vmatprep.subr.mxu0 0.0
  %3584 = vmatpush1.msra.mxu0 0.0
  %3585 = vmatprep.subr.mxu0 0.0
  %3586 = vmatpush1.msra.mxu0 0.0
  %3587 = vmatprep.subr.mxu0 0.0
  %3588 = vmatpush1.msra.mxu0 0.0
  %3589 = vmatprep.mubr.f32.mxu0 0.0
  %3590 = vmatmul.mubr.f32.gmra.mrb[0].mxu0 %v3520
  %v3591 = vpop.f32.mrb[0].mxu0
  %v3592 = vadd.f32 %v3518, %v3591
  %v3593 = vpop.f32.mrb[0].mxu0
  %3594 = vmatprep.mubr.f32.mxu0 0.0
  %3595 = vmatmul.mubr.f32.gmra.mrb[0].mxu0 %v3523
  %v3596 = vpop.f32.mrb[0].mxu0
  %v3597 = vadd.f32 %v3518, %v3596
  %v3598 = vpop.f32.mrb[0].mxu0
  %3599 = vdwg.mxu0
  %v3600 = vadd.f32 %v3414, %v3592
  %v3601 = vadd.f32 %v3415, %v3597
  %v3602 = vsel %vm47, %v3600, 0.0
  %3603 = vadd.xlane.f32.xlu0 %v3602
  %v3604 = vpop.xlane.xlu0 %3603
  %v3605 = vsel %vm47, %v3601, 0.0
  %3606 = vadd.xlane.f32.xlu0 %v3605
  %v3607 = vpop.xlane.xlu0 %3606
  %v3608 = vmul.f32 %v3604, %v1583
  %v3609 = vmul.f32 %v3607, %v1583
  %v3610 = vsub.f32 %v3600, %v3608
  %v3611 = vsub.f32 %v3601, %v3609
  %v3612 = vmul.f32 %v3610, %v3610
  %v3613 = vmul.f32 %v3611, %v3611
  %v3614 = vsel %vm47, %v3612, 0.0
  %3615 = vadd.xlane.f32.xlu0 %v3614
  %v3616 = vpop.xlane.xlu0 %3615
  %v3617 = vsel %vm47, %v3613, 0.0
  %3618 = vadd.xlane.f32.xlu0 %v3617
  %v3619 = vpop.xlane.xlu0 %3618
  %v3620 = vmul.f32 %v3616, %v1583
  %v3621 = vmul.f32 %v3619, %v1583
  %v3622 = vadd.f32 %v3620, 1e-05
  %v3623 = vadd.f32 %v3621, 1e-05
  %v3624 = vrsqrt.pop %v3622
  %v3625 = vrsqrt.pop %v3623
  %v3626 = vmul.f32 %v3610, %v3624
  %v3627 = vmul.f32 %v3611, %v3625
  %v3628 = vlaneseq
  %v3629 = vshrl.u32 %v3628, 7
  %v3630 = vsub.s32 4, %v3629
  %v3631 = vrot.slane %v1839, %v3630
  %v3632 = vmul.f32 %v3626, %v3631
  %v3633 = vmul.f32 %v3627, %v3631
  %v3634 = vlaneseq
  %v3635 = vshrl.u32 %v3634, 7
  %v3636 = vsub.s32 5, %v3635
  %v3637 = vrot.slane %v1839, %v3636
  %v3638 = vadd.f32 %v3632, %v3637
  %v3639 = vadd.f32 %v3633, %v3637
  %v3640 = vld [vmem:[%s8] sm:$0xff]
  %v3641 = vld [vmem:[%s8 + $0x8] sm:$0xff]
  %v3642 = vld [vmem:[%s9] sm:$0x1]
  %v3644 = vlaneseq
  %v3645 = vshrl.u32 %v3644, 7
  %v3646 = vsub.s32 0, %v3645
  %v3647 = vrot.slane %v3642, %v3646
  %v3651 = vrot.slane %v3638, 7
  %v3652 = vrot.slane %v3639, 6
  %vm3653 = vcmask 1041409
  %v3654 = vsel %vm3653, %v3652, %v3651
  %v3655 = vsel %vm47, %v3654, 0
  %3657 = vmatprep.subr.mxu0 0.0
  %3658 = vmatpush1.msra.mxu0 %v3640
  %3659 = vmatprep.subr.mxu0 0.0
  %3660 = vmatpush1.msra.mxu0 %v3641
  %3661 = vmatprep.subr.mxu0 0.0
  %3662 = vmatpush1.msra.mxu0 0.0
  %3663 = vmatprep.subr.mxu0 0.0
  %3664 = vmatpush1.msra.mxu0 0.0
  %3665 = vmatprep.subr.mxu0 0.0
  %3666 = vmatpush1.msra.mxu0 0.0
  %3667 = vmatprep.subr.mxu0 0.0
  %3668 = vmatpush1.msra.mxu0 0.0
  %3669 = vmatprep.subr.mxu0 0.0
  %3670 = vmatpush1.msra.mxu0 0.0
  %3671 = vmatprep.subr.mxu0 0.0
  %3672 = vmatpush1.msra.mxu0 0.0
  %3673 = vmatprep.subr.mxu0 0.0
  %3674 = vmatpush1.msra.mxu0 0.0
  %3675 = vmatprep.subr.mxu0 0.0
  %3676 = vmatpush1.msra.mxu0 0.0
  %3677 = vmatprep.subr.mxu0 0.0
  %3678 = vmatpush1.msra.mxu0 0.0
  %3679 = vmatprep.subr.mxu0 0.0
  %3680 = vmatpush1.msra.mxu0 0.0
  %3681 = vmatprep.subr.mxu0 0.0
  %3682 = vmatpush1.msra.mxu0 0.0
  %3683 = vmatprep.subr.mxu0 0.0
  %3684 = vmatpush1.msra.mxu0 0.0
  %3685 = vmatprep.subr.mxu0 0.0
  %3686 = vmatpush1.msra.mxu0 0.0
  %3687 = vmatprep.subr.mxu0 0.0
  %3688 = vmatpush1.msra.mxu0 0.0
  %3689 = vmatprep.subr.mxu0 0.0
  %3690 = vmatpush1.msra.mxu0 0.0
  %3691 = vmatprep.subr.mxu0 0.0
  %3692 = vmatpush1.msra.mxu0 0.0
  %3693 = vmatprep.subr.mxu0 0.0
  %3694 = vmatpush1.msra.mxu0 0.0
  %3695 = vmatprep.subr.mxu0 0.0
  %3696 = vmatpush1.msra.mxu0 0.0
  %3697 = vmatprep.subr.mxu0 0.0
  %3698 = vmatpush1.msra.mxu0 0.0
  %3699 = vmatprep.subr.mxu0 0.0
  %3700 = vmatpush1.msra.mxu0 0.0
  %3701 = vmatprep.subr.mxu0 0.0
  %3702 = vmatpush1.msra.mxu0 0.0
  %3703 = vmatprep.subr.mxu0 0.0
  %3704 = vmatpush1.msra.mxu0 0.0
  %3705 = vmatprep.subr.mxu0 0.0
  %3706 = vmatpush1.msra.mxu0 0.0
  %3707 = vmatprep.subr.mxu0 0.0
  %3708 = vmatpush1.msra.mxu0 0.0
  %3709 = vmatprep.subr.mxu0 0.0
  %3710 = vmatpush1.msra.mxu0 0.0
  %3711 = vmatprep.subr.mxu0 0.0
  %3712 = vmatpush1.msra.mxu0 0.0
  %3713 = vmatprep.subr.mxu0 0.0
  %3714 = vmatpush1.msra.mxu0 0.0
  %3715 = vmatprep.subr.mxu0 0.0
  %3716 = vmatpush1.msra.mxu0 0.0
  %3717 = vmatprep.subr.mxu0 0.0
  %3718 = vmatpush1.msra.mxu0 0.0
  %3719 = vmatprep.subr.mxu0 0.0
  %3720 = vmatpush1.msra.mxu0 0.0
  %3721 = vmatprep.mubr.f32.mxu0 0.0
  %3722 = vmatmul.mubr.f32.gmra.mrb[0].mxu0 %v3655
  %v3723 = vpop.f32.mrb[0].mxu0
  %v3724 = vadd.f32 %v3647, %v3723
  %v3725 = vpop.f32.mrb[0].mxu0
  %3726 = vdwg.mxu0
  %3727 = vst [vmem:[%s10] sm:$0x3] %v3724
  // Predicated region
  $region42: #{transformer_model_forward.1} parent=0 // pred_check
    _
  $region43: #{transformer_model_forward.1} parent=0 // pred_check_branch
    %3729 = sbr.rel (0) target = $region45
  $region44: #{transformer_model_forward.1} parent=0 // pred_region
    _
  $region45: #{transformer_model_forward.1} parent=0 // pred_fallthru
    _
  // Predicated region
  $region46: #{transformer_model_forward.1} parent=0 // pred_check
    _
  $region47: #{transformer_model_forward.1} parent=0 // pred_check_branch
    %3731 = sbr.rel (0) target = $region49
  $region48: #{transformer_model_forward.1} parent=0 // pred_region
    _
  $region49: #{transformer_model_forward.1} parent=0 // pred_fallthru
    _

</llo_original>
